<compile_context>
chip_gen: v6e
topology: v6e:2x2x1
jax: 0.10.0
libtpu: 0.0.40
codegen_flags: <defaults>
</compile_context>

<pallas_src>
from functools import partial

import jax
import jax.numpy as jnp
from jax.experimental import pallas as pl
from jax.experimental.pallas import tpu as pltpu

F32 = jnp.float32
BF16 = jnp.bfloat16
_VMEM_LIMIT = 56 * 1024 * 1024


def _round_up(x, m):
    return ((x + m - 1) // m) * m


def _sigmoid(x):
    # sigmoid via tanh: runs on the EUP slot, avoids the VPU divide of 1/(1+exp(-x)).
    return 0.5 * (jnp.tanh(0.5 * x) + 1.0)


# --------------------------------------------------------------------------------------
# Kernel 1: one-shot, time-invariant precompute (grid over padded batch, "parallel").
#   cnn = [frame, motion] @ W_cnn + b_cnn        (concat removed by splitting W_cnn)
#   aligned_obj / aligned_cnn = SemanticAlignment(phr, vis)
#   Uk = [aligned_obj, aligned_cnn, phr] @ U_s   (concat removed by splitting U_s)
# --------------------------------------------------------------------------------------
def _align_precompute_kernel(
    frame_ref, motion_ref, obj_ref, phr_ref,
    Wcf_ref, Wcm_ref, bc_ref,
    Wa_ref, Ua_ref, ba_ref, wa_ref,
    Uso_ref, Usc_ref, Usp_ref,
    aobj_ref, acnn_ref, uk_ref,
):
    frame = frame_ref[0]    # (T, 2H)  bf16
    motion = motion_ref[0]  # (T, 2H)  bf16
    obj = obj_ref[0]        # (N, F)   bf16
    phr = phr_ref[0]        # (P, Wd)  bf16

    cnn = (jnp.dot(frame, Wcf_ref[...], preferred_element_type=F32)
           + jnp.dot(motion, Wcm_ref[...], preferred_element_type=F32)
           + bc_ref[...])                                            # (T, 2H) f32

    Wh = jnp.dot(phr, Wa_ref[...], preferred_element_type=F32)       # (P, Hb) f32
    ba = ba_ref[...][0]   # (Hb,)
    wa = wa_ref[...][0]   # (Hb,)

    def align(vis):                                                  # vis: (Nv, feat) bf16
        Uv = jnp.dot(vis, Ua_ref[...], preferred_element_type=F32)   # (Nv, Hb)
        t = jnp.tanh(Wh[:, None, :] + Uv[None, :, :] + ba)           # (P, Nv, Hb) f32
        e = jnp.sum(t * wa, axis=-1)                                 # (P, Nv)
        e = e - jnp.max(e, axis=-1, keepdims=True)
        p = jnp.exp(e)
        p = p * pl.reciprocal(jnp.sum(p, axis=-1, keepdims=True), approx=True)
        return jnp.dot(p.astype(BF16), vis, preferred_element_type=F32)   # (P, feat) f32

    a_obj = align(obj)                                               # (P, F)
    a_cnn = align(cnn.astype(BF16))                                  # (P, 2H)

    uk = (jnp.dot(a_obj.astype(BF16), Uso_ref[...], preferred_element_type=F32)
          + jnp.dot(a_cnn.astype(BF16), Usc_ref[...], preferred_element_type=F32)
          + jnp.dot(phr, Usp_ref[...], preferred_element_type=F32))  # (P, Hb)

    aobj_ref[0] = a_obj.astype(aobj_ref.dtype)
    acnn_ref[0] = a_cnn.astype(acnn_ref.dtype)
    uk_ref[0] = uk.astype(uk_ref.dtype)


# --------------------------------------------------------------------------------------
# Kernel 2: fused recurrent decode.  One grid step per batch block ("parallel"); the step
# loop is an in-kernel fori_loop with (h, c) carried as values.  Emits only dec_out.
# --------------------------------------------------------------------------------------
def _decode_steps_kernel(
    aobj_ref, acnn_ref, phr_ref, uk_ref, wih_w_ref, wout_w_ref,
    Ws_ref, bs_ref, ws_ref,
    Wih_o_ref, Wih_c_ref, Wih_p_ref, Whh_ref, blstm_ref,
    Wout_h_ref, Wout_o_ref, Wout_c_ref, Wout_p_ref, bout_ref,
    dec_ref,
):
    aobj = aobj_ref[...]                 # (Bb, P, F)   bf16
    acnn = acnn_ref[...]                 # (Bb, P, 2H)  bf16
    phr = phr_ref[...]                   # (Bb, P, Wd)  bf16
    uk = uk_ref[...].astype(F32)         # (Bb, P, Hb)  f32
    bs = bs_ref[...][0]                  # (Hb,)
    ws = ws_ref[...][0]                  # (Hb,)
    blstm = blstm_ref[...]               # (1, 4H)
    bout = bout_ref[...]                 # (1, H)

    Bb, P, _ = aobj.shape
    H = Whh_ref.shape[0]
    S = dec_ref.shape[0]

    row = jax.lax.broadcasted_iota(jnp.int32, (Bb, P), 1)

    def step(s, carry):
        h_prev, c_prev = carry           # (Bb, H) f32
        h_b = h_prev.astype(BF16)

        # ---------------- SemanticAttention over valid phrase rows ----------------
        wq = jnp.dot(h_b, Ws_ref[...], preferred_element_type=F32)   # (Bb, Hb)
        ts = jnp.tanh(wq[:, None, :] + uk + bs)                      # (Bb, P, Hb) f32
        e = jnp.sum(ts * ws, axis=-1)                                 # (Bb, P)
        # phrase rows valid at step s: {0} (the <start> row) at s==0, else {1..s}
        valid = ((row >= 1) & (row <= s)) | ((row == 0) & (s == 0))
        e = jnp.where(valid, e, -1e30)
        e = e - jnp.max(e, axis=-1, keepdims=True)
        p = jnp.exp(e)
        attn = p * pl.reciprocal(jnp.sum(p, axis=-1, keepdims=True), approx=True)
        aw = attn[:, :, None]
        feat_obj = jnp.sum(aw * aobj, axis=1)     # (Bb, F)   f32
        feat_cnn = jnp.sum(aw * acnn, axis=1)     # (Bb, 2H)  f32
        feat_phr = jnp.sum(aw * phr, axis=1)      # (Bb, Wd)  f32
        fo_b = feat_obj.astype(BF16)
        fc_b = feat_cnn.astype(BF16)
        fp_b = feat_phr.astype(BF16)

        # ------------ language LSTM cell (split weights; word term precomputed) ------------
        gates = (jnp.dot(fo_b, Wih_o_ref[...], preferred_element_type=F32)
                 + jnp.dot(fc_b, Wih_c_ref[...], preferred_element_type=F32)
                 + jnp.dot(fp_b, Wih_p_ref[...], preferred_element_type=F32)
                 + jnp.dot(h_b, Whh_ref[...], preferred_element_type=F32)
                 + wih_w_ref[s]
                 + blstm)                          # (Bb, 4H) f32
        i_g = _sigmoid(gates[:, 0:H])
        f_g = _sigmoid(gates[:, H:2 * H])
        g_g = jnp.tanh(gates[:, 2 * H:3 * H])
        o_g = _sigmoid(gates[:, 3 * H:4 * H])
        c_new = f_g * c_prev + i_g * g_g
        h_new = o_g * jnp.tanh(c_new)

        # ------------ out_fc (vocab projection + log_softmax hoisted to kernel 3) ------------
        dec_out = jnp.tanh(
            jnp.dot(h_new.astype(BF16), Wout_h_ref[...], preferred_element_type=F32)
            + jnp.dot(fo_b, Wout_o_ref[...], preferred_element_type=F32)
            + jnp.dot(fc_b, Wout_c_ref[...], preferred_element_type=F32)
            + jnp.dot(fp_b, Wout_p_ref[...], preferred_element_type=F32)
            + wout_w_ref[s]
            + bout)                                # (Bb, H) f32
        dec_ref[s] = dec_out.astype(dec_ref.dtype)
        return h_new, c_new

    h0 = jnp.zeros((Bb, H), F32)
    c0 = jnp.zeros((Bb, H), F32)
    jax.lax.fori_loop(0, S, step, (h0, c0))


# --------------------------------------------------------------------------------------
# Kernel 3: hoisted vocab projection + log_softmax, gridded over row blocks of (S*B, H).
# --------------------------------------------------------------------------------------
def _vocab_logsoftmax_kernel(dec_ref, Wrest_ref, brest_ref, out_ref):
    logits = (jnp.dot(dec_ref[...], Wrest_ref[...], preferred_element_type=F32)
              + brest_ref[...])                                      # (tr, Vpad); pad cols -1e30
    logits = logits - jnp.max(logits, axis=-1, keepdims=True)
    out_ref[...] = logits - jnp.log(jnp.sum(jnp.exp(logits), axis=-1, keepdims=True))


# --------------------------------------------------------------------------------------
# Wrapper
# --------------------------------------------------------------------------------------
@partial(jax.jit, static_argnames=("max_words", "start_idx"))
def decoder_forward(params, frame_feats, i3d_feats, object_feats, captions,
                    max_words, start_idx=1):
    """Teacher-forcing (ratio=1.0, eval-mode dropout) Decoder.forward.
    Returns (B, max_words, vocab) of log-softmax word logits."""
    B, T, Nb, F = object_feats.shape
    H = params["W_hh"].shape[0]
    H2 = 2 * H
    Wd = params["embed"].shape[1]
    V = params["W_rest"].shape[1]
    S = max_words
    N = T * Nb

    P = _round_up(S, 8)                # phrase rows padded to a sublane multiple
    Vpad = _round_up(V, 128)           # lane-dense logits
    Bpad = _round_up(max(B, 8), 8)     # sublane-dense batch
    nb = 2 if (Bpad >= 16 and Bpad % 16 == 0) else 1   # v7x: 2-core batch split
    Bb = Bpad // nb

    embed = params["embed"].astype(F32)

    # ---- batch-pad inputs (padded rows are zeros; sliced off at the end) ----
    frame_p = jnp.zeros((Bpad, T, H2), BF16).at[:B].set(frame_feats.astype(BF16))
    motion_p = jnp.zeros((Bpad, T, H2), BF16).at[:B].set(i3d_feats.astype(BF16))
    obj_p = jnp.zeros((Bpad, N, F), BF16).at[:B].set(
        object_feats.reshape(B, N, F).astype(BF16))
    caps_p = jnp.zeros((Bpad, S), jnp.int32).at[:B].set(captions[:, :S].astype(jnp.int32))

    # Teacher-forced input word per step: step 0 = <start>, step i = captions[:, i-1].
    start_emb = jnp.broadcast_to(embed[start_idx][None, :], (Bpad, Wd))
    tf_words = embed[caps_p[:, :S - 1]]                              # (Bpad, S-1, Wd)
    words_in = jnp.concatenate([start_emb[:, None, :], tf_words], axis=1)   # (Bpad, S, Wd)
    # Phrase buffer: row j = input word of step j (row 0 = <start>), zero-padded to P.
    phr_all = jnp.zeros((Bpad, P, Wd), BF16).at[:, :S, :].set(words_in.astype(BF16))

    # ---- split / pad / cast weights once (no in-kernel concats, lane-padded vocab) ----
    def b16(x):
        return x.astype(BF16)

    Wc = params["W_cnn"]
    Wcf, Wcm = b16(Wc[:H2]), b16(Wc[H2:])
    Us = params["U_s"]
    Uso, Usc, Usp = b16(Us[:F]), b16(Us[F:F + H2]), b16(Us[F + H2:F + H2 + Wd])
    Wih = params["W_ih"]
    Wih_o, Wih_c = b16(Wih[:F]), b16(Wih[F:F + H2])
    Wih_p = b16(Wih[F + H2:F + H2 + Wd])
    Wih_w = Wih[F + H2 + Wd:]                      # f32: used in the hoisted wrapper matmul
    Wout = params["W_out"]
    Wout_h = b16(Wout[:H])
    Wout_o = b16(Wout[H:H + F])
    Wout_c = b16(Wout[H + F:H + F + H2])
    Wout_p = b16(Wout[H + F + H2:H + F + H2 + Wd])
    Wout_w = Wout[H + F + H2 + Wd:]                # f32: used in the hoisted wrapper matmul
    Wrest_p = jnp.zeros((H, Vpad), BF16).at[:, :V].set(b16(params["W_rest"]))
    brest_p = jnp.full((1, Vpad), -1e30, F32).at[:, :V].set(params["b_rest"].astype(F32))

    # ---- precompute teacher-forced word contributions as two big matmuls ----
    words_sb = jnp.transpose(words_in, (1, 0, 2)).reshape(S * Bpad, Wd)
    wih_words = jnp.dot(words_sb, Wih_w).reshape(S, Bpad, 4 * H).astype(F32)
    wout_words = jnp.dot(words_sb, Wout_w).reshape(S, Bpad, H).astype(F32)

    def per_batch(shape):
        n = len(shape)
        return pl.BlockSpec(shape, lambda g, n=n: (g,) + (0,) * (n - 1))

    def shared(arr):
        n = arr.ndim
        return pl.BlockSpec(arr.shape, lambda g, n=n: (0,) * n)

    # ---------------- kernel 1: one-shot precompute (grid over padded batch) ----------------
    pre_weights = [Wcf, Wcm, params["b_cnn"].astype(F32),
                   b16(params["W_a"]), b16(params["U_a"]),
                   params["b_a"].astype(F32), params["w_a"].astype(F32),
                   Uso, Usc, Usp]
    aobj, acnn, uk = pl.pallas_call(
        _align_precompute_kernel,
        grid=(Bpad,),
        in_specs=[per_batch((1, T, H2)), per_batch((1, T, H2)),
                  per_batch((1, N, F)), per_batch((1, P, Wd))]
                 + [shared(w) for w in pre_weights],
        out_specs=[per_batch((1, P, F)), per_batch((1, P, H2)), per_batch((1, P, H))],
        out_shape=[jax.ShapeDtypeStruct((Bpad, P, F), BF16),
                   jax.ShapeDtypeStruct((Bpad, P, H2), BF16),
                   jax.ShapeDtypeStruct((Bpad, P, H), BF16)],
        compiler_params=pltpu.CompilerParams(
            dimension_semantics=("parallel",),
            vmem_limit_bytes=_VMEM_LIMIT),
    )(frame_p, motion_p, obj_p, phr_all, *pre_weights)

    # ---------------- kernel 2: fused recurrent decode (grid over batch blocks) ----------------
    dec_weights = [b16(params["W_s"]), params["b_s"].astype(F32), params["w_s"].astype(F32),
                   Wih_o, Wih_c, Wih_p, b16(params["W_hh"]), params["b_lstm"].astype(F32),
                   Wout_h, Wout_o, Wout_c, Wout_p, params["b_out"].astype(F32)]

    def batch_block(shape):
        return pl.BlockSpec(shape, lambda b: (b, 0, 0))

    def step_block(shape):
        return pl.BlockSpec(shape, lambda b: (0, b, 0))

    dec = pl.pallas_call(
        _decode_steps_kernel,
        grid=(nb,),
        in_specs=[batch_block((Bb, P, F)), batch_block((Bb, P, H2)),
                  batch_block((Bb, P, Wd)), batch_block((Bb, P, H)),
                  step_block((S, Bb, 4 * H)), step_block((S, Bb, H))]
                 + [shared(w) for w in dec_weights],
        out_specs=pl.BlockSpec((S, Bb, H), lambda b: (0, b, 0)),
        out_shape=jax.ShapeDtypeStruct((S, Bpad, H), BF16),
        compiler_params=pltpu.CompilerParams(
            dimension_semantics=("parallel",),
            vmem_limit_bytes=_VMEM_LIMIT),
    )(aobj, acnn, phr_all, uk, wih_words, wout_words, *dec_weights)

    # ---------------- kernel 3: hoisted vocab projection + log_softmax ----------------
    dec_flat = jnp.transpose(dec, (1, 0, 2)).reshape(Bpad * S, H)   # tiny (no Vpad) transpose
    Rflat = Bpad * S
    tr = Rflat if Rflat <= 256 else 256
    Rp = _round_up(Rflat, tr)
    if Rp != Rflat:
        dec_flat = jnp.concatenate(
            [dec_flat, jnp.zeros((Rp - Rflat, H), dec_flat.dtype)], axis=0)

    logits_flat = pl.pallas_call(
        _vocab_logsoftmax_kernel,
        grid=(Rp // tr,),
        in_specs=[pl.BlockSpec((tr, H), lambda i: (i, 0)),
                  pl.BlockSpec((H, Vpad), lambda i: (0, 0)),
                  pl.BlockSpec((1, Vpad), lambda i: (0, 0))],
        out_specs=pl.BlockSpec((tr, Vpad), lambda i: (i, 0)),
        out_shape=jax.ShapeDtypeStruct((Rp, Vpad), F32),
        compiler_params=pltpu.CompilerParams(
            dimension_semantics=("parallel",),
            vmem_limit_bytes=_VMEM_LIMIT),
    )(dec_flat, Wrest_p, brest_p)

    logits = logits_flat[:Rflat].reshape(Bpad, S, Vpad)
    # TODO(synk): downstream consumers could keep the lane-padded (Bpad, S, Vpad) layout;
    # we slice back to the reference (B, S, V) shape here.
    return logits[:B, :, :V]


def init_params(key, H, Wd, F, V):
    """Deterministic synthetic parameters. Linear weights stored transposed: (in, out)."""
    K = Wd + 2 * F                 # semantic attention key size
    Din = K + Wd                   # lang_lstm input size
    keys = jax.random.split(key, 12)

    def nrm(k, shape, scale=0.1):
        return (scale * jax.random.normal(k, shape)).astype(jnp.float32)

    return {
        "embed":  nrm(keys[0], (V, Wd)),
        "W_a":    nrm(keys[1], (Wd, H)),
        "U_a":    nrm(keys[2], (F, H)),
        "b_a":    jnp.ones((1, H), jnp.float32),          # nn.Parameter(torch.ones)
        "w_a":    nrm(keys[3], (1, H)),
        "W_cnn":  nrm(keys[4], (4 * H, 2 * H)),
        "b_cnn":  jnp.zeros((1, 2 * H), jnp.float32),
        "W_s":    nrm(keys[5], (H, H)),
        "U_s":    nrm(keys[6], (K, H)),
        "b_s":    jnp.ones((1, H), jnp.float32),
        "w_s":    nrm(keys[7], (1, H)),
        "W_ih":   nrm(keys[8], (Din, 4 * H)),
        "W_hh":   nrm(keys[9], (H, 4 * H)),
        "b_lstm": jnp.zeros((1, 4 * H), jnp.float32),
        "W_out":  nrm(keys[10], (5 * H + 2 * Wd, H)),
        "b_out":  jnp.zeros((1, H), jnp.float32),
        "W_rest": nrm(keys[11], (H, V)),
        "b_rest": jnp.zeros((1, V), jnp.float32),
    }


if __name__ == "__main__":
    # feature_size = 2*hidden so cnnembedded output and object feats share the
    # SemanticAlignment feat_size (as in the reference module).
    B, T, Nb = 2, 4, 3
    H, Wd, V, MAX_WORDS = 32, 16, 50, 6
    F = 2 * H

    key = jax.random.PRNGKey(0)
    k_p, k1, k2, k3, k4 = jax.random.split(key, 5)

    params = init_params(k_p, H, Wd, F, V)
    frame_feats = jax.random.normal(k1, (B, T, 2 * H), jnp.float32)
    i3d_feats = jax.random.normal(k2, (B, T, 2 * H), jnp.float32)
    object_feats = jax.random.normal(k3, (B, T, Nb, F), jnp.float32)
    captions = jax.random.randint(k4, (B, MAX_WORDS), 3, V)

    out = decoder_forward(params, frame_feats, i3d_feats, object_feats, captions,
                          max_words=MAX_WORDS, start_idx=1)
    out = jax.block_until_ready(out)
    assert out.shape == (B, MAX_WORDS, V)
    assert bool(jnp.isfinite(out).all())
    print("KERNEL_OK")
</pallas_src>

<mosaic_0001>
module attributes {stable_mosaic.version = 11 : i64} {
  func.func @_align_precompute_kernel(%arg0: i32, %arg1: memref<1x4x64xbf16, #tpu.memory_space<vmem>>, %arg2: memref<1x4x64xbf16, #tpu.memory_space<vmem>>, %arg3: memref<1x12x64xbf16, #tpu.memory_space<vmem>>, %arg4: memref<1x8x16xbf16, #tpu.memory_space<vmem>>, %arg5: memref<64x64xbf16, #tpu.memory_space<vmem>>, %arg6: memref<64x64xbf16, #tpu.memory_space<vmem>>, %arg7: memref<1x64xf32, #tpu.memory_space<vmem>>, %arg8: memref<16x32xbf16, #tpu.memory_space<vmem>>, %arg9: memref<64x32xbf16, #tpu.memory_space<vmem>>, %arg10: memref<1x32xf32, #tpu.memory_space<vmem>>, %arg11: memref<1x32xf32, #tpu.memory_space<vmem>>, %arg12: memref<64x32xbf16, #tpu.memory_space<vmem>>, %arg13: memref<64x32xbf16, #tpu.memory_space<vmem>>, %arg14: memref<16x32xbf16, #tpu.memory_space<vmem>>, %arg15: memref<1x8x64xbf16, #tpu.memory_space<vmem>>, %arg16: memref<1x8x64xbf16, #tpu.memory_space<vmem>>, %arg17: memref<1x8x32xbf16, #tpu.memory_space<vmem>>) attributes {dimension_semantics = [#tpu.dimension_semantics<parallel>], iteration_bounds = array<i64: 8>, scalar_prefetch = 0 : i64, scratch_operands = 0 : i64, tpu.core_type = #tpu.core_type<tc>, window_params = [{transform_indices = @transform_0, window_bounds = array<i64: 1, 4, 64>}, {transform_indices = @transform_1, window_bounds = array<i64: 1, 4, 64>}, {transform_indices = @transform_2, window_bounds = array<i64: 1, 12, 64>}, {transform_indices = @transform_3, window_bounds = array<i64: 1, 8, 16>}, {pipeline_mode = #tpu.pipeline_mode<synchronous>, transform_indices = @transform_4, window_bounds = array<i64: 64, 64>}, {pipeline_mode = #tpu.pipeline_mode<synchronous>, transform_indices = @transform_5, window_bounds = array<i64: 64, 64>}, {pipeline_mode = #tpu.pipeline_mode<synchronous>, transform_indices = @transform_6, window_bounds = array<i64: 1, 64>}, {pipeline_mode = #tpu.pipeline_mode<synchronous>, transform_indices = @transform_7, window_bounds = array<i64: 16, 32>}, {pipeline_mode = #tpu.pipeline_mode<synchronous>, transform_indices = @transform_8, window_bounds = array<i64: 64, 32>}, {pipeline_mode = #tpu.pipeline_mode<synchronous>, transform_indices = @transform_9, window_bounds = array<i64: 1, 32>}, {pipeline_mode = #tpu.pipeline_mode<synchronous>, transform_indices = @transform_10, window_bounds = array<i64: 1, 32>}, {pipeline_mode = #tpu.pipeline_mode<synchronous>, transform_indices = @transform_11, window_bounds = array<i64: 64, 32>}, {pipeline_mode = #tpu.pipeline_mode<synchronous>, transform_indices = @transform_12, window_bounds = array<i64: 64, 32>}, {pipeline_mode = #tpu.pipeline_mode<synchronous>, transform_indices = @transform_13, window_bounds = array<i64: 16, 32>}, {transform_indices = @transform_14, window_bounds = array<i64: 1, 8, 64>}, {transform_indices = @transform_15, window_bounds = array<i64: 1, 8, 64>}, {transform_indices = @transform_16, window_bounds = array<i64: 1, 8, 32>}]} {
    %c0 = arith.constant 0 : index
    %c0_0 = arith.constant 0 : index
    %c0_1 = arith.constant 0 : index
    %0 = vector.load %arg1[%c0, %c0_0, %c0_1] : memref<1x4x64xbf16, #tpu.memory_space<vmem>>, vector<1x4x64xbf16>
    %1 = vector.shape_cast %0 : vector<1x4x64xbf16> to vector<4x64xbf16>
    %c0_2 = arith.constant 0 : index
    %c0_3 = arith.constant 0 : index
    %c0_4 = arith.constant 0 : index
    %2 = vector.load %arg2[%c0_2, %c0_3, %c0_4] : memref<1x4x64xbf16, #tpu.memory_space<vmem>>, vector<1x4x64xbf16>
    %3 = vector.shape_cast %2 : vector<1x4x64xbf16> to vector<4x64xbf16>
    %c0_5 = arith.constant 0 : index
    %c0_6 = arith.constant 0 : index
    %c0_7 = arith.constant 0 : index
    %4 = vector.load %arg3[%c0_5, %c0_6, %c0_7] : memref<1x12x64xbf16, #tpu.memory_space<vmem>>, vector<1x12x64xbf16>
    %5 = vector.shape_cast %4 : vector<1x12x64xbf16> to vector<12x64xbf16>
    %c0_8 = arith.constant 0 : index
    %c0_9 = arith.constant 0 : index
    %c0_10 = arith.constant 0 : index
    %6 = vector.load %arg4[%c0_8, %c0_9, %c0_10] : memref<1x8x16xbf16, #tpu.memory_space<vmem>>, vector<1x8x16xbf16>
    %7 = vector.shape_cast %6 : vector<1x8x16xbf16> to vector<8x16xbf16>
    %c0_11 = arith.constant 0 : index
    %c0_12 = arith.constant 0 : index
    %8 = vector.load %arg5[%c0_11, %c0_12] : memref<64x64xbf16, #tpu.memory_space<vmem>>, vector<64x64xbf16>
    %cst = arith.constant dense<0.000000e+00> : vector<4x64xf32>
    %9 = tpu.matmul %1, %8, %cst {dimension_numbers = #tpu.dot_dimension_numbers<[1], [0], [0], [1], [0, 0, 1, 1], [], []>} : vector<4x64xbf16>, vector<64x64xbf16>, vector<4x64xf32> -> vector<4x64xf32>
    %c0_13 = arith.constant 0 : index
    %c0_14 = arith.constant 0 : index
    %10 = vector.load %arg6[%c0_13, %c0_14] : memref<64x64xbf16, #tpu.memory_space<vmem>>, vector<64x64xbf16>
    %cst_15 = arith.constant dense<0.000000e+00> : vector<4x64xf32>
    %11 = tpu.matmul %3, %10, %cst_15 {dimension_numbers = #tpu.dot_dimension_numbers<[1], [0], [0], [1], [0, 0, 1, 1], [], []>} : vector<4x64xbf16>, vector<64x64xbf16>, vector<4x64xf32> -> vector<4x64xf32>
    %12 = arith.addf %9, %11 : vector<4x64xf32>
    %c0_16 = arith.constant 0 : index
    %c0_17 = arith.constant 0 : index
    %13 = vector.load %arg7[%c0_16, %c0_17] : memref<1x64xf32, #tpu.memory_space<vmem>>, vector<1x64xf32>
    %14 = vector.broadcast %13 : vector<1x64xf32> to vector<4x64xf32>
    %15 = arith.addf %12, %14 : vector<4x64xf32>
    %c0_18 = arith.constant 0 : index
    %c0_19 = arith.constant 0 : index
    %16 = vector.load %arg8[%c0_18, %c0_19] : memref<16x32xbf16, #tpu.memory_space<vmem>>, vector<16x32xbf16>
    %cst_20 = arith.constant dense<0.000000e+00> : vector<8x32xf32>
    %17 = tpu.matmul %7, %16, %cst_20 {dimension_numbers = #tpu.dot_dimension_numbers<[1], [0], [0], [1], [0, 0, 1, 1], [], []>} : vector<8x16xbf16>, vector<16x32xbf16>, vector<8x32xf32> -> vector<8x32xf32>
    %c0_21 = arith.constant 0 : index
    %c0_22 = arith.constant 0 : index
    %18 = vector.load %arg10[%c0_21, %c0_22] : memref<1x32xf32, #tpu.memory_space<vmem>>, vector<1x32xf32>
    %19 = vector.shape_cast %18 : vector<1x32xf32> to vector<32xf32>
    %c0_23 = arith.constant 0 : index
    %c0_24 = arith.constant 0 : index
    %20 = vector.load %arg11[%c0_23, %c0_24] : memref<1x32xf32, #tpu.memory_space<vmem>>, vector<1x32xf32>
    %21 = vector.shape_cast %20 : vector<1x32xf32> to vector<32xf32>
    %c0_25 = arith.constant 0 : index
    %c0_26 = arith.constant 0 : index
    %22 = vector.load %arg9[%c0_25, %c0_26] : memref<64x32xbf16, #tpu.memory_space<vmem>>, vector<64x32xbf16>
    %cst_27 = arith.constant dense<0.000000e+00> : vector<12x32xf32>
    %23 = tpu.matmul %5, %22, %cst_27 {dimension_numbers = #tpu.dot_dimension_numbers<[1], [0], [0], [1], [0, 0, 1, 1], [], []>} : vector<12x64xbf16>, vector<64x32xbf16>, vector<12x32xf32> -> vector<12x32xf32>
    %24 = vector.shape_cast %17 : vector<8x32xf32> to vector<8x1x32xf32>
    %25 = vector.shape_cast %23 : vector<12x32xf32> to vector<1x12x32xf32>
    %26 = vector.broadcast %24 : vector<8x1x32xf32> to vector<8x12x32xf32>
    %27 = vector.broadcast %25 : vector<1x12x32xf32> to vector<8x12x32xf32>
    %28 = arith.addf %26, %27 : vector<8x12x32xf32>
    %29 = vector.shape_cast %19 : vector<32xf32> to vector<1x1x32xf32>
    %30 = vector.broadcast %29 : vector<1x1x32xf32> to vector<8x12x32xf32>
    %31 = arith.addf %28, %30 : vector<8x12x32xf32>
    %32 = math.tanh %31 : vector<8x12x32xf32>
    %33 = vector.shape_cast %21 : vector<32xf32> to vector<1x1x32xf32>
    %34 = vector.broadcast %33 : vector<1x1x32xf32> to vector<8x12x32xf32>
    %35 = arith.mulf %32, %34 : vector<8x12x32xf32>
    %cst_28 = arith.constant dense<0.000000e+00> : vector<8x12xf32>
    %36 = vector.multi_reduction <add>, %35, %cst_28 [2] : vector<8x12x32xf32> to vector<8x12xf32>
    %cst_29 = arith.constant dense<0xFF800000> : vector<8xf32>
    %37 = vector.multi_reduction <maximumf>, %36, %cst_29 [1] : vector<8x12xf32> to vector<8xf32>
    %38 = vector.shape_cast %37 : vector<8xf32> to vector<8x1xf32>
    %39 = vector.broadcast %38 : vector<8x1xf32> to vector<8x12xf32>
    %40 = arith.subf %36, %39 : vector<8x12xf32>
    %41 = math.exp %40 : vector<8x12xf32>
    %cst_30 = arith.constant dense<0.000000e+00> : vector<8xf32>
    %42 = vector.multi_reduction <add>, %41, %cst_30 [1] : vector<8x12xf32> to vector<8xf32>
    %43 = vector.shape_cast %42 : vector<8xf32> to vector<8x1xf32>
    %44 = tpu.reciprocal %43 {approx = true} : vector<8x1xf32> -> vector<8x1xf32>
    %45 = vector.broadcast %44 : vector<8x1xf32> to vector<8x12xf32>
    %46 = arith.mulf %41, %45 : vector<8x12xf32>
    %47 = arith.truncf %46 : vector<8x12xf32> to vector<8x12xbf16>
    %cst_31 = arith.constant dense<0.000000e+00> : vector<8x64xf32>
    %48 = tpu.matmul %47, %5, %cst_31 {dimension_numbers = #tpu.dot_dimension_numbers<[1], [0], [0], [1], [0, 0, 1, 1], [], []>} : vector<8x12xbf16>, vector<12x64xbf16>, vector<8x64xf32> -> vector<8x64xf32>
    %49 = arith.truncf %15 : vector<4x64xf32> to vector<4x64xbf16>
    %c0_32 = arith.constant 0 : index
    %c0_33 = arith.constant 0 : index
    %50 = vector.load %arg9[%c0_32, %c0_33] : memref<64x32xbf16, #tpu.memory_space<vmem>>, vector<64x32xbf16>
    %cst_34 = arith.constant dense<0.000000e+00> : vector<4x32xf32>
    %51 = tpu.matmul %49, %50, %cst_34 {dimension_numbers = #tpu.dot_dimension_numbers<[1], [0], [0], [1], [0, 0, 1, 1], [], []>} : vector<4x64xbf16>, vector<64x32xbf16>, vector<4x32xf32> -> vector<4x32xf32>
    %52 = vector.shape_cast %17 : vector<8x32xf32> to vector<8x1x32xf32>
    %53 = vector.shape_cast %51 : vector<4x32xf32> to vector<1x4x32xf32>
    %54 = vector.broadcast %52 : vector<8x1x32xf32> to vector<8x4x32xf32>
    %55 = vector.broadcast %53 : vector<1x4x32xf32> to vector<8x4x32xf32>
    %56 = arith.addf %54, %55 : vector<8x4x32xf32>
    %57 = vector.shape_cast %19 : vector<32xf32> to vector<1x1x32xf32>
    %58 = vector.broadcast %57 : vector<1x1x32xf32> to vector<8x4x32xf32>
    %59 = arith.addf %56, %58 : vector<8x4x32xf32>
    %60 = math.tanh %59 : vector<8x4x32xf32>
    %61 = vector.shape_cast %21 : vector<32xf32> to vector<1x1x32xf32>
    %62 = vector.broadcast %61 : vector<1x1x32xf32> to vector<8x4x32xf32>
    %63 = arith.mulf %60, %62 : vector<8x4x32xf32>
    %cst_35 = arith.constant dense<0.000000e+00> : vector<8x4xf32>
    %64 = vector.multi_reduction <add>, %63, %cst_35 [2] : vector<8x4x32xf32> to vector<8x4xf32>
    %cst_36 = arith.constant dense<0xFF800000> : vector<8xf32>
    %65 = vector.multi_reduction <maximumf>, %64, %cst_36 [1] : vector<8x4xf32> to vector<8xf32>
    %66 = vector.shape_cast %65 : vector<8xf32> to vector<8x1xf32>
    %67 = vector.broadcast %66 : vector<8x1xf32> to vector<8x4xf32>
    %68 = arith.subf %64, %67 : vector<8x4xf32>
    %69 = math.exp %68 : vector<8x4xf32>
    %cst_37 = arith.constant dense<0.000000e+00> : vector<8xf32>
    %70 = vector.multi_reduction <add>, %69, %cst_37 [1] : vector<8x4xf32> to vector<8xf32>
    %71 = vector.shape_cast %70 : vector<8xf32> to vector<8x1xf32>
    %72 = tpu.reciprocal %71 {approx = true} : vector<8x1xf32> -> vector<8x1xf32>
    %73 = vector.broadcast %72 : vector<8x1xf32> to vector<8x4xf32>
    %74 = arith.mulf %69, %73 : vector<8x4xf32>
    %75 = arith.truncf %74 : vector<8x4xf32> to vector<8x4xbf16>
    %cst_38 = arith.constant dense<0.000000e+00> : vector<8x64xf32>
    %76 = tpu.matmul %75, %49, %cst_38 {dimension_numbers = #tpu.dot_dimension_numbers<[1], [0], [0], [1], [0, 0, 1, 1], [], []>} : vector<8x4xbf16>, vector<4x64xbf16>, vector<8x64xf32> -> vector<8x64xf32>
    %77 = arith.truncf %48 : vector<8x64xf32> to vector<8x64xbf16>
    %c0_39 = arith.constant 0 : index
    %c0_40 = arith.constant 0 : index
    %78 = vector.load %arg12[%c0_39, %c0_40] : memref<64x32xbf16, #tpu.memory_space<vmem>>, vector<64x32xbf16>
    %cst_41 = arith.constant dense<0.000000e+00> : vector<8x32xf32>
    %79 = tpu.matmul %77, %78, %cst_41 {dimension_numbers = #tpu.dot_dimension_numbers<[1], [0], [0], [1], [0, 0, 1, 1], [], []>} : vector<8x64xbf16>, vector<64x32xbf16>, vector<8x32xf32> -> vector<8x32xf32>
    %80 = arith.truncf %76 : vector<8x64xf32> to vector<8x64xbf16>
    %c0_42 = arith.constant 0 : index
    %c0_43 = arith.constant 0 : index
    %81 = vector.load %arg13[%c0_42, %c0_43] : memref<64x32xbf16, #tpu.memory_space<vmem>>, vector<64x32xbf16>
    %cst_44 = arith.constant dense<0.000000e+00> : vector<8x32xf32>
    %82 = tpu.matmul %80, %81, %cst_44 {dimension_numbers = #tpu.dot_dimension_numbers<[1], [0], [0], [1], [0, 0, 1, 1], [], []>} : vector<8x64xbf16>, vector<64x32xbf16>, vector<8x32xf32> -> vector<8x32xf32>
    %83 = arith.addf %79, %82 : vector<8x32xf32>
    %c0_45 = arith.constant 0 : index
    %c0_46 = arith.constant 0 : index
    %84 = vector.load %arg14[%c0_45, %c0_46] : memref<16x32xbf16, #tpu.memory_space<vmem>>, vector<16x32xbf16>
    %cst_47 = arith.constant dense<0.000000e+00> : vector<8x32xf32>
    %85 = tpu.matmul %7, %84, %cst_47 {dimension_numbers = #tpu.dot_dimension_numbers<[1], [0], [0], [1], [0, 0, 1, 1], [], []>} : vector<8x16xbf16>, vector<16x32xbf16>, vector<8x32xf32> -> vector<8x32xf32>
    %86 = arith.addf %83, %85 : vector<8x32xf32>
    %87 = arith.truncf %48 : vector<8x64xf32> to vector<8x64xbf16>
    %c0_48 = arith.constant 0 : index
    %c0_49 = arith.constant 0 : index
    %c0_50 = arith.constant 0 : index
    %88 = vector.load %arg15[%c0_48, %c0_49, %c0_50] : memref<1x8x64xbf16, #tpu.memory_space<vmem>>, vector<1x8x64xbf16>
    %89 = vector.shape_cast %88 : vector<1x8x64xbf16> to vector<8x64xbf16>
    %90 = vector.shape_cast %87 : vector<8x64xbf16> to vector<1x8x64xbf16>
    tpu.vector_store %arg15[%c0_48, %c0_49, %c0_50], %90 {strides = array<i32>} : memref<1x8x64xbf16, #tpu.memory_space<vmem>>, vector<1x8x64xbf16>,
    %91 = arith.truncf %76 : vector<8x64xf32> to vector<8x64xbf16>
    %c0_51 = arith.constant 0 : index
    %c0_52 = arith.constant 0 : index
    %c0_53 = arith.constant 0 : index
    %92 = vector.load %arg16[%c0_51, %c0_52, %c0_53] : memref<1x8x64xbf16, #tpu.memory_space<vmem>>, vector<1x8x64xbf16>
    %93 = vector.shape_cast %92 : vector<1x8x64xbf16> to vector<8x64xbf16>
    %94 = vector.shape_cast %91 : vector<8x64xbf16> to vector<1x8x64xbf16>
    tpu.vector_store %arg16[%c0_51, %c0_52, %c0_53], %94 {strides = array<i32>} : memref<1x8x64xbf16, #tpu.memory_space<vmem>>, vector<1x8x64xbf16>,
    %95 = arith.truncf %86 : vector<8x32xf32> to vector<8x32xbf16>
    %c0_54 = arith.constant 0 : index
    %c0_55 = arith.constant 0 : index
    %c0_56 = arith.constant 0 : index
    %96 = vector.load %arg17[%c0_54, %c0_55, %c0_56] : memref<1x8x32xbf16, #tpu.memory_space<vmem>>, vector<1x8x32xbf16>
    %97 = vector.shape_cast %96 : vector<1x8x32xbf16> to vector<8x32xbf16>
    %98 = vector.shape_cast %95 : vector<8x32xbf16> to vector<1x8x32xbf16>
    tpu.vector_store %arg17[%c0_54, %c0_55, %c0_56], %98 {strides = array<i32>} : memref<1x8x32xbf16, #tpu.memory_space<vmem>>, vector<1x8x32xbf16>,
    return
  }
  func.func @transform_0(%arg0: i32) -> (i32, i32, i32) {
    %c0_i32 = arith.constant 0 : i32
    %c0_i32_0 = arith.constant 0 : i32
    %c0_i32_1 = arith.constant 0 : i32
    return %arg0, %c0_i32, %c0_i32_0 : i32, i32, i32
  }
  func.func @transform_1(%arg0: i32) -> (i32, i32, i32) {
    %c0_i32 = arith.constant 0 : i32
    %c0_i32_0 = arith.constant 0 : i32
    %c0_i32_1 = arith.constant 0 : i32
    return %arg0, %c0_i32, %c0_i32_0 : i32, i32, i32
  }
  func.func @transform_2(%arg0: i32) -> (i32, i32, i32) {
    %c0_i32 = arith.constant 0 : i32
    %c0_i32_0 = arith.constant 0 : i32
    %c0_i32_1 = arith.constant 0 : i32
    return %arg0, %c0_i32, %c0_i32_0 : i32, i32, i32
  }
  func.func @transform_3(%arg0: i32) -> (i32, i32, i32) {
    %c0_i32 = arith.constant 0 : i32
    %c0_i32_0 = arith.constant 0 : i32
    %c0_i32_1 = arith.constant 0 : i32
    return %arg0, %c0_i32, %c0_i32_0 : i32, i32, i32
  }
  func.func @transform_4(%arg0: i32) -> (i32, i32) {
    %c0_i32 = arith.constant 0 : i32
    %c0_i32_0 = arith.constant 0 : i32
    %c0_i32_1 = arith.constant 0 : i32
    return %c0_i32, %c0_i32_0 : i32, i32
  }
  func.func @transform_5(%arg0: i32) -> (i32, i32) {
    %c0_i32 = arith.constant 0 : i32
    %c0_i32_0 = arith.constant 0 : i32
    %c0_i32_1 = arith.constant 0 : i32
    return %c0_i32, %c0_i32_0 : i32, i32
  }
  func.func @transform_6(%arg0: i32) -> (i32, i32) {
    %c0_i32 = arith.constant 0 : i32
    %c0_i32_0 = arith.constant 0 : i32
    %c0_i32_1 = arith.constant 0 : i32
    return %c0_i32, %c0_i32_0 : i32, i32
  }
  func.func @transform_7(%arg0: i32) -> (i32, i32) {
    %c0_i32 = arith.constant 0 : i32
    %c0_i32_0 = arith.constant 0 : i32
    %c0_i32_1 = arith.constant 0 : i32
    return %c0_i32, %c0_i32_0 : i32, i32
  }
  func.func @transform_8(%arg0: i32) -> (i32, i32) {
    %c0_i32 = arith.constant 0 : i32
    %c0_i32_0 = arith.constant 0 : i32
    %c0_i32_1 = arith.constant 0 : i32
    return %c0_i32, %c0_i32_0 : i32, i32
  }
  func.func @transform_9(%arg0: i32) -> (i32, i32) {
    %c0_i32 = arith.constant 0 : i32
    %c0_i32_0 = arith.constant 0 : i32
    %c0_i32_1 = arith.constant 0 : i32
    return %c0_i32, %c0_i32_0 : i32, i32
  }
  func.func @transform_10(%arg0: i32) -> (i32, i32) {
    %c0_i32 = arith.constant 0 : i32
    %c0_i32_0 = arith.constant 0 : i32
    %c0_i32_1 = arith.constant 0 : i32
    return %c0_i32, %c0_i32_0 : i32, i32
  }
  func.func @transform_11(%arg0: i32) -> (i32, i32) {
    %c0_i32 = arith.constant 0 : i32
    %c0_i32_0 = arith.constant 0 : i32
    %c0_i32_1 = arith.constant 0 : i32
    return %c0_i32, %c0_i32_0 : i32, i32
  }
  func.func @transform_12(%arg0: i32) -> (i32, i32) {
    %c0_i32 = arith.constant 0 : i32
    %c0_i32_0 = arith.constant 0 : i32
    %c0_i32_1 = arith.constant 0 : i32
    return %c0_i32, %c0_i32_0 : i32, i32
  }
  func.func @transform_13(%arg0: i32) -> (i32, i32) {
    %c0_i32 = arith.constant 0 : i32
    %c0_i32_0 = arith.constant 0 : i32
    %c0_i32_1 = arith.constant 0 : i32
    return %c0_i32, %c0_i32_0 : i32, i32
  }
  func.func @transform_14(%arg0: i32) -> (i32, i32, i32) {
    %c0_i32 = arith.constant 0 : i32
    %c0_i32_0 = arith.constant 0 : i32
    %c0_i32_1 = arith.constant 0 : i32
    return %arg0, %c0_i32, %c0_i32_0 : i32, i32, i32
  }
  func.func @transform_15(%arg0: i32) -> (i32, i32, i32) {
    %c0_i32 = arith.constant 0 : i32
    %c0_i32_0 = arith.constant 0 : i32
    %c0_i32_1 = arith.constant 0 : i32
    return %arg0, %c0_i32, %c0_i32_0 : i32, i32, i32
  }
  func.func @transform_16(%arg0: i32) -> (i32, i32, i32) {
    %c0_i32 = arith.constant 0 : i32
    %c0_i32_0 = arith.constant 0 : i32
    %c0_i32_1 = arith.constant 0 : i32
    return %arg0, %c0_i32, %c0_i32_0 : i32, i32, i32
  }
}

module attributes {stable_mosaic.version = 11 : i64} {
  func.func @_decode_steps_kernel(%arg0: i32, %arg1: memref<8x8x64xbf16, #tpu.memory_space<vmem>>, %arg2: memref<8x8x64xbf16, #tpu.memory_space<vmem>>, %arg3: memref<8x8x16xbf16, #tpu.memory_space<vmem>>, %arg4: memref<8x8x32xbf16, #tpu.memory_space<vmem>>, %arg5: memref<6x8x128xf32, #tpu.memory_space<vmem>>, %arg6: memref<6x8x32xf32, #tpu.memory_space<vmem>>, %arg7: memref<32x32xbf16, #tpu.memory_space<vmem>>, %arg8: memref<1x32xf32, #tpu.memory_space<vmem>>, %arg9: memref<1x32xf32, #tpu.memory_space<vmem>>, %arg10: memref<64x128xbf16, #tpu.memory_space<vmem>>, %arg11: memref<64x128xbf16, #tpu.memory_space<vmem>>, %arg12: memref<16x128xbf16, #tpu.memory_space<vmem>>, %arg13: memref<32x128xbf16, #tpu.memory_space<vmem>>, %arg14: memref<1x128xf32, #tpu.memory_space<vmem>>, %arg15: memref<32x32xbf16, #tpu.memory_space<vmem>>, %arg16: memref<64x32xbf16, #tpu.memory_space<vmem>>, %arg17: memref<64x32xbf16, #tpu.memory_space<vmem>>, %arg18: memref<16x32xbf16, #tpu.memory_space<vmem>>, %arg19: memref<1x32xf32, #tpu.memory_space<vmem>>, %arg20: memref<6x8x32xbf16, #tpu.memory_space<vmem>>) attributes {dimension_semantics = [#tpu.dimension_semantics<parallel>], iteration_bounds = array<i64: 1>, scalar_prefetch = 0 : i64, scratch_operands = 0 : i64, tpu.core_type = #tpu.core_type<tc>, window_params = [{transform_indices = @transform_0, window_bounds = array<i64: 8, 8, 64>}, {transform_indices = @transform_1, window_bounds = array<i64: 8, 8, 64>}, {transform_indices = @transform_2, window_bounds = array<i64: 8, 8, 16>}, {transform_indices = @transform_3, window_bounds = array<i64: 8, 8, 32>}, {transform_indices = @transform_4, window_bounds = array<i64: 6, 8, 128>}, {transform_indices = @transform_5, window_bounds = array<i64: 6, 8, 32>}, {pipeline_mode = #tpu.pipeline_mode<synchronous>, transform_indices = @transform_6, window_bounds = array<i64: 32, 32>}, {pipeline_mode = #tpu.pipeline_mode<synchronous>, transform_indices = @transform_7, window_bounds = array<i64: 1, 32>}, {pipeline_mode = #tpu.pipeline_mode<synchronous>, transform_indices = @transform_8, window_bounds = array<i64: 1, 32>}, {pipeline_mode = #tpu.pipeline_mode<synchronous>, transform_indices = @transform_9, window_bounds = array<i64: 64, 128>}, {pipeline_mode = #tpu.pipeline_mode<synchronous>, transform_indices = @transform_10, window_bounds = array<i64: 64, 128>}, {pipeline_mode = #tpu.pipeline_mode<synchronous>, transform_indices = @transform_11, window_bounds = array<i64: 16, 128>}, {pipeline_mode = #tpu.pipeline_mode<synchronous>, transform_indices = @transform_12, window_bounds = array<i64: 32, 128>}, {pipeline_mode = #tpu.pipeline_mode<synchronous>, transform_indices = @transform_13, window_bounds = array<i64: 1, 128>}, {pipeline_mode = #tpu.pipeline_mode<synchronous>, transform_indices = @transform_14, window_bounds = array<i64: 32, 32>}, {pipeline_mode = #tpu.pipeline_mode<synchronous>, transform_indices = @transform_15, window_bounds = array<i64: 64, 32>}, {pipeline_mode = #tpu.pipeline_mode<synchronous>, transform_indices = @transform_16, window_bounds = array<i64: 64, 32>}, {pipeline_mode = #tpu.pipeline_mode<synchronous>, transform_indices = @transform_17, window_bounds = array<i64: 16, 32>}, {pipeline_mode = #tpu.pipeline_mode<synchronous>, transform_indices = @transform_18, window_bounds = array<i64: 1, 32>}, {transform_indices = @transform_19, window_bounds = array<i64: 6, 8, 32>}]} {
    %c0 = arith.constant 0 : index
    %c0_0 = arith.constant 0 : index
    %c0_1 = arith.constant 0 : index
    %0 = vector.load %arg1[%c0, %c0_0, %c0_1] : memref<8x8x64xbf16, #tpu.memory_space<vmem>>, vector<8x8x64xbf16>
    %c0_2 = arith.constant 0 : index
    %c0_3 = arith.constant 0 : index
    %c0_4 = arith.constant 0 : index
    %1 = vector.load %arg2[%c0_2, %c0_3, %c0_4] : memref<8x8x64xbf16, #tpu.memory_space<vmem>>, vector<8x8x64xbf16>
    %c0_5 = arith.constant 0 : index
    %c0_6 = arith.constant 0 : index
    %c0_7 = arith.constant 0 : index
    %2 = vector.load %arg3[%c0_5, %c0_6, %c0_7] : memref<8x8x16xbf16, #tpu.memory_space<vmem>>, vector<8x8x16xbf16>
    %c0_8 = arith.constant 0 : index
    %c0_9 = arith.constant 0 : index
    %c0_10 = arith.constant 0 : index
    %3 = vector.load %arg4[%c0_8, %c0_9, %c0_10] : memref<8x8x32xbf16, #tpu.memory_space<vmem>>, vector<8x8x32xbf16>
    %4 = arith.extf %3 : vector<8x8x32xbf16> to vector<8x8x32xf32>
    %c0_11 = arith.constant 0 : index
    %c0_12 = arith.constant 0 : index
    %5 = vector.load %arg8[%c0_11, %c0_12] : memref<1x32xf32, #tpu.memory_space<vmem>>, vector<1x32xf32>
    %6 = vector.shape_cast %5 : vector<1x32xf32> to vector<32xf32>
    %c0_13 = arith.constant 0 : index
    %c0_14 = arith.constant 0 : index
    %7 = vector.load %arg9[%c0_13, %c0_14] : memref<1x32xf32, #tpu.memory_space<vmem>>, vector<1x32xf32>
    %8 = vector.shape_cast %7 : vector<1x32xf32> to vector<32xf32>
    %c0_15 = arith.constant 0 : index
    %c0_16 = arith.constant 0 : index
    %9 = vector.load %arg14[%c0_15, %c0_16] : memref<1x128xf32, #tpu.memory_space<vmem>>, vector<1x128xf32>
    %c0_17 = arith.constant 0 : index
    %c0_18 = arith.constant 0 : index
    %10 = vector.load %arg19[%c0_17, %c0_18] : memref<1x32xf32, #tpu.memory_space<vmem>>, vector<1x32xf32>
    %11 = tpu.iota {dimensions = array<i32: 1>} : vector<8x8xi32>
    %cst = arith.constant 0.000000e+00 : f32
    %12 = vector.broadcast %cst : f32 to vector<8x32xf32>
    %cst_19 = arith.constant 0.000000e+00 : f32
    %13 = vector.broadcast %cst_19 : f32 to vector<8x32xf32>
    %c0_i32 = arith.constant 0 : i32
    %c6_i32 = arith.constant 6 : i32
    %14 = arith.addi %c0_i32, %c6_i32 : i32
    %c1_i32 = arith.constant 1 : i32
    %15:2 = scf.for %arg21 = %c0_i32 to %14 step %c1_i32 iter_args(%arg22 = %12, %arg23 = %13) -> (vector<8x32xf32>, vector<8x32xf32>)  : i32 {
      %16 = arith.truncf %arg22 : vector<8x32xf32> to vector<8x32xbf16>
      %c0_21 = arith.constant 0 : index
      %c0_22 = arith.constant 0 : index
      %17 = vector.load %arg7[%c0_21, %c0_22] : memref<32x32xbf16, #tpu.memory_space<vmem>>, vector<32x32xbf16>
      %cst_23 = arith.constant dense<0.000000e+00> : vector<8x32xf32>
      %18 = tpu.matmul %16, %17, %cst_23 {dimension_numbers = #tpu.dot_dimension_numbers<[1], [0], [0], [1], [0, 0, 1, 1], [], []>} : vector<8x32xbf16>, vector<32x32xbf16>, vector<8x32xf32> -> vector<8x32xf32>
      %19 = vector.shape_cast %18 : vector<8x32xf32> to vector<8x1x32xf32>
      %20 = vector.broadcast %19 : vector<8x1x32xf32> to vector<8x8x32xf32>
      %21 = arith.addf %20, %4 : vector<8x8x32xf32>
      %22 = vector.shape_cast %6 : vector<32xf32> to vector<1x1x32xf32>
      %23 = vector.broadcast %22 : vector<1x1x32xf32> to vector<8x8x32xf32>
      %24 = arith.addf %21, %23 : vector<8x8x32xf32>
      %25 = math.tanh %24 : vector<8x8x32xf32>
      %26 = vector.shape_cast %8 : vector<32xf32> to vector<1x1x32xf32>
      %27 = vector.broadcast %26 : vector<1x1x32xf32> to vector<8x8x32xf32>
      %28 = arith.mulf %25, %27 : vector<8x8x32xf32>
      %cst_24 = arith.constant dense<0.000000e+00> : vector<8x8xf32>
      %29 = vector.multi_reduction <add>, %28, %cst_24 [2] : vector<8x8x32xf32> to vector<8x8xf32>
      %c1_i32_25 = arith.constant 1 : i32
      %30 = vector.broadcast %c1_i32_25 : i32 to vector<8x8xi32>
      %31 = arith.cmpi sge, %11, %30 : vector<8x8xi32>
      %32 = vector.broadcast %arg21 : i32 to vector<8x8xi32>
      %33 = arith.cmpi sle, %11, %32 : vector<8x8xi32>
      %34 = arith.andi %31, %33 : vector<8x8xi1>
      %c0_i32_26 = arith.constant 0 : i32
      %35 = vector.broadcast %c0_i32_26 : i32 to vector<8x8xi32>
      %36 = arith.cmpi eq, %11, %35 : vector<8x8xi32>
      %c0_i32_27 = arith.constant 0 : i32
      %37 = arith.cmpi eq, %arg21, %c0_i32_27 : i32
      %38 = vector.broadcast %37 : i1 to vector<8x8xi1>
      %39 = arith.andi %36, %38 : vector<8x8xi1>
      %40 = arith.ori %34, %39 : vector<8x8xi1>
      %cst_28 = arith.constant -1.000000e+30 : f32
      %41 = vector.broadcast %cst_28 : f32 to vector<8x8xf32>
      %42 = arith.select %40, %29, %41 : vector<8x8xi1>, vector<8x8xf32>
      %cst_29 = arith.constant dense<0xFF800000> : vector<8xf32>
      %43 = vector.multi_reduction <maximumf>, %42, %cst_29 [1] : vector<8x8xf32> to vector<8xf32>
      %44 = vector.shape_cast %43 : vector<8xf32> to vector<8x1xf32>
      %45 = vector.broadcast %44 : vector<8x1xf32> to vector<8x8xf32>
      %46 = arith.subf %42, %45 : vector<8x8xf32>
      %47 = math.exp %46 : vector<8x8xf32>
      %cst_30 = arith.constant dense<0.000000e+00> : vector<8xf32>
      %48 = vector.multi_reduction <add>, %47, %cst_30 [1] : vector<8x8xf32> to vector<8xf32>
      %49 = vector.shape_cast %48 : vector<8xf32> to vector<8x1xf32>
      %50 = tpu.reciprocal %49 {approx = true} : vector<8x1xf32> -> vector<8x1xf32>
      %51 = vector.broadcast %50 : vector<8x1xf32> to vector<8x8xf32>
      %52 = arith.mulf %47, %51 : vector<8x8xf32>
      %53 = vector.shape_cast %52 : vector<8x8xf32> to vector<8x8x1xf32>
      %54 = arith.extf %0 : vector<8x8x64xbf16> to vector<8x8x64xf32>
      %55 = vector.broadcast %53 : vector<8x8x1xf32> to vector<8x8x64xf32>
      %56 = arith.mulf %55, %54 : vector<8x8x64xf32>
      %cst_31 = arith.constant dense<0.000000e+00> : vector<8x64xf32>
      %57 = vector.multi_reduction <add>, %56, %cst_31 [1] : vector<8x8x64xf32> to vector<8x64xf32>
      %58 = arith.extf %1 : vector<8x8x64xbf16> to vector<8x8x64xf32>
      %59 = vector.broadcast %53 : vector<8x8x1xf32> to vector<8x8x64xf32>
      %60 = arith.mulf %59, %58 : vector<8x8x64xf32>
      %cst_32 = arith.constant dense<0.000000e+00> : vector<8x64xf32>
      %61 = vector.multi_reduction <add>, %60, %cst_32 [1] : vector<8x8x64xf32> to vector<8x64xf32>
      %62 = arith.extf %2 : vector<8x8x16xbf16> to vector<8x8x16xf32>
      %63 = vector.broadcast %53 : vector<8x8x1xf32> to vector<8x8x16xf32>
      %64 = arith.mulf %63, %62 : vector<8x8x16xf32>
      %cst_33 = arith.constant dense<0.000000e+00> : vector<8x16xf32>
      %65 = vector.multi_reduction <add>, %64, %cst_33 [1] : vector<8x8x16xf32> to vector<8x16xf32>
      %66 = arith.truncf %57 : vector<8x64xf32> to vector<8x64xbf16>
      %67 = arith.truncf %61 : vector<8x64xf32> to vector<8x64xbf16>
      %68 = arith.truncf %65 : vector<8x16xf32> to vector<8x16xbf16>
      %c0_34 = arith.constant 0 : index
      %c0_35 = arith.constant 0 : index
      %69 = vector.load %arg10[%c0_34, %c0_35] : memref<64x128xbf16, #tpu.memory_space<vmem>>, vector<64x128xbf16>
      %cst_36 = arith.constant dense<0.000000e+00> : vector<8x128xf32>
      %70 = tpu.matmul %66, %69, %cst_36 {dimension_numbers = #tpu.dot_dimension_numbers<[1], [0], [0], [1], [0, 0, 1, 1], [], []>} : vector<8x64xbf16>, vector<64x128xbf16>, vector<8x128xf32> -> vector<8x128xf32>
      %c0_37 = arith.constant 0 : index
      %c0_38 = arith.constant 0 : index
      %71 = vector.load %arg11[%c0_37, %c0_38] : memref<64x128xbf16, #tpu.memory_space<vmem>>, vector<64x128xbf16>
      %cst_39 = arith.constant dense<0.000000e+00> : vector<8x128xf32>
      %72 = tpu.matmul %67, %71, %cst_39 {dimension_numbers = #tpu.dot_dimension_numbers<[1], [0], [0], [1], [0, 0, 1, 1], [], []>} : vector<8x64xbf16>, vector<64x128xbf16>, vector<8x128xf32> -> vector<8x128xf32>
      %73 = arith.addf %70, %72 : vector<8x128xf32>
      %c0_40 = arith.constant 0 : index
      %c0_41 = arith.constant 0 : index
      %74 = vector.load %arg12[%c0_40, %c0_41] : memref<16x128xbf16, #tpu.memory_space<vmem>>, vector<16x128xbf16>
      %cst_42 = arith.constant dense<0.000000e+00> : vector<8x128xf32>
      %75 = tpu.matmul %68, %74, %cst_42 {dimension_numbers = #tpu.dot_dimension_numbers<[1], [0], [0], [1], [0, 0, 1, 1], [], []>} : vector<8x16xbf16>, vector<16x128xbf16>, vector<8x128xf32> -> vector<8x128xf32>
      %76 = arith.addf %73, %75 : vector<8x128xf32>
      %c0_43 = arith.constant 0 : index
      %c0_44 = arith.constant 0 : index
      %77 = vector.load %arg13[%c0_43, %c0_44] : memref<32x128xbf16, #tpu.memory_space<vmem>>, vector<32x128xbf16>
      %cst_45 = arith.constant dense<0.000000e+00> : vector<8x128xf32>
      %78 = tpu.matmul %16, %77, %cst_45 {dimension_numbers = #tpu.dot_dimension_numbers<[1], [0], [0], [1], [0, 0, 1, 1], [], []>} : vector<8x32xbf16>, vector<32x128xbf16>, vector<8x128xf32> -> vector<8x128xf32>
      %79 = arith.addf %76, %78 : vector<8x128xf32>
      %80 = arith.index_cast %arg21 : i32 to index
      %c0_46 = arith.constant 0 : index
      %c0_47 = arith.constant 0 : index
      %81 = vector.load %arg5[%80, %c0_46, %c0_47] : memref<6x8x128xf32, #tpu.memory_space<vmem>>, vector<1x8x128xf32>
      %82 = vector.shape_cast %81 : vector<1x8x128xf32> to vector<8x128xf32>
      %83 = arith.addf %79, %82 : vector<8x128xf32>
      %84 = vector.broadcast %9 : vector<1x128xf32> to vector<8x128xf32>
      %85 = arith.addf %83, %84 : vector<8x128xf32>
      %86 = vector.extract_strided_slice %85 {offsets = [0, 0], sizes = [8, 32], strides = [1, 1]} : vector<8x128xf32> to vector<8x32xf32>
      %cst_48 = arith.constant 5.000000e-01 : f32
      %87 = vector.broadcast %cst_48 : f32 to vector<8x32xf32>
      %88 = arith.mulf %87, %86 : vector<8x32xf32>
      %89 = math.tanh %88 : vector<8x32xf32>
      %cst_49 = arith.constant 1.000000e+00 : f32
      %90 = vector.broadcast %cst_49 : f32 to vector<8x32xf32>
      %91 = arith.addf %89, %90 : vector<8x32xf32>
      %cst_50 = arith.constant 5.000000e-01 : f32
      %92 = vector.broadcast %cst_50 : f32 to vector<8x32xf32>
      %93 = arith.mulf %92, %91 : vector<8x32xf32>
      %94 = vector.extract_strided_slice %85 {offsets = [0, 32], sizes = [8, 32], strides = [1, 1]} : vector<8x128xf32> to vector<8x32xf32>
      %cst_51 = arith.constant 5.000000e-01 : f32
      %95 = vector.broadcast %cst_51 : f32 to vector<8x32xf32>
      %96 = arith.mulf %95, %94 : vector<8x32xf32>
      %97 = math.tanh %96 : vector<8x32xf32>
      %cst_52 = arith.constant 1.000000e+00 : f32
      %98 = vector.broadcast %cst_52 : f32 to vector<8x32xf32>
      %99 = arith.addf %97, %98 : vector<8x32xf32>
      %cst_53 = arith.constant 5.000000e-01 : f32
      %100 = vector.broadcast %cst_53 : f32 to vector<8x32xf32>
      %101 = arith.mulf %100, %99 : vector<8x32xf32>
      %102 = vector.extract_strided_slice %85 {offsets = [0, 64], sizes = [8, 32], strides = [1, 1]} : vector<8x128xf32> to vector<8x32xf32>
      %103 = math.tanh %102 : vector<8x32xf32>
      %104 = vector.extract_strided_slice %85 {offsets = [0, 96], sizes = [8, 32], strides = [1, 1]} : vector<8x128xf32> to vector<8x32xf32>
      %cst_54 = arith.constant 5.000000e-01 : f32
      %105 = vector.broadcast %cst_54 : f32 to vector<8x32xf32>
      %106 = arith.mulf %105, %104 : vector<8x32xf32>
      %107 = math.tanh %106 : vector<8x32xf32>
      %cst_55 = arith.constant 1.000000e+00 : f32
      %108 = vector.broadcast %cst_55 : f32 to vector<8x32xf32>
      %109 = arith.addf %107, %108 : vector<8x32xf32>
      %cst_56 = arith.constant 5.000000e-01 : f32
      %110 = vector.broadcast %cst_56 : f32 to vector<8x32xf32>
      %111 = arith.mulf %110, %109 : vector<8x32xf32>
      %112 = arith.mulf %101, %arg23 : vector<8x32xf32>
      %113 = arith.mulf %93, %103 : vector<8x32xf32>
      %114 = arith.addf %112, %113 : vector<8x32xf32>
      %115 = math.tanh %114 : vector<8x32xf32>
      %116 = arith.mulf %111, %115 : vector<8x32xf32>
      %117 = arith.truncf %116 : vector<8x32xf32> to vector<8x32xbf16>
      %c0_57 = arith.constant 0 : index
      %c0_58 = arith.constant 0 : index
      %118 = vector.load %arg15[%c0_57, %c0_58] : memref<32x32xbf16, #tpu.memory_space<vmem>>, vector<32x32xbf16>
      %cst_59 = arith.constant dense<0.000000e+00> : vector<8x32xf32>
      %119 = tpu.matmul %117, %118, %cst_59 {dimension_numbers = #tpu.dot_dimension_numbers<[1], [0], [0], [1], [0, 0, 1, 1], [], []>} : vector<8x32xbf16>, vector<32x32xbf16>, vector<8x32xf32> -> vector<8x32xf32>
      %c0_60 = arith.constant 0 : index
      %c0_61 = arith.constant 0 : index
      %120 = vector.load %arg16[%c0_60, %c0_61] : memref<64x32xbf16, #tpu.memory_space<vmem>>, vector<64x32xbf16>
      %cst_62 = arith.constant dense<0.000000e+00> : vector<8x32xf32>
      %121 = tpu.matmul %66, %120, %cst_62 {dimension_numbers = #tpu.dot_dimension_numbers<[1], [0], [0], [1], [0, 0, 1, 1], [], []>} : vector<8x64xbf16>, vector<64x32xbf16>, vector<8x32xf32> -> vector<8x32xf32>
      %122 = arith.addf %119, %121 : vector<8x32xf32>
      %c0_63 = arith.constant 0 : index
      %c0_64 = arith.constant 0 : index
      %123 = vector.load %arg17[%c0_63, %c0_64] : memref<64x32xbf16, #tpu.memory_space<vmem>>, vector<64x32xbf16>
      %cst_65 = arith.constant dense<0.000000e+00> : vector<8x32xf32>
      %124 = tpu.matmul %67, %123, %cst_65 {dimension_numbers = #tpu.dot_dimension_numbers<[1], [0], [0], [1], [0, 0, 1, 1], [], []>} : vector<8x64xbf16>, vector<64x32xbf16>, vector<8x32xf32> -> vector<8x32xf32>
      %125 = arith.addf %122, %124 : vector<8x32xf32>
      %c0_66 = arith.constant 0 : index
      %c0_67 = arith.constant 0 : index
      %126 = vector.load %arg18[%c0_66, %c0_67] : memref<16x32xbf16, #tpu.memory_space<vmem>>, vector<16x32xbf16>
      %cst_68 = arith.constant dense<0.000000e+00> : vector<8x32xf32>
      %127 = tpu.matmul %68, %126, %cst_68 {dimension_numbers = #tpu.dot_dimension_numbers<[1], [0], [0], [1], [0, 0, 1, 1], [], []>} : vector<8x16xbf16>, vector<16x32xbf16>, vector<8x32xf32> -> vector<8x32xf32>
      %128 = arith.addf %125, %127 : vector<8x32xf32>
      %129 = arith.index_cast %arg21 : i32 to index
      %c0_69 = arith.constant 0 : index
      %c0_70 = arith.constant 0 : index
      %130 = vector.load %arg6[%129, %c0_69, %c0_70] : memref<6x8x32xf32, #tpu.memory_space<vmem>>, vector<1x8x32xf32>
      %131 = vector.shape_cast %130 : vector<1x8x32xf32> to vector<8x32xf32>
      %132 = arith.addf %128, %131 : vector<8x32xf32>
      %133 = vector.broadcast %10 : vector<1x32xf32> to vector<8x32xf32>
      %134 = arith.addf %132, %133 : vector<8x32xf32>
      %135 = math.tanh %134 : vector<8x32xf32>
      %136 = arith.truncf %135 : vector<8x32xf32> to vector<8x32xbf16>
      %137 = arith.index_cast %arg21 : i32 to index
      %c0_71 = arith.constant 0 : index
      %c0_72 = arith.constant 0 : index
      %138 = vector.load %arg20[%137, %c0_71, %c0_72] : memref<6x8x32xbf16, #tpu.memory_space<vmem>>, vector<1x8x32xbf16>
      %139 = vector.shape_cast %138 : vector<1x8x32xbf16> to vector<8x32xbf16>
      %140 = vector.shape_cast %136 : vector<8x32xbf16> to vector<1x8x32xbf16>
      tpu.vector_store %arg20[%137, %c0_71, %c0_72], %140 {strides = array<i32>} : memref<6x8x32xbf16, #tpu.memory_space<vmem>>, vector<1x8x32xbf16>,
      scf.yield %116, %114 : vector<8x32xf32>, vector<8x32xf32>
    }
    %c6_i32_20 = arith.constant 6 : i32
    return
  }
  func.func @transform_0(%arg0: i32) -> (i32, i32, i32) {
    %c0_i32 = arith.constant 0 : i32
    %c0_i32_0 = arith.constant 0 : i32
    %c0_i32_1 = arith.constant 0 : i32
    return %arg0, %c0_i32, %c0_i32_0 : i32, i32, i32
  }
  func.func @transform_1(%arg0: i32) -> (i32, i32, i32) {
    %c0_i32 = arith.constant 0 : i32
    %c0_i32_0 = arith.constant 0 : i32
    %c0_i32_1 = arith.constant 0 : i32
    return %arg0, %c0_i32, %c0_i32_0 : i32, i32, i32
  }
  func.func @transform_2(%arg0: i32) -> (i32, i32, i32) {
    %c0_i32 = arith.constant 0 : i32
    %c0_i32_0 = arith.constant 0 : i32
    %c0_i32_1 = arith.constant 0 : i32
    return %arg0, %c0_i32, %c0_i32_0 : i32, i32, i32
  }
  func.func @transform_3(%arg0: i32) -> (i32, i32, i32) {
    %c0_i32 = arith.constant 0 : i32
    %c0_i32_0 = arith.constant 0 : i32
    %c0_i32_1 = arith.constant 0 : i32
    return %arg0, %c0_i32, %c0_i32_0 : i32, i32, i32
  }
  func.func @transform_4(%arg0: i32) -> (i32, i32, i32) {
    %c0_i32 = arith.constant 0 : i32
    %c0_i32_0 = arith.constant 0 : i32
    %c0_i32_1 = arith.constant 0 : i32
    return %c0_i32, %arg0, %c0_i32_0 : i32, i32, i32
  }
  func.func @transform_5(%arg0: i32) -> (i32, i32, i32) {
    %c0_i32 = arith.constant 0 : i32
    %c0_i32_0 = arith.constant 0 : i32
    %c0_i32_1 = arith.constant 0 : i32
    return %c0_i32, %arg0, %c0_i32_0 : i32, i32, i32
  }
  func.func @transform_6(%arg0: i32) -> (i32, i32) {
    %c0_i32 = arith.constant 0 : i32
    %c0_i32_0 = arith.constant 0 : i32
    %c0_i32_1 = arith.constant 0 : i32
    return %c0_i32, %c0_i32_0 : i32, i32
  }
  func.func @transform_7(%arg0: i32) -> (i32, i32) {
    %c0_i32 = arith.constant 0 : i32
    %c0_i32_0 = arith.constant 0 : i32
    %c0_i32_1 = arith.constant 0 : i32
    return %c0_i32, %c0_i32_0 : i32, i32
  }
  func.func @transform_8(%arg0: i32) -> (i32, i32) {
    %c0_i32 = arith.constant 0 : i32
    %c0_i32_0 = arith.constant 0 : i32
    %c0_i32_1 = arith.constant 0 : i32
    return %c0_i32, %c0_i32_0 : i32, i32
  }
  func.func @transform_9(%arg0: i32) -> (i32, i32) {
    %c0_i32 = arith.constant 0 : i32
    %c0_i32_0 = arith.constant 0 : i32
    %c0_i32_1 = arith.constant 0 : i32
    return %c0_i32, %c0_i32_0 : i32, i32
  }
  func.func @transform_10(%arg0: i32) -> (i32, i32) {
    %c0_i32 = arith.constant 0 : i32
    %c0_i32_0 = arith.constant 0 : i32
    %c0_i32_1 = arith.constant 0 : i32
    return %c0_i32, %c0_i32_0 : i32, i32
  }
  func.func @transform_11(%arg0: i32) -> (i32, i32) {
    %c0_i32 = arith.constant 0 : i32
    %c0_i32_0 = arith.constant 0 : i32
    %c0_i32_1 = arith.constant 0 : i32
    return %c0_i32, %c0_i32_0 : i32, i32
  }
  func.func @transform_12(%arg0: i32) -> (i32, i32) {
    %c0_i32 = arith.constant 0 : i32
    %c0_i32_0 = arith.constant 0 : i32
    %c0_i32_1 = arith.constant 0 : i32
    return %c0_i32, %c0_i32_0 : i32, i32
  }
  func.func @transform_13(%arg0: i32) -> (i32, i32) {
    %c0_i32 = arith.constant 0 : i32
    %c0_i32_0 = arith.constant 0 : i32
    %c0_i32_1 = arith.constant 0 : i32
    return %c0_i32, %c0_i32_0 : i32, i32
  }
  func.func @transform_14(%arg0: i32) -> (i32, i32) {
    %c0_i32 = arith.constant 0 : i32
    %c0_i32_0 = arith.constant 0 : i32
    %c0_i32_1 = arith.constant 0 : i32
    return %c0_i32, %c0_i32_0 : i32, i32
  }
  func.func @transform_15(%arg0: i32) -> (i32, i32) {
    %c0_i32 = arith.constant 0 : i32
    %c0_i32_0 = arith.constant 0 : i32
    %c0_i32_1 = arith.constant 0 : i32
    return %c0_i32, %c0_i32_0 : i32, i32
  }
  func.func @transform_16(%arg0: i32) -> (i32, i32) {
    %c0_i32 = arith.constant 0 : i32
    %c0_i32_0 = arith.constant 0 : i32
    %c0_i32_1 = arith.constant 0 : i32
    return %c0_i32, %c0_i32_0 : i32, i32
  }
  func.func @transform_17(%arg0: i32) -> (i32, i32) {
    %c0_i32 = arith.constant 0 : i32
    %c0_i32_0 = arith.constant 0 : i32
    %c0_i32_1 = arith.constant 0 : i32
    return %c0_i32, %c0_i32_0 : i32, i32
  }
  func.func @transform_18(%arg0: i32) -> (i32, i32) {
    %c0_i32 = arith.constant 0 : i32
    %c0_i32_0 = arith.constant 0 : i32
    %c0_i32_1 = arith.constant 0 : i32
    return %c0_i32, %c0_i32_0 : i32, i32
  }
  func.func @transform_19(%arg0: i32) -> (i32, i32, i32) {
    %c0_i32 = arith.constant 0 : i32
    %c0_i32_0 = arith.constant 0 : i32
    %c0_i32_1 = arith.constant 0 : i32
    return %c0_i32, %arg0, %c0_i32_0 : i32, i32, i32
  }
}

module attributes {stable_mosaic.version = 11 : i64} {
  func.func @_vocab_logsoftmax_kernel(%arg0: i32, %arg1: memref<48x32xbf16, #tpu.memory_space<vmem>>, %arg2: memref<32x128xbf16, #tpu.memory_space<vmem>>, %arg3: memref<1x128xf32, #tpu.memory_space<vmem>>, %arg4: memref<48x128xf32, #tpu.memory_space<vmem>>) attributes {dimension_semantics = [#tpu.dimension_semantics<parallel>], iteration_bounds = array<i64: 1>, scalar_prefetch = 0 : i64, scratch_operands = 0 : i64, tpu.core_type = #tpu.core_type<tc>, window_params = [{transform_indices = @transform_0, window_bounds = array<i64: 48, 32>}, {pipeline_mode = #tpu.pipeline_mode<synchronous>, transform_indices = @transform_1, window_bounds = array<i64: 32, 128>}, {pipeline_mode = #tpu.pipeline_mode<synchronous>, transform_indices = @transform_2, window_bounds = array<i64: 1, 128>}, {transform_indices = @transform_3, window_bounds = array<i64: 48, 128>}]} {
    %c0 = arith.constant 0 : index
    %c0_0 = arith.constant 0 : index
    %0 = vector.load %arg1[%c0, %c0_0] : memref<48x32xbf16, #tpu.memory_space<vmem>>, vector<48x32xbf16>
    %c0_1 = arith.constant 0 : index
    %c0_2 = arith.constant 0 : index
    %1 = vector.load %arg2[%c0_1, %c0_2] : memref<32x128xbf16, #tpu.memory_space<vmem>>, vector<32x128xbf16>
    %cst = arith.constant dense<0.000000e+00> : vector<48x128xf32>
    %2 = tpu.matmul %0, %1, %cst {dimension_numbers = #tpu.dot_dimension_numbers<[1], [0], [0], [1], [0, 0, 1, 1], [], []>} : vector<48x32xbf16>, vector<32x128xbf16>, vector<48x128xf32> -> vector<48x128xf32>
    %c0_3 = arith.constant 0 : index
    %c0_4 = arith.constant 0 : index
    %3 = vector.load %arg3[%c0_3, %c0_4] : memref<1x128xf32, #tpu.memory_space<vmem>>, vector<1x128xf32>
    %4 = vector.broadcast %3 : vector<1x128xf32> to vector<48x128xf32>
    %5 = arith.addf %2, %4 : vector<48x128xf32>
    %cst_5 = arith.constant dense<0xFF800000> : vector<48xf32>
    %6 = vector.multi_reduction <maximumf>, %5, %cst_5 [1] : vector<48x128xf32> to vector<48xf32>
    %7 = vector.shape_cast %6 : vector<48xf32> to vector<48x1xf32>
    %8 = vector.broadcast %7 : vector<48x1xf32> to vector<48x128xf32>
    %9 = arith.subf %5, %8 : vector<48x128xf32>
    %10 = math.exp %9 : vector<48x128xf32>
    %cst_6 = arith.constant dense<0.000000e+00> : vector<48xf32>
    %11 = vector.multi_reduction <add>, %10, %cst_6 [1] : vector<48x128xf32> to vector<48xf32>
    %12 = vector.shape_cast %11 : vector<48xf32> to vector<48x1xf32>
    %13 = math.log %12 : vector<48x1xf32>
    %14 = vector.broadcast %13 : vector<48x1xf32> to vector<48x128xf32>
    %15 = arith.subf %9, %14 : vector<48x128xf32>
    %c0_7 = arith.constant 0 : index
    %c0_8 = arith.constant 0 : index
    %16 = vector.load %arg4[%c0_7, %c0_8] : memref<48x128xf32, #tpu.memory_space<vmem>>, vector<48x128xf32>
    tpu.vector_store %arg4[%c0_7, %c0_8], %15 {strides = array<i32>} : memref<48x128xf32, #tpu.memory_space<vmem>>, vector<48x128xf32>,
    return
  }
  func.func @transform_0(%arg0: i32) -> (i32, i32) {
    %c0_i32 = arith.constant 0 : i32
    %c0_i32_0 = arith.constant 0 : i32
    return %arg0, %c0_i32 : i32, i32
  }
  func.func @transform_1(%arg0: i32) -> (i32, i32) {
    %c0_i32 = arith.constant 0 : i32
    %c0_i32_0 = arith.constant 0 : i32
    %c0_i32_1 = arith.constant 0 : i32
    return %c0_i32, %c0_i32_0 : i32, i32
  }
  func.func @transform_2(%arg0: i32) -> (i32, i32) {
    %c0_i32 = arith.constant 0 : i32
    %c0_i32_0 = arith.constant 0 : i32
    %c0_i32_1 = arith.constant 0 : i32
    return %c0_i32, %c0_i32_0 : i32, i32
  }
  func.func @transform_3(%arg0: i32) -> (i32, i32) {
    %c0_i32 = arith.constant 0 : i32
    %c0_i32_0 = arith.constant 0 : i32
    return %arg0, %c0_i32 : i32, i32
  }
}

</mosaic_0001>

<llo_original>
// kernel: decoder_forward.5
$region0: #{decoder_forward.5}
  #allocation0 [shape = 'u32[]', space=smem, size = 0x4, offset = 0x4, fixed_abs, tag = 'smem constant byte address 0x4 - core index']
  #allocation1 [shape = 'u32[144,128]{1,0:T(1,128)}', space=vmem, size = 0x12000, scoped, tag = 'internal scratch']
  %s0 = inlined_call_operand.vmem [shape: bf16[48,32], index: 0, kind: input, shape index: {}]
  %s1 = inlined_call_operand.vmem [shape: bf16[32,128], index: 1, kind: input, shape index: {}]
  %s2 = inlined_call_operand.vmem [shape: f32[1,128], index: 2, kind: input, shape index: {}]
  %s3 = inlined_call_operand.vmem [shape: f32[48,128], index: 3, kind: output, shape index: {}]
  %s4 = sld [smem:[#allocation0]]
  $region22: #{decoder_forward.5} parent=0
    _
  %s6 = ssub.s32 1, %s4
  %s7 = scalar_select 0, %s6, %s4
  // Predicated region
  $region2: #{decoder_forward.5} parent=0 // pred_check
    _
  $region3: #{decoder_forward.5} parent=0 // pred_check_branch
    %9 = sbr.rel (0) target = $region5
  $region4: #{decoder_forward.5} parent=0 // pred_region
    _
  $region5: #{decoder_forward.5} parent=0 // pred_fallthru
    _
  // Predicated region
  $region6: #{decoder_forward.5} parent=0 // pred_check
    _
  $region7: #{decoder_forward.5} parent=0 // pred_check_branch
    %11 = sbr.rel (0) target = $region9
  $region8: #{decoder_forward.5} parent=0 // pred_region
    _
  $region9: #{decoder_forward.5} parent=0 // pred_fallthru
    _
  // Predicated region
  $region10: #{decoder_forward.5} parent=0 // pred_check
    _
  $region11: #{decoder_forward.5} parent=0 // pred_check_branch
    %13 = sbr.rel (0) target = $region13
  $region12: #{decoder_forward.5} parent=0 // pred_region
    _
  $region13: #{decoder_forward.5} parent=0 // pred_fallthru
    _
  %v15 = vld [vmem:[%s0] sm:$0xf]
  %v16 = vld [vmem:[%s0 + $0x4] sm:$0xf]
  %v17 = vld [vmem:[%s0 + $0x8] sm:$0xf]
  %v18 = vld [vmem:[%s0 + $0xc] sm:$0xf]
  %v19 = vld [vmem:[%s0 + $0x10] sm:$0xf]
  %v20 = vld [vmem:[%s0 + $0x14] sm:$0xf]
  %v21 = vld [vmem:[%s1] sm:$0xf]
  %v22 = vld [vmem:[%s1 + $0x4] sm:$0xf]
  %v23 = vld [vmem:[%s1 + $0x8] sm:$0xf]
  %v24 = vld [vmem:[%s1 + $0xc] sm:$0xf]
  %v25 = vld [vmem:[%s2] sm:$0x1]
  %v27 = vlaneseq
  %v28 = vshrl.u32 %v27, 7
  %v29 = vsub.s32 0, %v28
  %v30 = vrot.slane %v25, %v29
  %v38 = vunpack.c.l.b16 %v15
  %v39 = vunpack.c.l.b16 %v16
  %v40 = vunpack.c.l.b16 %v17
  %v41 = vunpack.c.l.b16 %v18
  %v42 = vunpack.c.l.b16 %v19
  %v43 = vunpack.c.l.b16 %v20
  %v44 = vpack.c.b16 %v39, %v38
  %v45 = vpack.c.b16 %v41, %v40
  %v46 = vpack.c.b16 %v43, %v42
  %v51 = vunpack.c.l.b16 %v21
  %v52 = vunpack.c.l.b16 %v22
  %v53 = vunpack.c.l.b16 %v23
  %v54 = vunpack.c.l.b16 %v24
  %v55 = vpack.c.b16 %v52, %v51
  %v56 = vpack.c.b16 %v54, %v53
  %vm59 = vcmask 261120
  %v61 = vsel %vm59, %v44, 0
  %v64 = vsel %vm59, %v45, 0
  %v67 = vsel %vm59, %v46, 0
  %69 = vmatprep.subr.bf16.mxu0 0
  %70 = vmatpush1.bf16.msra.mxu0 0
  %71 = vmatprep.subr.bf16.mxu0 0
  %72 = vmatpush1.bf16.msra.mxu0 0
  %73 = vmatprep.subr.bf16.mxu0 0
  %74 = vmatpush1.bf16.msra.mxu0 0
  %75 = vmatprep.subr.bf16.mxu0 0
  %76 = vmatpush1.bf16.msra.mxu0 0
  %77 = vmatprep.subr.bf16.mxu0 0
  %78 = vmatpush1.bf16.msra.mxu0 0
  %79 = vmatprep.subr.bf16.mxu0 0
  %80 = vmatpush1.bf16.msra.mxu0 0
  %81 = vmatprep.subr.bf16.mxu0 0
  %82 = vmatpush1.bf16.msra.mxu0 %v56
  %83 = vmatprep.subr.bf16.mxu0 0
  %84 = vmatpush1.bf16.msra.mxu0 %v55
  %85 = vmatprep.subr.bf16.mxu0 0
  %86 = vmatpush2.bf16.msra.mxu0 0
  %87 = vmatprep.subr.bf16.mxu0 0
  %88 = vmatpush2.bf16.msra.mxu0 0
  %89 = vmatprep.subr.bf16.mxu0 0
  %90 = vmatpush2.bf16.msra.mxu0 0
  %91 = vmatprep.subr.bf16.mxu0 0
  %92 = vmatpush2.bf16.msra.mxu0 0
  %93 = vmatprep.subr.bf16.mxu0 0
  %94 = vmatpush2.bf16.msra.mxu0 0
  %95 = vmatprep.subr.bf16.mxu0 0
  %96 = vmatpush2.bf16.msra.mxu0 0
  %97 = vmatprep.subr.bf16.mxu0 0
  %98 = vmatpush2.bf16.msra.mxu0 0
  %99 = vmatprep.subr.bf16.mxu0 0
  %100 = vmatpush2.bf16.msra.mxu0 0
  %101 = vmatprep.mubr.bf16.mxu0 0
  %102 = vmatmul.mubr.bf16.gmra.mxu0 %v61
  %v103 = vpop.f32.mrf.mxu0
  %v104 = vadd.f32 %v30, %v103
  %v105 = vpop.f32.mrf.mxu0
  %v106 = vpop.f32.mrf.mxu0
  %v107 = vadd.f32 %v30, %v106
  %v108 = vpop.f32.mrf.mxu0
  %109 = vmatprep.mubr.bf16.mxu0 0
  %110 = vmatmul.mubr.bf16.gmra.mxu0 %v64
  %v111 = vpop.f32.mrf.mxu0
  %v112 = vadd.f32 %v30, %v111
  %v113 = vpop.f32.mrf.mxu0
  %v114 = vpop.f32.mrf.mxu0
  %v115 = vadd.f32 %v30, %v114
  %v116 = vpop.f32.mrf.mxu0
  %117 = vmatprep.mubr.bf16.mxu0 0
  %118 = vmatmul.mubr.bf16.gmra.mxu0 %v67
  %v119 = vpop.f32.mrf.mxu0
  %v120 = vadd.f32 %v30, %v119
  %v121 = vpop.f32.mrf.mxu0
  %v122 = vpop.f32.mrf.mxu0
  %v123 = vadd.f32 %v30, %v122
  %v124 = vpop.f32.mrf.mxu0
  %125 = vdwg.mxu0
  %126 = vmax.xlane.f32.xlu0 %v104
  %v127 = vpop.xlane.xlu0 %126
  %128 = vmax.xlane.f32.xlu0 %v107
  %v129 = vpop.xlane.xlu0 %128
  %130 = vmax.xlane.f32.xlu0 %v112
  %v131 = vpop.xlane.xlu0 %130
  %132 = vmax.xlane.f32.xlu0 %v115
  %v133 = vpop.xlane.xlu0 %132
  %134 = vmax.xlane.f32.xlu0 %v120
  %v135 = vpop.xlane.xlu0 %134
  %136 = vmax.xlane.f32.xlu0 %v123
  %v137 = vpop.xlane.xlu0 %136
  %v138 = vsub.f32 %v104, %v127
  %v139 = vsub.f32 %v107, %v129
  %v140 = vsub.f32 %v112, %v131
  %v141 = vsub.f32 %v115, %v133
  %v142 = vsub.f32 %v120, %v135
  %v143 = vsub.f32 %v123, %v137
  %v144 = vmul.f32 %v138, 1.442695
  %v145 = vpow.pop %v144
  %v146 = vmul.f32 %v139, 1.442695
  %v147 = vpow.pop %v146
  %v148 = vmul.f32 %v140, 1.442695
  %v149 = vpow.pop %v148
  %v150 = vmul.f32 %v141, 1.442695
  %v151 = vpow.pop %v150
  %v152 = vmul.f32 %v142, 1.442695
  %v153 = vpow.pop %v152
  %v154 = vmul.f32 %v143, 1.442695
  %v155 = vpow.pop %v154
  %156 = vadd.xlane.f32.xlu0 %v145
  %v157 = vpop.xlane.xlu0 %156
  %158 = vadd.xlane.f32.xlu0 %v147
  %v159 = vpop.xlane.xlu0 %158
  %160 = vadd.xlane.f32.xlu0 %v149
  %v161 = vpop.xlane.xlu0 %160
  %162 = vadd.xlane.f32.xlu0 %v151
  %v163 = vpop.xlane.xlu0 %162
  %164 = vadd.xlane.f32.xlu0 %v153
  %v165 = vpop.xlane.xlu0 %164
  %166 = vadd.xlane.f32.xlu0 %v155
  %v167 = vpop.xlane.xlu0 %166
  %v168 = vlog2.pop %v157
  %v169 = vmul.f32 %v168, 0.6931472
  %v170 = vlog2.pop %v159
  %v171 = vmul.f32 %v170, 0.6931472
  %v172 = vlog2.pop %v161
  %v173 = vmul.f32 %v172, 0.6931472
  %v174 = vlog2.pop %v163
  %v175 = vmul.f32 %v174, 0.6931472
  %v176 = vlog2.pop %v165
  %v177 = vmul.f32 %v176, 0.6931472
  %v178 = vlog2.pop %v167
  %v179 = vmul.f32 %v178, 0.6931472
  %v180 = vsub.f32 %v138, %v169
  %v181 = vsub.f32 %v139, %v171
  %v182 = vsub.f32 %v140, %v173
  %v183 = vsub.f32 %v141, %v175
  %v184 = vsub.f32 %v142, %v177
  %v185 = vsub.f32 %v143, %v179
  %186 = vst [vmem:[%s3] sm:$0xff] %v180
  %187 = vst [vmem:[%s3 + $0x8] sm:$0xff] %v181
  %188 = vst [vmem:[%s3 + $0x10] sm:$0xff] %v182
  %189 = vst [vmem:[%s3 + $0x18] sm:$0xff] %v183
  %190 = vst [vmem:[%s3 + $0x20] sm:$0xff] %v184
  %191 = vst [vmem:[%s3 + $0x28] sm:$0xff] %v185
  // Predicated region
  $region14: #{decoder_forward.5} parent=0 // pred_check
    _
  $region15: #{decoder_forward.5} parent=0 // pred_check_branch
    %193 = sbr.rel (0) target = $region17
  $region16: #{decoder_forward.5} parent=0 // pred_region
    _
  $region17: #{decoder_forward.5} parent=0 // pred_fallthru
    _
  // Predicated region
  $region18: #{decoder_forward.5} parent=0 // pred_check
    _
  $region19: #{decoder_forward.5} parent=0 // pred_check_branch
    %195 = sbr.rel (0) target = $region21
  $region20: #{decoder_forward.5} parent=0 // pred_region
    _
  $region21: #{decoder_forward.5} parent=0 // pred_fallthru
    _

// kernel: decoder_forward.3
$region0: #{decoder_forward.3}
  #allocation0 [shape = 'u32[]', space=smem, size = 0x4, offset = 0x4, fixed_abs, tag = 'smem constant byte address 0x4 - core index']
  #allocation1 [shape = 'u32[144,128]{1,0:T(1,128)}', space=vmem, size = 0x12000, scoped, tag = 'internal scratch']
  %s0 = inlined_call_operand.vmem [shape: bf16[8,4,64], index: 0, kind: input, shape index: {}]
  %s1 = inlined_call_operand.vmem [shape: bf16[8,4,64], index: 1, kind: input, shape index: {}]
  %s2 = inlined_call_operand.vmem [shape: bf16[8,12,64], index: 2, kind: input, shape index: {}]
  %s3 = inlined_call_operand.vmem [shape: bf16[8,8,16], index: 3, kind: input, shape index: {}]
  %s4 = inlined_call_operand.vmem [shape: bf16[64,64], index: 4, kind: input, shape index: {}]
  %s5 = inlined_call_operand.vmem [shape: bf16[64,64], index: 5, kind: input, shape index: {}]
  %s6 = inlined_call_operand.vmem [shape: f32[1,64], index: 6, kind: input, shape index: {}]
  %s7 = inlined_call_operand.vmem [shape: bf16[16,32], index: 7, kind: input, shape index: {}]
  %s8 = inlined_call_operand.vmem [shape: bf16[64,32], index: 8, kind: input, shape index: {}]
  %s9 = inlined_call_operand.vmem [shape: f32[1,32], index: 9, kind: input, shape index: {}]
  %s10 = inlined_call_operand.vmem [shape: f32[1,32], index: 10, kind: input, shape index: {}]
  %s11 = inlined_call_operand.vmem [shape: bf16[64,32], index: 11, kind: input, shape index: {}]
  %s12 = inlined_call_operand.vmem [shape: bf16[64,32], index: 12, kind: input, shape index: {}]
  %s13 = inlined_call_operand.vmem [shape: bf16[16,32], index: 13, kind: input, shape index: {}]
  %s14 = inlined_call_operand.vmem [shape: bf16[8,8,64], index: 14, kind: output, shape index: {0}]
  %s15 = inlined_call_operand.vmem [shape: bf16[8,8,64], index: 15, kind: output, shape index: {1}]
  %s16 = inlined_call_operand.vmem [shape: bf16[8,8,32], index: 16, kind: output, shape index: {2}]
  %17 = xla_tuple %s14, %s15, %s16
  %s18 = sld [smem:[#allocation0]]
  $region105: #{decoder_forward.3} parent=0
    _
  %s20 = ssub.s32 1, %s18
  %s21 = scalar_select 0, %s20, %s18
  loop: start=0, step=1, limit=10
  $region2: #{decoder_forward.3} parent=0 // loop_pre_header
    _
  $region3: #{decoder_forward.3} parent=0 // loop_header
    %s23 = sphi 0, %s27
    %p24 = scmp.ge.s32.totalorder %s23, 10
    %s33 = sphi 0, %s35
    %s36 = sphi 0, %s33
    %s37 = sphi 0, %s36
    %s53 = sphi 0, %s37
    %s59 = sphi 0, %s61
    %s62 = sphi 0, %s59
    %s63 = sphi 0, %s62
    %s79 = sphi 0, %s63
    %s85 = sphi 0, %s87
    %s88 = sphi 0, %s85
    %s89 = sphi 0, %s88
    %s105 = sphi 0, %s89
    %s111 = sphi 0, %s113
    %s114 = sphi 0, %s111
    %s115 = sphi 0, %s114
    %s131 = sphi 0, %s115
    %s135 = sphi 0, %s135
    %s137 = sphi 0, %s135
    %s138 = sphi 0, %s137
    %s152 = sphi 0, %s138
    %s156 = sphi 0, %s156
    %s158 = sphi 0, %s156
    %s159 = sphi 0, %s158
    %s173 = sphi 0, %s159
    %s177 = sphi 0, %s177
    %s179 = sphi 0, %s177
    %s180 = sphi 0, %s179
    %s194 = sphi 0, %s180
    %s198 = sphi 0, %s198
    %s200 = sphi 0, %s198
    %s201 = sphi 0, %s200
    %s215 = sphi 0, %s201
    %s219 = sphi 0, %s219
    %s221 = sphi 0, %s219
    %s222 = sphi 0, %s221
    %s236 = sphi 0, %s222
    %s240 = sphi 0, %s240
    %s242 = sphi 0, %s240
    %s243 = sphi 0, %s242
    %s257 = sphi 0, %s243
    %s261 = sphi 0, %s261
    %s263 = sphi 0, %s261
    %s264 = sphi 0, %s263
    %s278 = sphi 0, %s264
    %s282 = sphi 0, %s282
    %s284 = sphi 0, %s282
    %s285 = sphi 0, %s284
    %s299 = sphi 0, %s285
    %s303 = sphi 0, %s303
    %s305 = sphi 0, %s303
    %s306 = sphi 0, %s305
    %s320 = sphi 0, %s306
    %s324 = sphi 0, %s324
    %s326 = sphi 0, %s324
    %s327 = sphi 0, %s326
    %s341 = sphi 0, %s327
    %s347 = sphi 0, %s349
    %s350 = sphi 0, %s347
    %s351 = sphi 0, %s350
    %s367 = sphi 0, %s351
    %s373 = sphi 0, %s375
    %s376 = sphi 0, %s373
    %s377 = sphi 0, %s376
    %s393 = sphi 0, %s377
    %s399 = sphi 0, %s401
    %s402 = sphi 0, %s399
    %s403 = sphi 0, %s402
    %s419 = sphi 0, %s403
  $region4: #{decoder_forward.3} parent=0 // loop_header_branch
    %26 = sbr.rel (%p24) target = $region8
  $region5: #{decoder_forward.3} parent=0 // loop_body
    %s28 = ssub.s32 %s23, 1
    %s29 = ssub.s32 %s23, 2
    %s30 = sadd.s32 %s23, 1
    %s31 = ssub.s32 %s23, %s30
    %p32 = scmp.eq.s32.totalorder %s31, 0
    %s34 = sadd.s32 %s33, 1
    %s35 = scalar_select %p32, %s33, %s34
    %p38 = pneg %p32
    %p39 = scmp.eq.s32.totalorder %s23, 7
    %p40 = por %p38, %p39
    %p41 = scmp.ne.s32.totalorder %s33, %s36
    %p42 = scmp.eq.s32.totalorder %s23, 0
    %p43 = por %p41, %p42
    %p44 = scmp.ne.s32.totalorder %s33, %s36
    %p45 = scmp.eq.s32.totalorder %s28, 7
    %p46 = por %p44, %p45
    %p47 = scmp.ne.s32.totalorder %s36, %s37
    %p48 = scmp.eq.s32.totalorder %s28, 0
    %p49 = por %p47, %p48
    %p50 = scmp.ne.s32.totalorder %s36, %s37
    %p51 = scmp.eq.s32.totalorder %s29, 7
    %p52 = por %p50, %p51
    %p54 = scmp.ne.s32.totalorder %s37, %s53
    %p55 = scmp.eq.s32.totalorder %s29, 0
    %p56 = por %p54, %p55
    %s57 = ssub.s32 %s23, %s30
    %p58 = scmp.eq.s32.totalorder %s57, 0
    %s60 = sadd.s32 %s59, 1
    %s61 = scalar_select %p58, %s59, %s60
    %p64 = pneg %p58
    %p65 = scmp.eq.s32.totalorder %s23, 7
    %p66 = por %p64, %p65
    %p67 = scmp.ne.s32.totalorder %s59, %s62
    %p68 = scmp.eq.s32.totalorder %s23, 0
    %p69 = por %p67, %p68
    %p70 = scmp.ne.s32.totalorder %s59, %s62
    %p71 = scmp.eq.s32.totalorder %s28, 7
    %p72 = por %p70, %p71
    %p73 = scmp.ne.s32.totalorder %s62, %s63
    %p74 = scmp.eq.s32.totalorder %s28, 0
    %p75 = por %p73, %p74
    %p76 = scmp.ne.s32.totalorder %s62, %s63
    %p77 = scmp.eq.s32.totalorder %s29, 7
    %p78 = por %p76, %p77
    %p80 = scmp.ne.s32.totalorder %s63, %s79
    %p81 = scmp.eq.s32.totalorder %s29, 0
    %p82 = por %p80, %p81
    %s83 = ssub.s32 %s23, %s30
    %p84 = scmp.eq.s32.totalorder %s83, 0
    %s86 = sadd.s32 %s85, 1
    %s87 = scalar_select %p84, %s85, %s86
    %p90 = pneg %p84
    %p91 = scmp.eq.s32.totalorder %s23, 7
    %p92 = por %p90, %p91
    %p93 = scmp.ne.s32.totalorder %s85, %s88
    %p94 = scmp.eq.s32.totalorder %s23, 0
    %p95 = por %p93, %p94
    %p96 = scmp.ne.s32.totalorder %s85, %s88
    %p97 = scmp.eq.s32.totalorder %s28, 7
    %p98 = por %p96, %p97
    %p99 = scmp.ne.s32.totalorder %s88, %s89
    %p100 = scmp.eq.s32.totalorder %s28, 0
    %p101 = por %p99, %p100
    %p102 = scmp.ne.s32.totalorder %s88, %s89
    %p103 = scmp.eq.s32.totalorder %s29, 7
    %p104 = por %p102, %p103
    %p106 = scmp.ne.s32.totalorder %s89, %s105
    %p107 = scmp.eq.s32.totalorder %s29, 0
    %p108 = por %p106, %p107
    %s109 = ssub.s32 %s23, %s30
    %p110 = scmp.eq.s32.totalorder %s109, 0
    %s112 = sadd.s32 %s111, 1
    %s113 = scalar_select %p110, %s111, %s112
    %p116 = pneg %p110
    %p117 = scmp.eq.s32.totalorder %s23, 7
    %p118 = por %p116, %p117
    %p119 = scmp.ne.s32.totalorder %s111, %s114
    %p120 = scmp.eq.s32.totalorder %s23, 0
    %p121 = por %p119, %p120
    %p122 = scmp.ne.s32.totalorder %s111, %s114
    %p123 = scmp.eq.s32.totalorder %s28, 7
    %p124 = por %p122, %p123
    %p125 = scmp.ne.s32.totalorder %s114, %s115
    %p126 = scmp.eq.s32.totalorder %s28, 0
    %p127 = por %p125, %p126
    %p128 = scmp.ne.s32.totalorder %s114, %s115
    %p129 = scmp.eq.s32.totalorder %s29, 7
    %p130 = por %p128, %p129
    %p132 = scmp.ne.s32.totalorder %s115, %s131
    %p133 = scmp.eq.s32.totalorder %s29, 0
    %p134 = por %p132, %p133
    %s136 = sadd.s32 %s135, 1
    %p139 = scmp.eq.s32.totalorder %s23, 7
    %p140 = scmp.ne.s32.totalorder %s135, %s137
    %p141 = scmp.eq.s32.totalorder %s23, 0
    %p142 = por %p140, %p141
    %p143 = scmp.ne.s32.totalorder %s135, %s137
    %p144 = scmp.eq.s32.totalorder %s28, 7
    %p145 = por %p143, %p144
    %p146 = scmp.ne.s32.totalorder %s137, %s138
    %p147 = scmp.eq.s32.totalorder %s28, 0
    %p148 = por %p146, %p147
    %p149 = scmp.ne.s32.totalorder %s137, %s138
    %p150 = scmp.eq.s32.totalorder %s29, 7
    %p151 = por %p149, %p150
    %p153 = scmp.ne.s32.totalorder %s138, %s152
    %p154 = scmp.eq.s32.totalorder %s29, 0
    %p155 = por %p153, %p154
    %s157 = sadd.s32 %s156, 1
    %p160 = scmp.eq.s32.totalorder %s23, 7
    %p161 = scmp.ne.s32.totalorder %s156, %s158
    %p162 = scmp.eq.s32.totalorder %s23, 0
    %p163 = por %p161, %p162
    %p164 = scmp.ne.s32.totalorder %s156, %s158
    %p165 = scmp.eq.s32.totalorder %s28, 7
    %p166 = por %p164, %p165
    %p167 = scmp.ne.s32.totalorder %s158, %s159
    %p168 = scmp.eq.s32.totalorder %s28, 0
    %p169 = por %p167, %p168
    %p170 = scmp.ne.s32.totalorder %s158, %s159
    %p171 = scmp.eq.s32.totalorder %s29, 7
    %p172 = por %p170, %p171
    %p174 = scmp.ne.s32.totalorder %s159, %s173
    %p175 = scmp.eq.s32.totalorder %s29, 0
    %p176 = por %p174, %p175
    %s178 = sadd.s32 %s177, 1
    %p181 = scmp.eq.s32.totalorder %s23, 7
    %p182 = scmp.ne.s32.totalorder %s177, %s179
    %p183 = scmp.eq.s32.totalorder %s23, 0
    %p184 = por %p182, %p183
    %p185 = scmp.ne.s32.totalorder %s177, %s179
    %p186 = scmp.eq.s32.totalorder %s28, 7
    %p187 = por %p185, %p186
    %p188 = scmp.ne.s32.totalorder %s179, %s180
    %p189 = scmp.eq.s32.totalorder %s28, 0
    %p190 = por %p188, %p189
    %p191 = scmp.ne.s32.totalorder %s179, %s180
    %p192 = scmp.eq.s32.totalorder %s29, 7
    %p193 = por %p191, %p192
    %p195 = scmp.ne.s32.totalorder %s180, %s194
    %p196 = scmp.eq.s32.totalorder %s29, 0
    %p197 = por %p195, %p196
    %s199 = sadd.s32 %s198, 1
    %p202 = scmp.eq.s32.totalorder %s23, 7
    %p203 = scmp.ne.s32.totalorder %s198, %s200
    %p204 = scmp.eq.s32.totalorder %s23, 0
    %p205 = por %p203, %p204
    %p206 = scmp.ne.s32.totalorder %s198, %s200
    %p207 = scmp.eq.s32.totalorder %s28, 7
    %p208 = por %p206, %p207
    %p209 = scmp.ne.s32.totalorder %s200, %s201
    %p210 = scmp.eq.s32.totalorder %s28, 0
    %p211 = por %p209, %p210
    %p212 = scmp.ne.s32.totalorder %s200, %s201
    %p213 = scmp.eq.s32.totalorder %s29, 7
    %p214 = por %p212, %p213
    %p216 = scmp.ne.s32.totalorder %s201, %s215
    %p217 = scmp.eq.s32.totalorder %s29, 0
    %p218 = por %p216, %p217
    %s220 = sadd.s32 %s219, 1
    %p223 = scmp.eq.s32.totalorder %s23, 7
    %p224 = scmp.ne.s32.totalorder %s219, %s221
    %p225 = scmp.eq.s32.totalorder %s23, 0
    %p226 = por %p224, %p225
    %p227 = scmp.ne.s32.totalorder %s219, %s221
    %p228 = scmp.eq.s32.totalorder %s28, 7
    %p229 = por %p227, %p228
    %p230 = scmp.ne.s32.totalorder %s221, %s222
    %p231 = scmp.eq.s32.totalorder %s28, 0
    %p232 = por %p230, %p231
    %p233 = scmp.ne.s32.totalorder %s221, %s222
    %p234 = scmp.eq.s32.totalorder %s29, 7
    %p235 = por %p233, %p234
    %p237 = scmp.ne.s32.totalorder %s222, %s236
    %p238 = scmp.eq.s32.totalorder %s29, 0
    %p239 = por %p237, %p238
    %s241 = sadd.s32 %s240, 1
    %p244 = scmp.eq.s32.totalorder %s23, 7
    %p245 = scmp.ne.s32.totalorder %s240, %s242
    %p246 = scmp.eq.s32.totalorder %s23, 0
    %p247 = por %p245, %p246
    %p248 = scmp.ne.s32.totalorder %s240, %s242
    %p249 = scmp.eq.s32.totalorder %s28, 7
    %p250 = por %p248, %p249
    %p251 = scmp.ne.s32.totalorder %s242, %s243
    %p252 = scmp.eq.s32.totalorder %s28, 0
    %p253 = por %p251, %p252
    %p254 = scmp.ne.s32.totalorder %s242, %s243
    %p255 = scmp.eq.s32.totalorder %s29, 7
    %p256 = por %p254, %p255
    %p258 = scmp.ne.s32.totalorder %s243, %s257
    %p259 = scmp.eq.s32.totalorder %s29, 0
    %p260 = por %p258, %p259
    %s262 = sadd.s32 %s261, 1
    %p265 = scmp.eq.s32.totalorder %s23, 7
    %p266 = scmp.ne.s32.totalorder %s261, %s263
    %p267 = scmp.eq.s32.totalorder %s23, 0
    %p268 = por %p266, %p267
    %p269 = scmp.ne.s32.totalorder %s261, %s263
    %p270 = scmp.eq.s32.totalorder %s28, 7
    %p271 = por %p269, %p270
    %p272 = scmp.ne.s32.totalorder %s263, %s264
    %p273 = scmp.eq.s32.totalorder %s28, 0
    %p274 = por %p272, %p273
    %p275 = scmp.ne.s32.totalorder %s263, %s264
    %p276 = scmp.eq.s32.totalorder %s29, 7
    %p277 = por %p275, %p276
    %p279 = scmp.ne.s32.totalorder %s264, %s278
    %p280 = scmp.eq.s32.totalorder %s29, 0
    %p281 = por %p279, %p280
    %s283 = sadd.s32 %s282, 1
    %p286 = scmp.eq.s32.totalorder %s23, 7
    %p287 = scmp.ne.s32.totalorder %s282, %s284
    %p288 = scmp.eq.s32.totalorder %s23, 0
    %p289 = por %p287, %p288
    %p290 = scmp.ne.s32.totalorder %s282, %s284
    %p291 = scmp.eq.s32.totalorder %s28, 7
    %p292 = por %p290, %p291
    %p293 = scmp.ne.s32.totalorder %s284, %s285
    %p294 = scmp.eq.s32.totalorder %s28, 0
    %p295 = por %p293, %p294
    %p296 = scmp.ne.s32.totalorder %s284, %s285
    %p297 = scmp.eq.s32.totalorder %s29, 7
    %p298 = por %p296, %p297
    %p300 = scmp.ne.s32.totalorder %s285, %s299
    %p301 = scmp.eq.s32.totalorder %s29, 0
    %p302 = por %p300, %p301
    %s304 = sadd.s32 %s303, 1
    %p307 = scmp.eq.s32.totalorder %s23, 7
    %p308 = scmp.ne.s32.totalorder %s303, %s305
    %p309 = scmp.eq.s32.totalorder %s23, 0
    %p310 = por %p308, %p309
    %p311 = scmp.ne.s32.totalorder %s303, %s305
    %p312 = scmp.eq.s32.totalorder %s28, 7
    %p313 = por %p311, %p312
    %p314 = scmp.ne.s32.totalorder %s305, %s306
    %p315 = scmp.eq.s32.totalorder %s28, 0
    %p316 = por %p314, %p315
    %p317 = scmp.ne.s32.totalorder %s305, %s306
    %p318 = scmp.eq.s32.totalorder %s29, 7
    %p319 = por %p317, %p318
    %p321 = scmp.ne.s32.totalorder %s306, %s320
    %p322 = scmp.eq.s32.totalorder %s29, 0
    %p323 = por %p321, %p322
    %s325 = sadd.s32 %s324, 1
    %p328 = scmp.eq.s32.totalorder %s23, 7
    %p329 = scmp.ne.s32.totalorder %s324, %s326
    %p330 = scmp.eq.s32.totalorder %s23, 0
    %p331 = por %p329, %p330
    %p332 = scmp.ne.s32.totalorder %s324, %s326
    %p333 = scmp.eq.s32.totalorder %s28, 7
    %p334 = por %p332, %p333
    %p335 = scmp.ne.s32.totalorder %s326, %s327
    %p336 = scmp.eq.s32.totalorder %s28, 0
    %p337 = por %p335, %p336
    %p338 = scmp.ne.s32.totalorder %s326, %s327
    %p339 = scmp.eq.s32.totalorder %s29, 7
    %p340 = por %p338, %p339
    %p342 = scmp.ne.s32.totalorder %s327, %s341
    %p343 = scmp.eq.s32.totalorder %s29, 0
    %p344 = por %p342, %p343
    %s345 = ssub.s32 %s23, %s30
    %p346 = scmp.eq.s32.totalorder %s345, 0
    %s348 = sadd.s32 %s347, 1
    %s349 = scalar_select %p346, %s347, %s348
    %p352 = pneg %p346
    %p353 = scmp.eq.s32.totalorder %s23, 7
    %p354 = por %p352, %p353
    %p355 = scmp.ne.s32.totalorder %s347, %s350
    %p356 = scmp.eq.s32.totalorder %s23, 0
    %p357 = por %p355, %p356
    %p358 = scmp.ne.s32.totalorder %s347, %s350
    %p359 = scmp.eq.s32.totalorder %s28, 7
    %p360 = por %p358, %p359
    %p361 = scmp.ne.s32.totalorder %s350, %s351
    %p362 = scmp.eq.s32.totalorder %s28, 0
    %p363 = por %p361, %p362
    %p364 = scmp.ne.s32.totalorder %s350, %s351
    %p365 = scmp.eq.s32.totalorder %s29, 7
    %p366 = por %p364, %p365
    %p368 = scmp.ne.s32.totalorder %s351, %s367
    %p369 = scmp.eq.s32.totalorder %s29, 0
    %p370 = por %p368, %p369
    %s371 = ssub.s32 %s23, %s30
    %p372 = scmp.eq.s32.totalorder %s371, 0
    %s374 = sadd.s32 %s373, 1
    %s375 = scalar_select %p372, %s373, %s374
    %p378 = pneg %p372
    %p379 = scmp.eq.s32.totalorder %s23, 7
    %p380 = por %p378, %p379
    %p381 = scmp.ne.s32.totalorder %s373, %s376
    %p382 = scmp.eq.s32.totalorder %s23, 0
    %p383 = por %p381, %p382
    %p384 = scmp.ne.s32.totalorder %s373, %s376
    %p385 = scmp.eq.s32.totalorder %s28, 7
    %p386 = por %p384, %p385
    %p387 = scmp.ne.s32.totalorder %s376, %s377
    %p388 = scmp.eq.s32.totalorder %s28, 0
    %p389 = por %p387, %p388
    %p390 = scmp.ne.s32.totalorder %s376, %s377
    %p391 = scmp.eq.s32.totalorder %s29, 7
    %p392 = por %p390, %p391
    %p394 = scmp.ne.s32.totalorder %s377, %s393
    %p395 = scmp.eq.s32.totalorder %s29, 0
    %p396 = por %p394, %p395
    %s397 = ssub.s32 %s23, %s30
    %p398 = scmp.eq.s32.totalorder %s397, 0
    %s400 = sadd.s32 %s399, 1
    %s401 = scalar_select %p398, %s399, %s400
    %p404 = pneg %p398
    %p405 = scmp.eq.s32.totalorder %s23, 7
    %p406 = por %p404, %p405
    %p407 = scmp.ne.s32.totalorder %s399, %s402
    %p408 = scmp.eq.s32.totalorder %s23, 0
    %p409 = por %p407, %p408
    %p410 = scmp.ne.s32.totalorder %s399, %s402
    %p411 = scmp.eq.s32.totalorder %s28, 7
    %p412 = por %p410, %p411
    %p413 = scmp.ne.s32.totalorder %s402, %s403
    %p414 = scmp.eq.s32.totalorder %s28, 0
    %p415 = por %p413, %p414
    %p416 = scmp.ne.s32.totalorder %s402, %s403
    %p417 = scmp.eq.s32.totalorder %s29, 7
    %p418 = por %p416, %p417
    %p420 = scmp.ne.s32.totalorder %s403, %s419
    %p421 = scmp.eq.s32.totalorder %s29, 0
    %p422 = por %p420, %p421
    %p423 = scmp.le.s32.totalorder 1, %s23
    %p424 = scmp.lt.s32.totalorder %s23, 9
    %p425 = pnand %p423, %p424
    %p426 = pneg %p425
    // Predicated region
    $region9: #{decoder_forward.3} parent=5 // pred_check
      _
    $region10: #{decoder_forward.3} parent=5 // pred_check_branch
      %428 = sbr.rel (%p425) target = $region12
    $region11: #{decoder_forward.3} parent=5 // pred_region
      %s429 = ssub.s32 %s23, 1
      // Predicated region
      $region13: #{decoder_forward.3} parent=11 // pred_check
        %p430 = pneg %p148
      $region14: #{decoder_forward.3} parent=11 // pred_check_branch
        %432 = sbr.rel (%p430) target = $region16
      $region15: #{decoder_forward.3} parent=11 // pred_region
        _
      $region16: #{decoder_forward.3} parent=11 // pred_fallthru
        _
      // Predicated region
      $region17: #{decoder_forward.3} parent=11 // pred_check
        %p433 = pneg %p169
      $region18: #{decoder_forward.3} parent=11 // pred_check_branch
        %435 = sbr.rel (%p433) target = $region20
      $region19: #{decoder_forward.3} parent=11 // pred_region
        _
      $region20: #{decoder_forward.3} parent=11 // pred_fallthru
        _
      // Predicated region
      $region21: #{decoder_forward.3} parent=11 // pred_check
        %p436 = pneg %p190
      $region22: #{decoder_forward.3} parent=11 // pred_check_branch
        %438 = sbr.rel (%p436) target = $region24
      $region23: #{decoder_forward.3} parent=11 // pred_region
        _
      $region24: #{decoder_forward.3} parent=11 // pred_fallthru
        _
      // Predicated region
      $region25: #{decoder_forward.3} parent=11 // pred_check
        %p439 = pneg %p211
      $region26: #{decoder_forward.3} parent=11 // pred_check_branch
        %441 = sbr.rel (%p439) target = $region28
      $region27: #{decoder_forward.3} parent=11 // pred_region
        _
      $region28: #{decoder_forward.3} parent=11 // pred_fallthru
        _
      // Predicated region
      $region29: #{decoder_forward.3} parent=11 // pred_check
        %p442 = pneg %p232
      $region30: #{decoder_forward.3} parent=11 // pred_check_branch
        %444 = sbr.rel (%p442) target = $region32
      $region31: #{decoder_forward.3} parent=11 // pred_region
        _
      $region32: #{decoder_forward.3} parent=11 // pred_fallthru
        _
      // Predicated region
      $region33: #{decoder_forward.3} parent=11 // pred_check
        %p445 = pneg %p253
      $region34: #{decoder_forward.3} parent=11 // pred_check_branch
        %447 = sbr.rel (%p445) target = $region36
      $region35: #{decoder_forward.3} parent=11 // pred_region
        _
      $region36: #{decoder_forward.3} parent=11 // pred_fallthru
        _
      // Predicated region
      $region37: #{decoder_forward.3} parent=11 // pred_check
        %p448 = pneg %p274
      $region38: #{decoder_forward.3} parent=11 // pred_check_branch
        %450 = sbr.rel (%p448) target = $region40
      $region39: #{decoder_forward.3} parent=11 // pred_region
        _
      $region40: #{decoder_forward.3} parent=11 // pred_fallthru
        _
      // Predicated region
      $region41: #{decoder_forward.3} parent=11 // pred_check
        %p451 = pneg %p295
      $region42: #{decoder_forward.3} parent=11 // pred_check_branch
        %453 = sbr.rel (%p451) target = $region44
      $region43: #{decoder_forward.3} parent=11 // pred_region
        _
      $region44: #{decoder_forward.3} parent=11 // pred_fallthru
        _
      // Predicated region
      $region45: #{decoder_forward.3} parent=11 // pred_check
        %p454 = pneg %p316
      $region46: #{decoder_forward.3} parent=11 // pred_check_branch
        %456 = sbr.rel (%p454) target = $region48
      $region47: #{decoder_forward.3} parent=11 // pred_region
        _
      $region48: #{decoder_forward.3} parent=11 // pred_fallthru
        _
      // Predicated region
      $region49: #{decoder_forward.3} parent=11 // pred_check
        %p457 = pneg %p337
      $region50: #{decoder_forward.3} parent=11 // pred_check_branch
        %459 = sbr.rel (%p457) target = $region52
      $region51: #{decoder_forward.3} parent=11 // pred_region
        _
      $region52: #{decoder_forward.3} parent=11 // pred_fallthru
        _
    $region12: #{decoder_forward.3} parent=5 // pred_fallthru
      _
    %p460 = scmp.lt.s32.totalorder %s23, 8
    // Predicated region
    $region53: #{decoder_forward.3} parent=5 // pred_check
      %p461 = pneg %p460
    $region54: #{decoder_forward.3} parent=5 // pred_check_branch
      %463 = sbr.rel (%p461) target = $region56
    $region55: #{decoder_forward.3} parent=5 // pred_region
      // Predicated region
      $region57: #{decoder_forward.3} parent=55 // pred_check
        %p464 = pneg %p43
      $region58: #{decoder_forward.3} parent=55 // pred_check_branch
        %466 = sbr.rel (%p464) target = $region60
      $region59: #{decoder_forward.3} parent=55 // pred_region
        %p467 = scmp.lt.s32.totalorder %s23, 7
        %s468 = scalar_select %p467, %s23, 7
        %s469 = smul.addr %s468, 2
        %s470 = scalar_lea.vmem %s0, %s469
      $region60: #{decoder_forward.3} parent=55 // pred_fallthru
        _
      // Predicated region
      $region61: #{decoder_forward.3} parent=55 // pred_check
        %p471 = pneg %p69
      $region62: #{decoder_forward.3} parent=55 // pred_check_branch
        %473 = sbr.rel (%p471) target = $region64
      $region63: #{decoder_forward.3} parent=55 // pred_region
        %p474 = scmp.lt.s32.totalorder %s23, 7
        %s475 = scalar_select %p474, %s23, 7
        %s476 = smul.addr %s475, 2
        %s477 = scalar_lea.vmem %s1, %s476
      $region64: #{decoder_forward.3} parent=55 // pred_fallthru
        _
      // Predicated region
      $region65: #{decoder_forward.3} parent=55 // pred_check
        %p478 = pneg %p95
      $region66: #{decoder_forward.3} parent=55 // pred_check_branch
        %480 = sbr.rel (%p478) target = $region68
      $region67: #{decoder_forward.3} parent=55 // pred_region
        %p481 = scmp.lt.s32.totalorder %s23, 7
        %s482 = scalar_select %p481, %s23, 7
        %s483 = smul.addr %s482, 2
        %s484 = smul.addr %s483, 4
        %s485 = scalar_lea.vmem %s2, %s484
      $region68: #{decoder_forward.3} parent=55 // pred_fallthru
        _
      // Predicated region
      $region69: #{decoder_forward.3} parent=55 // pred_check
        %p486 = pneg %p121
      $region70: #{decoder_forward.3} parent=55 // pred_check_branch
        %488 = sbr.rel (%p486) target = $region72
      $region71: #{decoder_forward.3} parent=55 // pred_region
        %p489 = scmp.lt.s32.totalorder %s23, 7
        %s490 = scalar_select %p489, %s23, 7
        %s491 = smul.addr %s490, 4
        %s492 = scalar_lea.vmem %s3, %s491
      $region72: #{decoder_forward.3} parent=55 // pred_fallthru
        _
    $region56: #{decoder_forward.3} parent=5 // pred_fallthru
      _
    %p493 = scmp.le.s32.totalorder 1, %s23
    %p494 = scmp.lt.s32.totalorder %s23, 9
    %p495 = pnand %p493, %p494
    %p496 = pneg %p495
    // Predicated region
    $region73: #{decoder_forward.3} parent=5 // pred_check
      _
    $region74: #{decoder_forward.3} parent=5 // pred_check_branch
      %498 = sbr.rel (%p495) target = $region76
    $region75: #{decoder_forward.3} parent=5 // pred_region
      %s499 = ssub.s32 %s23, 1
      %p500 = scmp.lt.s32.totalorder %s28, 7
      %s501 = scalar_select %p500, %s28, 7
      %s502 = smul.addr %s501, 2
      %s503 = scalar_lea.vmem %s0, %s502
      %p504 = pneg %p49
      %p505 = pneg %p46
      %p506 = scmp.lt.s32.totalorder %s28, 7
      %s507 = scalar_select %p506, %s28, 7
      %s508 = smul.addr %s507, 2
      %s509 = scalar_lea.vmem %s1, %s508
      %p510 = pneg %p75
      %p511 = pneg %p72
      %p512 = scmp.lt.s32.totalorder %s28, 7
      %s513 = scalar_select %p512, %s28, 7
      %s514 = smul.addr %s513, 2
      %s515 = smul.addr %s514, 4
      %s516 = scalar_lea.vmem %s2, %s515
      %p517 = pneg %p101
      %p518 = pneg %p98
      %p519 = scmp.lt.s32.totalorder %s28, 7
      %s520 = scalar_select %p519, %s28, 7
      %s521 = smul.addr %s520, 4
      %s522 = scalar_lea.vmem %s3, %s521
      %p523 = pneg %p127
      %p524 = pneg %p124
      %p525 = pneg %p148
      %p526 = pneg %p145
      %p527 = pneg %p169
      %p528 = pneg %p166
      %p529 = pneg %p190
      %p530 = pneg %p187
      %p531 = pneg %p211
      %p532 = pneg %p208
      %p533 = pneg %p232
      %p534 = pneg %p229
      %p535 = pneg %p253
      %p536 = pneg %p250
      %p537 = pneg %p274
      %p538 = pneg %p271
      %p539 = pneg %p295
      %p540 = pneg %p292
      %p541 = pneg %p316
      %p542 = pneg %p313
      %p543 = pneg %p337
      %p544 = pneg %p334
      %p545 = pneg %p363
      %p546 = pneg %p360
      %p547 = scmp.lt.s32.totalorder %s28, 7
      %s548 = scalar_select %p547, %s28, 7
      %s549 = smul.addr %s548, 4
      %s550 = scalar_lea.vmem %s14, %s549
      %p551 = pneg %p389
      %p552 = pneg %p386
      %p553 = scmp.lt.s32.totalorder %s28, 7
      %s554 = scalar_select %p553, %s28, 7
      %s555 = smul.addr %s554, 4
      %s556 = scalar_lea.vmem %s15, %s555
      %p557 = pneg %p415
      %p558 = pneg %p412
      %p559 = scmp.lt.s32.totalorder %s28, 7
      %s560 = scalar_select %p559, %s28, 7
      %s561 = smul.addr %s560, 4
      %s562 = scalar_lea.vmem %s16, %s561
      %p563 = scmp.lt.s32.totalorder %s28, 7
      %s564 = scalar_select %p563, %s28, 7
      %s565 = smul.addr %s564, 2
      %s566 = scalar_lea.vmem %s0, %s565
      %p567 = scmp.lt.s32.totalorder %s28, 7
      %s568 = scalar_select %p567, %s28, 7
      %s569 = smul.addr %s568, 2
      %s570 = scalar_lea.vmem %s1, %s569
      %p571 = scmp.lt.s32.totalorder %s28, 7
      %s572 = scalar_select %p571, %s28, 7
      %s573 = smul.addr %s572, 2
      %s574 = smul.addr %s573, 4
      %s575 = scalar_lea.vmem %s2, %s574
      %p576 = scmp.lt.s32.totalorder %s28, 7
      %s577 = scalar_select %p576, %s28, 7
      %s578 = smul.addr %s577, 4
      %s579 = scalar_lea.vmem %s3, %s578
      %p580 = scmp.lt.s32.totalorder %s28, 7
      %s581 = scalar_select %p580, %s28, 7
      %s582 = smul.addr %s581, 4
      %s583 = scalar_lea.vmem %s14, %s582
      %p584 = scmp.lt.s32.totalorder %s28, 7
      %s585 = scalar_select %p584, %s28, 7
      %s586 = smul.addr %s585, 4
      %s587 = scalar_lea.vmem %s15, %s586
      %p588 = scmp.lt.s32.totalorder %s28, 7
      %s589 = scalar_select %p588, %s28, 7
      %s590 = smul.addr %s589, 4
      %s591 = scalar_lea.vmem %s16, %s590
      %v593 = vld [vmem:[%s566] sm:$0x3]
      %v594 = vld [vmem:[%s570] sm:$0x3]
      %v595 = vld [vmem:[%s575] sm:$0xf]
      %v596 = vld [vmem:[%s575 + $0x4] sm:$0x3]
      %v597 = vld [vmem:[%s579] sm:$0xf]
      %v598 = vld [vmem:[%s4] sm:$0xf]
      %v599 = vld [vmem:[%s4 + $0x4] sm:$0xf]
      %v600 = vld [vmem:[%s4 + $0x8] sm:$0xf]
      %v601 = vld [vmem:[%s4 + $0xc] sm:$0xf]
      %v602 = vld [vmem:[%s4 + $0x10] sm:$0xf]
      %v603 = vld [vmem:[%s4 + $0x14] sm:$0xf]
      %v604 = vld [vmem:[%s4 + $0x18] sm:$0xf]
      %v605 = vld [vmem:[%s4 + $0x1c] sm:$0xf]
      %v606 = vld [vmem:[%s5] sm:$0xf]
      %v607 = vld [vmem:[%s5 + $0x4] sm:$0xf]
      %v608 = vld [vmem:[%s5 + $0x8] sm:$0xf]
      %v609 = vld [vmem:[%s5 + $0xc] sm:$0xf]
      %v610 = vld [vmem:[%s5 + $0x10] sm:$0xf]
      %v611 = vld [vmem:[%s5 + $0x14] sm:$0xf]
      %v612 = vld [vmem:[%s5 + $0x18] sm:$0xf]
      %v613 = vld [vmem:[%s5 + $0x1c] sm:$0xf]
      %v622 = vunpack.c.l.b16 %v606
      %v623 = vunpack.c.l.b16 %v607
      %v624 = vunpack.c.l.b16 %v608
      %v625 = vunpack.c.l.b16 %v609
      %v626 = vunpack.c.l.b16 %v610
      %v627 = vunpack.c.l.b16 %v611
      %v628 = vunpack.c.l.b16 %v612
      %v629 = vunpack.c.l.b16 %v613
      %v630 = vpack.c.b16 %v623, %v622
      %v631 = vpack.c.b16 %v625, %v624
      %v632 = vpack.c.b16 %v627, %v626
      %v633 = vpack.c.b16 %v629, %v628
      %vm638 = vcmask 523264
      %v640 = vsel %vm638, %v594, 0
      %642 = vmatprep.subr.bf16.mxu0 0
      %643 = vmatpush1.bf16.msra.mxu0 0
      %644 = vmatprep.subr.bf16.mxu0 0
      %645 = vmatpush1.bf16.msra.mxu0 0
      %646 = vmatprep.subr.bf16.mxu0 0
      %647 = vmatpush1.bf16.msra.mxu0 0
      %648 = vmatprep.subr.bf16.mxu0 0
      %649 = vmatpush1.bf16.msra.mxu0 0
      %650 = vmatprep.subr.bf16.mxu0 0
      %651 = vmatpush1.bf16.msra.mxu0 %v633
      %652 = vmatprep.subr.bf16.mxu0 0
      %653 = vmatpush1.bf16.msra.mxu0 %v632
      %654 = vmatprep.subr.bf16.mxu0 0
      %655 = vmatpush1.bf16.msra.mxu0 %v631
      %656 = vmatprep.subr.bf16.mxu0 0
      %657 = vmatpush1.bf16.msra.mxu0 %v630
      %658 = vmatprep.subr.bf16.mxu0 0
      %659 = vmatpush2.bf16.msra.mxu0 0
      %660 = vmatprep.subr.bf16.mxu0 0
      %661 = vmatpush2.bf16.msra.mxu0 0
      %662 = vmatprep.subr.bf16.mxu0 0
      %663 = vmatpush2.bf16.msra.mxu0 0
      %664 = vmatprep.subr.bf16.mxu0 0
      %665 = vmatpush2.bf16.msra.mxu0 0
      %666 = vmatprep.subr.bf16.mxu0 0
      %667 = vmatpush2.bf16.msra.mxu0 0
      %668 = vmatprep.subr.bf16.mxu0 0
      %669 = vmatpush2.bf16.msra.mxu0 0
      %670 = vmatprep.subr.bf16.mxu0 0
      %671 = vmatpush2.bf16.msra.mxu0 0
      %672 = vmatprep.subr.bf16.mxu0 0
      %673 = vmatpush2.bf16.msra.mxu0 0
      %674 = vmatprep.mubr.bf16.mxu0 0
      %675 = vmatmul.mubr.bf16.gmra.mxu0 %v640
      %v676 = vpop.f32.mrf.mxu0
      %v677 = vadd.f32 0.0, %v676
      %v678 = vpop.f32.mrf.mxu0
      %v679 = vpop.f32.mrf.mxu0
      %v680 = vpop.f32.mrf.mxu0
      %681 = vdwg.mxu0
      %v690 = vunpack.c.l.b16 %v598
      %v691 = vunpack.c.l.b16 %v599
      %v692 = vunpack.c.l.b16 %v600
      %v693 = vunpack.c.l.b16 %v601
      %v694 = vunpack.c.l.b16 %v602
      %v695 = vunpack.c.l.b16 %v603
      %v696 = vunpack.c.l.b16 %v604
      %v697 = vunpack.c.l.b16 %v605
      %v698 = vpack.c.b16 %v691, %v690
      %v699 = vpack.c.b16 %v693, %v692
      %v700 = vpack.c.b16 %v695, %v694
      %v701 = vpack.c.b16 %v697, %v696
      %v707 = vsel %vm638, %v593, 0
      %709 = vmatprep.subr.bf16.mxu0 0
      %710 = vmatpush1.bf16.msra.mxu0 0
      %711 = vmatprep.subr.bf16.mxu0 0
      %712 = vmatpush1.bf16.msra.mxu0 0
      %713 = vmatprep.subr.bf16.mxu0 0
      %714 = vmatpush1.bf16.msra.mxu0 0
      %715 = vmatprep.subr.bf16.mxu0 0
      %716 = vmatpush1.bf16.msra.mxu0 0
      %717 = vmatprep.subr.bf16.mxu0 0
      %718 = vmatpush1.bf16.msra.mxu0 %v701
      %719 = vmatprep.subr.bf16.mxu0 0
      %720 = vmatpush1.bf16.msra.mxu0 %v700
      %721 = vmatprep.subr.bf16.mxu0 0
      %722 = vmatpush1.bf16.msra.mxu0 %v699
      %723 = vmatprep.subr.bf16.mxu0 0
      %724 = vmatpush1.bf16.msra.mxu0 %v698
      %725 = vmatprep.subr.bf16.mxu0 0
      %726 = vmatpush2.bf16.msra.mxu0 0
      %727 = vmatprep.subr.bf16.mxu0 0
      %728 = vmatpush2.bf16.msra.mxu0 0
      %729 = vmatprep.subr.bf16.mxu0 0
      %730 = vmatpush2.bf16.msra.mxu0 0
      %731 = vmatprep.subr.bf16.mxu0 0
      %732 = vmatpush2.bf16.msra.mxu0 0
      %733 = vmatprep.subr.bf16.mxu0 0
      %734 = vmatpush2.bf16.msra.mxu0 0
      %735 = vmatprep.subr.bf16.mxu0 0
      %736 = vmatpush2.bf16.msra.mxu0 0
      %737 = vmatprep.subr.bf16.mxu0 0
      %738 = vmatpush2.bf16.msra.mxu0 0
      %739 = vmatprep.subr.bf16.mxu0 0
      %740 = vmatpush2.bf16.msra.mxu0 0
      %741 = vmatprep.mubr.bf16.mxu0 0
      %742 = vmatmul.mubr.bf16.gmra.mxu0 %v707
      %v743 = vpop.f32.mrf.mxu0
      %v744 = vadd.f32 %v677, %v743
      %v745 = vpop.f32.mrf.mxu0
      %v746 = vpop.f32.mrf.mxu0
      %v747 = vpop.f32.mrf.mxu0
      %748 = vdwg.mxu0
      %v749 = vld [vmem:[%s6] sm:$0x1]
      %v751 = vlaneseq
      %v752 = vshrl.u32 %v751, 7
      %v753 = vsub.s32 0, %v752
      %v754 = vrot.slane %v749, %v753
      %v756 = vadd.f32 %v744, %v754
      %v757 = vld [vmem:[%s7] sm:$0xf]
      %v758 = vld [vmem:[%s7 + $0x4] sm:$0xf]
      %v761 = vunpack.c.l.b16 %v757
      %v762 = vunpack.c.l.b16 %v758
      %v763 = vpack.c.b16 %v762, %v761
      %vm765 = vcmask 130048
      %v767 = vsel %vm765, %v597, 0
      %769 = vmatprep.subr.bf16.mxu0 0
      %770 = vmatpush1.bf16.msra.mxu0 0
      %771 = vmatprep.subr.bf16.mxu0 0
      %772 = vmatpush1.bf16.msra.mxu0 0
      %773 = vmatprep.subr.bf16.mxu0 0
      %774 = vmatpush1.bf16.msra.mxu0 0
      %775 = vmatprep.subr.bf16.mxu0 0
      %776 = vmatpush1.bf16.msra.mxu0 0
      %777 = vmatprep.subr.bf16.mxu0 0
      %778 = vmatpush1.bf16.msra.mxu0 0
      %779 = vmatprep.subr.bf16.mxu0 0
      %780 = vmatpush1.bf16.msra.mxu0 0
      %781 = vmatprep.subr.bf16.mxu0 0
      %782 = vmatpush1.bf16.msra.mxu0 0
      %783 = vmatprep.subr.bf16.mxu0 0
      %784 = vmatpush1.bf16.msra.mxu0 %v763
      %785 = vmatprep.subr.bf16.mxu0 0
      %786 = vmatpush2.bf16.msra.mxu0 0
      %787 = vmatprep.subr.bf16.mxu0 0
      %788 = vmatpush2.bf16.msra.mxu0 0
      %789 = vmatprep.subr.bf16.mxu0 0
      %790 = vmatpush2.bf16.msra.mxu0 0
      %791 = vmatprep.subr.bf16.mxu0 0
      %792 = vmatpush2.bf16.msra.mxu0 0
      %793 = vmatprep.subr.bf16.mxu0 0
      %794 = vmatpush2.bf16.msra.mxu0 0
      %795 = vmatprep.subr.bf16.mxu0 0
      %796 = vmatpush2.bf16.msra.mxu0 0
      %797 = vmatprep.subr.bf16.mxu0 0
      %798 = vmatpush2.bf16.msra.mxu0 0
      %799 = vmatprep.subr.bf16.mxu0 0
      %800 = vmatpush2.bf16.msra.mxu0 0
      %801 = vmatprep.mubr.bf16.mxu0 0
      %802 = vmatmul.mubr.bf16.gmra.mxu0 %v767
      %v803 = vpop.f32.mrf.mxu0
      %v804 = vadd.f32 0.0, %v803
      %v805 = vpop.f32.mrf.mxu0
      %v806 = vpop.f32.mrf.mxu0
      %v807 = vpop.f32.mrf.mxu0
      %808 = vdwg.mxu0
      %v809 = vld [vmem:[%s9] sm:$0x1]
      %v810 = vld [vmem:[%s10] sm:$0x1]
      %v811 = vld [vmem:[%s8] sm:$0xf]
      %v812 = vld [vmem:[%s8 + $0x4] sm:$0xf]
      %v813 = vld [vmem:[%s8 + $0x8] sm:$0xf]
      %v814 = vld [vmem:[%s8 + $0xc] sm:$0xf]
      %v815 = vld [vmem:[%s8 + $0x10] sm:$0xf]
      %v816 = vld [vmem:[%s8 + $0x14] sm:$0xf]
      %v817 = vld [vmem:[%s8 + $0x18] sm:$0xf]
      %v818 = vld [vmem:[%s8 + $0x1c] sm:$0xf]
      %v821 = vunpack.c.l.b16 %v595
      %v822 = vunpack.c.l.b16 %v596
      %v823 = vpack.c.b16 %v822, %v821
      %v832 = vunpack.c.l.b16 %v811
      %v833 = vunpack.c.l.b16 %v812
      %v834 = vunpack.c.l.b16 %v813
      %v835 = vunpack.c.l.b16 %v814
      %v836 = vunpack.c.l.b16 %v815
      %v837 = vunpack.c.l.b16 %v816
      %v838 = vunpack.c.l.b16 %v817
      %v839 = vunpack.c.l.b16 %v818
      %v840 = vpack.c.b16 %v833, %v832
      %v841 = vpack.c.b16 %v835, %v834
      %v842 = vpack.c.b16 %v837, %v836
      %v843 = vpack.c.b16 %v839, %v838
      %v849 = vsel %vm638, %v823, 0
      %851 = vmatprep.subr.bf16.mxu0 0
      %852 = vmatpush1.bf16.msra.mxu0 0
      %853 = vmatprep.subr.bf16.mxu0 0
      %854 = vmatpush1.bf16.msra.mxu0 0
      %855 = vmatprep.subr.bf16.mxu0 0
      %856 = vmatpush1.bf16.msra.mxu0 0
      %857 = vmatprep.subr.bf16.mxu0 0
      %858 = vmatpush1.bf16.msra.mxu0 0
      %859 = vmatprep.subr.bf16.mxu0 0
      %860 = vmatpush1.bf16.msra.mxu0 %v843
      %861 = vmatprep.subr.bf16.mxu0 0
      %862 = vmatpush1.bf16.msra.mxu0 %v842
      %863 = vmatprep.subr.bf16.mxu0 0
      %864 = vmatpush1.bf16.msra.mxu0 %v841
      %865 = vmatprep.subr.bf16.mxu0 0
      %866 = vmatpush1.bf16.msra.mxu0 %v840
      %867 = vmatprep.subr.bf16.mxu0 0
      %868 = vmatpush2.bf16.msra.mxu0 0
      %869 = vmatprep.subr.bf16.mxu0 0
      %870 = vmatpush2.bf16.msra.mxu0 0
      %871 = vmatprep.subr.bf16.mxu0 0
      %872 = vmatpush2.bf16.msra.mxu0 0
      %873 = vmatprep.subr.bf16.mxu0 0
      %874 = vmatpush2.bf16.msra.mxu0 0
      %875 = vmatprep.subr.bf16.mxu0 0
      %876 = vmatpush2.bf16.msra.mxu0 0
      %877 = vmatprep.subr.bf16.mxu0 0
      %878 = vmatpush2.bf16.msra.mxu0 0
      %879 = vmatprep.subr.bf16.mxu0 0
      %880 = vmatpush2.bf16.msra.mxu0 0
      %881 = vmatprep.subr.bf16.mxu0 0
      %882 = vmatpush2.bf16.msra.mxu0 0
      %883 = vmatprep.mubr.bf16.mxu0 0
      %884 = vmatmul.mubr.bf16.gmra.mxu0 %v849
      %v885 = vpop.f32.mrf.mxu0
      %v886 = vadd.f32 0.0, %v885
      %v887 = vpop.f32.mrf.mxu0
      %v888 = vpop.f32.mrf.mxu0
      %v889 = vadd.f32 0.0, %v888
      %v890 = vpop.f32.mrf.mxu0
      %891 = vdwg.mxu0
      %v893 = vcombine.high %v804, %v804
      %v895 = vunpack.c.l.s4 1966171168
      %v896 = vunpack.c.0.s8 %v895
      %v897 = vlaneseq
      %v898 = vshrl.u32 %v897, 7
      %v899 = vsub.s32 %v896, %v898
      %v900 = vrot.slane %v804, %v899
      %v902 = vunpack.c.l.s4 1966171168
      %v903 = vunpack.c.0.s8 %v902
      %v904 = vlaneseq
      %v905 = vshrl.u32 %v904, 7
      %v906 = vsub.s32 %v903, %v905
      %v907 = vrot.slane %v893, %v906
      %v908 = vcombine.high %v900, %v900
      %v909 = vcombine.high %v907, %v907
      %v911 = vunpack.c.l.s4 1966171168
      %v912 = vunpack.c.0.s8 %v911
      %v913 = vlaneseq
      %v914 = vshrl.u32 %v913, 7
      %v915 = vsub.s32 %v912, %v914
      %v916 = vrot.slane %v900, %v915
      %v918 = vunpack.c.l.s4 1966171168
      %v919 = vunpack.c.0.s8 %v918
      %v920 = vlaneseq
      %v921 = vshrl.u32 %v920, 7
      %v922 = vsub.s32 %v919, %v921
      %v923 = vrot.slane %v907, %v922
      %v925 = vunpack.c.l.s4 1966171168
      %v926 = vunpack.c.0.s8 %v925
      %v927 = vlaneseq
      %v928 = vshrl.u32 %v927, 7
      %v929 = vsub.s32 %v926, %v928
      %v930 = vrot.slane %v908, %v929
      %v932 = vunpack.c.l.s4 1966171168
      %v933 = vunpack.c.0.s8 %v932
      %v934 = vlaneseq
      %v935 = vshrl.u32 %v934, 7
      %v936 = vsub.s32 %v933, %v935
      %v937 = vrot.slane %v909, %v936
      %v938 = vcombine.high %v916, %v916
      %v939 = vcombine.high %v923, %v923
      %v940 = vcombine.high %v930, %v930
      %v941 = vcombine.high %v937, %v937
      %v942 = vlaneseq
      %v943 = vshrl.u32 %v942, 7
      %v944 = vsub.s32 0, %v943
      %v945 = vrot.slane %v916, %v944
      %v946 = vlaneseq
      %v947 = vshrl.u32 %v946, 7
      %v948 = vsub.s32 0, %v947
      %v949 = vrot.slane %v930, %v948
      %v950 = vlaneseq
      %v951 = vshrl.u32 %v950, 7
      %v952 = vsub.s32 0, %v951
      %v953 = vrot.slane %v938, %v952
      %v954 = vlaneseq
      %v955 = vshrl.u32 %v954, 7
      %v956 = vsub.s32 0, %v955
      %v957 = vrot.slane %v940, %v956
      %v958 = vlaneseq
      %v959 = vshrl.u32 %v958, 7
      %v960 = vsub.s32 0, %v959
      %v961 = vrot.slane %v923, %v960
      %v962 = vlaneseq
      %v963 = vshrl.u32 %v962, 7
      %v964 = vsub.s32 0, %v963
      %v965 = vrot.slane %v937, %v964
      %v966 = vlaneseq
      %v967 = vshrl.u32 %v966, 7
      %v968 = vsub.s32 0, %v967
      %v969 = vrot.slane %v939, %v968
      %v970 = vlaneseq
      %v971 = vshrl.u32 %v970, 7
      %v972 = vsub.s32 0, %v971
      %v973 = vrot.slane %v941, %v972
      %v982 = vadd.f32 %v945, %v886
      %v983 = vadd.f32 %v945, %v889
      %v984 = vadd.f32 %v949, %v886
      %v985 = vadd.f32 %v949, %v889
      %v986 = vadd.f32 %v953, %v886
      %v987 = vadd.f32 %v953, %v889
      %v988 = vadd.f32 %v957, %v886
      %v989 = vadd.f32 %v957, %v889
      %v990 = vadd.f32 %v961, %v886
      %v991 = vadd.f32 %v961, %v889
      %v992 = vadd.f32 %v965, %v886
      %v993 = vadd.f32 %v965, %v889
      %v994 = vadd.f32 %v969, %v886
      %v995 = vadd.f32 %v969, %v889
      %v996 = vadd.f32 %v973, %v886
      %v997 = vadd.f32 %v973, %v889
      %v999 = vlaneseq
      %v1000 = vshrl.u32 %v999, 7
      %v1001 = vsub.s32 0, %v1000
      %v1002 = vrot.slane %v809, %v1001
      %v1004 = vadd.f32 %v982, %v1002
      %v1005 = vadd.f32 %v983, %v1002
      %v1006 = vadd.f32 %v984, %v1002
      %v1007 = vadd.f32 %v985, %v1002
      %v1008 = vadd.f32 %v986, %v1002
      %v1009 = vadd.f32 %v987, %v1002
      %v1010 = vadd.f32 %v988, %v1002
      %v1011 = vadd.f32 %v989, %v1002
      %v1012 = vadd.f32 %v990, %v1002
      %v1013 = vadd.f32 %v991, %v1002
      %v1014 = vadd.f32 %v992, %v1002
      %v1015 = vadd.f32 %v993, %v1002
      %v1016 = vadd.f32 %v994, %v1002
      %v1017 = vadd.f32 %v995, %v1002
      %v1018 = vadd.f32 %v996, %v1002
      %v1019 = vadd.f32 %v997, %v1002
      %v1020 = vtanh.pop %v1004
      %v1021 = vtanh.pop %v1005
      %v1022 = vtanh.pop %v1006
      %v1023 = vtanh.pop %v1007
      %v1024 = vtanh.pop %v1008
      %v1025 = vtanh.pop %v1009
      %v1026 = vtanh.pop %v1010
      %v1027 = vtanh.pop %v1011
      %v1028 = vtanh.pop %v1012
      %v1029 = vtanh.pop %v1013
      %v1030 = vtanh.pop %v1014
      %v1031 = vtanh.pop %v1015
      %v1032 = vtanh.pop %v1016
      %v1033 = vtanh.pop %v1017
      %v1034 = vtanh.pop %v1018
      %v1035 = vtanh.pop %v1019
      %v1037 = vlaneseq
      %v1038 = vshrl.u32 %v1037, 7
      %v1039 = vsub.s32 0, %v1038
      %v1040 = vrot.slane %v810, %v1039
      %v1042 = vmul.f32 %v1020, %v1040
      %v1043 = vmul.f32 %v1021, %v1040
      %v1044 = vmul.f32 %v1022, %v1040
      %v1045 = vmul.f32 %v1023, %v1040
      %v1046 = vmul.f32 %v1024, %v1040
      %v1047 = vmul.f32 %v1025, %v1040
      %v1048 = vmul.f32 %v1026, %v1040
      %v1049 = vmul.f32 %v1027, %v1040
      %v1050 = vmul.f32 %v1028, %v1040
      %v1051 = vmul.f32 %v1029, %v1040
      %v1052 = vmul.f32 %v1030, %v1040
      %v1053 = vmul.f32 %v1031, %v1040
      %v1054 = vmul.f32 %v1032, %v1040
      %v1055 = vmul.f32 %v1033, %v1040
      %v1056 = vmul.f32 %v1034, %v1040
      %v1057 = vmul.f32 %v1035, %v1040
      %vm1058 = vcmask 261120
      %v1059 = vsel %vm1058, %v1042, 0.0
      %1060 = vadd.xlane.f32.xlu0 %v1059
      %v1061 = vpop.xlane.xlu0 %1060
      %vm1062 = vcmask 257024
      %v1063 = vsel %vm1062, %v1043, 0.0
      %1064 = vadd.xlane.f32.xlu0 %v1063
      %v1065 = vpop.xlane.xlu0 %1064
      %v1066 = vsel %vm1058, %v1044, 0.0
      %1067 = vadd.xlane.f32.xlu0 %v1066
      %v1068 = vpop.xlane.xlu0 %1067
      %v1069 = vsel %vm1062, %v1045, 0.0
      %1070 = vadd.xlane.f32.xlu0 %v1069
      %v1071 = vpop.xlane.xlu0 %1070
      %v1072 = vsel %vm1058, %v1046, 0.0
      %1073 = vadd.xlane.f32.xlu0 %v1072
      %v1074 = vpop.xlane.xlu0 %1073
      %v1075 = vsel %vm1062, %v1047, 0.0
      %1076 = vadd.xlane.f32.xlu0 %v1075
      %v1077 = vpop.xlane.xlu0 %1076
      %v1078 = vsel %vm1058, %v1048, 0.0
      %1079 = vadd.xlane.f32.xlu0 %v1078
      %v1080 = vpop.xlane.xlu0 %1079
      %v1081 = vsel %vm1062, %v1049, 0.0
      %1082 = vadd.xlane.f32.xlu0 %v1081
      %v1083 = vpop.xlane.xlu0 %1082
      %v1084 = vsel %vm1058, %v1050, 0.0
      %1085 = vadd.xlane.f32.xlu0 %v1084
      %v1086 = vpop.xlane.xlu0 %1085
      %v1087 = vsel %vm1062, %v1051, 0.0
      %1088 = vadd.xlane.f32.xlu0 %v1087
      %v1089 = vpop.xlane.xlu0 %1088
      %v1090 = vsel %vm1058, %v1052, 0.0
      %1091 = vadd.xlane.f32.xlu0 %v1090
      %v1092 = vpop.xlane.xlu0 %1091
      %v1093 = vsel %vm1062, %v1053, 0.0
      %1094 = vadd.xlane.f32.xlu0 %v1093
      %v1095 = vpop.xlane.xlu0 %1094
      %v1096 = vsel %vm1058, %v1054, 0.0
      %1097 = vadd.xlane.f32.xlu0 %v1096
      %v1098 = vpop.xlane.xlu0 %1097
      %v1099 = vsel %vm1062, %v1055, 0.0
      %1100 = vadd.xlane.f32.xlu0 %v1099
      %v1101 = vpop.xlane.xlu0 %1100
      %v1102 = vsel %vm1058, %v1056, 0.0
      %1103 = vadd.xlane.f32.xlu0 %v1102
      %v1104 = vpop.xlane.xlu0 %1103
      %v1105 = vsel %vm1062, %v1057, 0.0
      %1106 = vadd.xlane.f32.xlu0 %v1105
      %v1107 = vpop.xlane.xlu0 %1106
      %v1124 = vlaneseq
      %v1125 = vand.u32 %v1124, 127
      %v1126 = vlaneseq
      %v1127 = vshrl.u32 %v1126, 7
      %v1128 = vsub.s32 %v1125, %v1127
      %v1129 = vrot.slane %v1061, %v1128
      %v1130 = vadd.s32 %v1125, 4294967288
      %v1131 = vlaneseq
      %v1132 = vshrl.u32 %v1131, 7
      %v1133 = vsub.s32 %v1130, %v1132
      %v1134 = vrot.slane %v1065, %v1133
      %vm1135 = vcmask 130112
      %v1136 = vsel %vm1135, %v1134, %v1129
      %v1137 = vlaneseq
      %v1138 = vshrl.u32 %v1137, 7
      %v1139 = vsub.s32 %v1125, %v1138
      %v1140 = vrot.slane %v1068, %v1139
      %v1141 = vlaneseq
      %v1142 = vshrl.u32 %v1141, 7
      %v1143 = vsub.s32 %v1130, %v1142
      %v1144 = vrot.slane %v1071, %v1143
      %v1145 = vsel %vm1135, %v1144, %v1140
      %v1146 = vlaneseq
      %v1147 = vshrl.u32 %v1146, 7
      %v1148 = vsub.s32 %v1125, %v1147
      %v1149 = vrot.slane %v1074, %v1148
      %v1150 = vlaneseq
      %v1151 = vshrl.u32 %v1150, 7
      %v1152 = vsub.s32 %v1130, %v1151
      %v1153 = vrot.slane %v1077, %v1152
      %v1154 = vsel %vm1135, %v1153, %v1149
      %v1155 = vlaneseq
      %v1156 = vshrl.u32 %v1155, 7
      %v1157 = vsub.s32 %v1125, %v1156
      %v1158 = vrot.slane %v1080, %v1157
      %v1159 = vlaneseq
      %v1160 = vshrl.u32 %v1159, 7
      %v1161 = vsub.s32 %v1130, %v1160
      %v1162 = vrot.slane %v1083, %v1161
      %v1163 = vsel %vm1135, %v1162, %v1158
      %v1164 = vlaneseq
      %v1165 = vshrl.u32 %v1164, 7
      %v1166 = vsub.s32 %v1125, %v1165
      %v1167 = vrot.slane %v1086, %v1166
      %v1168 = vlaneseq
      %v1169 = vshrl.u32 %v1168, 7
      %v1170 = vsub.s32 %v1130, %v1169
      %v1171 = vrot.slane %v1089, %v1170
      %v1172 = vsel %vm1135, %v1171, %v1167
      %v1173 = vlaneseq
      %v1174 = vshrl.u32 %v1173, 7
      %v1175 = vsub.s32 %v1125, %v1174
      %v1176 = vrot.slane %v1092, %v1175
      %v1177 = vlaneseq
      %v1178 = vshrl.u32 %v1177, 7
      %v1179 = vsub.s32 %v1130, %v1178
      %v1180 = vrot.slane %v1095, %v1179
      %v1181 = vsel %vm1135, %v1180, %v1176
      %v1182 = vlaneseq
      %v1183 = vshrl.u32 %v1182, 7
      %v1184 = vsub.s32 %v1125, %v1183
      %v1185 = vrot.slane %v1098, %v1184
      %v1186 = vlaneseq
      %v1187 = vshrl.u32 %v1186, 7
      %v1188 = vsub.s32 %v1130, %v1187
      %v1189 = vrot.slane %v1101, %v1188
      %v1190 = vsel %vm1135, %v1189, %v1185
      %v1191 = vlaneseq
      %v1192 = vshrl.u32 %v1191, 7
      %v1193 = vsub.s32 %v1125, %v1192
      %v1194 = vrot.slane %v1104, %v1193
      %v1195 = vlaneseq
      %v1196 = vshrl.u32 %v1195, 7
      %v1197 = vsub.s32 %v1130, %v1196
      %v1198 = vrot.slane %v1107, %v1197
      %v1199 = vsel %vm1135, %v1198, %v1194
      %vm1200 = vcmask 1041409
      %v1201 = vsel %vm1200, %v1145, %v1136
      %vm1202 = vcmask 1042434
      %v1203 = vsel %vm1202, %v1154, %v1201
      %vm1204 = vcmask 1043459
      %v1205 = vsel %vm1204, %v1163, %v1203
      %vm1206 = vcmask 1044484
      %v1207 = vsel %vm1206, %v1172, %v1205
      %vm1208 = vcmask 1045509
      %v1209 = vsel %vm1208, %v1181, %v1207
      %vm1210 = vcmask 1046534
      %v1211 = vsel %vm1210, %v1190, %v1209
      %vm1212 = vcmask 1047559
      %v1213 = vsel %vm1212, %v1199, %v1211
      %vm1215 = vcmask 97280
      %v1216 = vsel %vm1215, %v1213, -inf
      %1217 = vmax.xlane.f32.xlu0 %v1216
      %v1218 = vpop.xlane.xlu0 %1217
      %v1220 = vlaneseq
      %v1221 = vshrl.u32 %v1220, 7
      %v1222 = vsub.s32 0, %v1221
      %v1223 = vrot.slane %v1218, %v1222
      %v1224 = vlaneseq
      %v1225 = vshrl.u32 %v1224, 7
      %v1226 = vsub.s32 1, %v1225
      %v1227 = vrot.slane %v1218, %v1226
      %v1228 = vlaneseq
      %v1229 = vshrl.u32 %v1228, 7
      %v1230 = vsub.s32 2, %v1229
      %v1231 = vrot.slane %v1218, %v1230
      %v1232 = vlaneseq
      %v1233 = vshrl.u32 %v1232, 7
      %v1234 = vsub.s32 3, %v1233
      %v1235 = vrot.slane %v1218, %v1234
      %v1236 = vlaneseq
      %v1237 = vshrl.u32 %v1236, 7
      %v1238 = vsub.s32 4, %v1237
      %v1239 = vrot.slane %v1218, %v1238
      %v1240 = vlaneseq
      %v1241 = vshrl.u32 %v1240, 7
      %v1242 = vsub.s32 5, %v1241
      %v1243 = vrot.slane %v1218, %v1242
      %v1244 = vlaneseq
      %v1245 = vshrl.u32 %v1244, 7
      %v1246 = vsub.s32 6, %v1245
      %v1247 = vrot.slane %v1218, %v1246
      %v1248 = vlaneseq
      %v1249 = vshrl.u32 %v1248, 7
      %v1250 = vsub.s32 7, %v1249
      %v1251 = vrot.slane %v1218, %v1250
      %v1260 = vsub.f32 %v1061, %v1223
      %v1261 = vsub.f32 %v1065, %v1223
      %v1262 = vsub.f32 %v1068, %v1227
      %v1263 = vsub.f32 %v1071, %v1227
      %v1264 = vsub.f32 %v1074, %v1231
      %v1265 = vsub.f32 %v1077, %v1231
      %v1266 = vsub.f32 %v1080, %v1235
      %v1267 = vsub.f32 %v1083, %v1235
      %v1268 = vsub.f32 %v1086, %v1239
      %v1269 = vsub.f32 %v1089, %v1239
      %v1270 = vsub.f32 %v1092, %v1243
      %v1271 = vsub.f32 %v1095, %v1243
      %v1272 = vsub.f32 %v1098, %v1247
      %v1273 = vsub.f32 %v1101, %v1247
      %v1274 = vsub.f32 %v1104, %v1251
      %v1275 = vsub.f32 %v1107, %v1251
      %v1276 = vmul.f32 %v1260, 1.442695
      %v1277 = vpow.pop %v1276
      %v1278 = vmul.f32 %v1261, 1.442695
      %v1279 = vpow.pop %v1278
      %v1280 = vmul.f32 %v1262, 1.442695
      %v1281 = vpow.pop %v1280
      %v1282 = vmul.f32 %v1263, 1.442695
      %v1283 = vpow.pop %v1282
      %v1284 = vmul.f32 %v1264, 1.442695
      %v1285 = vpow.pop %v1284
      %v1286 = vmul.f32 %v1265, 1.442695
      %v1287 = vpow.pop %v1286
      %v1288 = vmul.f32 %v1266, 1.442695
      %v1289 = vpow.pop %v1288
      %v1290 = vmul.f32 %v1267, 1.442695
      %v1291 = vpow.pop %v1290
      %v1292 = vmul.f32 %v1268, 1.442695
      %v1293 = vpow.pop %v1292
      %v1294 = vmul.f32 %v1269, 1.442695
      %v1295 = vpow.pop %v1294
      %v1296 = vmul.f32 %v1270, 1.442695
      %v1297 = vpow.pop %v1296
      %v1298 = vmul.f32 %v1271, 1.442695
      %v1299 = vpow.pop %v1298
      %v1300 = vmul.f32 %v1272, 1.442695
      %v1301 = vpow.pop %v1300
      %v1302 = vmul.f32 %v1273, 1.442695
      %v1303 = vpow.pop %v1302
      %v1304 = vmul.f32 %v1274, 1.442695
      %v1305 = vpow.pop %v1304
      %v1306 = vmul.f32 %v1275, 1.442695
      %v1307 = vpow.pop %v1306
      %1324 = vset.pattern.permute.xlu0 0
      %1325 = vperm.xlu0 %1324, %v1277
      %v1326 = vpop.permute.xlu0 %1325
      %1327 = vset.pattern.permute.xlu0 0
      %1328 = vperm.xlu0 %1327, %v1279
      %v1329 = vpop.permute.xlu0 %1328
      %1330 = vset.pattern.permute.xlu0 0
      %1331 = vperm.xlu0 %1330, %v1281
      %v1332 = vpop.permute.xlu0 %1331
      %1333 = vset.pattern.permute.xlu0 0
      %1334 = vperm.xlu0 %1333, %v1283
      %v1335 = vpop.permute.xlu0 %1334
      %1336 = vset.pattern.permute.xlu0 0
      %1337 = vperm.xlu0 %1336, %v1285
      %v1338 = vpop.permute.xlu0 %1337
      %1339 = vset.pattern.permute.xlu0 0
      %1340 = vperm.xlu0 %1339, %v1287
      %v1341 = vpop.permute.xlu0 %1340
      %1342 = vset.pattern.permute.xlu0 0
      %1343 = vperm.xlu0 %1342, %v1289
      %v1344 = vpop.permute.xlu0 %1343
      %1345 = vset.pattern.permute.xlu0 0
      %1346 = vperm.xlu0 %1345, %v1291
      %v1347 = vpop.permute.xlu0 %1346
      %1348 = vset.pattern.permute.xlu0 0
      %1349 = vperm.xlu0 %1348, %v1293
      %v1350 = vpop.permute.xlu0 %1349
      %1351 = vset.pattern.permute.xlu0 0
      %1352 = vperm.xlu0 %1351, %v1295
      %v1353 = vpop.permute.xlu0 %1352
      %1354 = vset.pattern.permute.xlu0 0
      %1355 = vperm.xlu0 %1354, %v1297
      %v1356 = vpop.permute.xlu0 %1355
      %1357 = vset.pattern.permute.xlu0 0
      %1358 = vperm.xlu0 %1357, %v1299
      %v1359 = vpop.permute.xlu0 %1358
      %1360 = vset.pattern.permute.xlu0 0
      %1361 = vperm.xlu0 %1360, %v1301
      %v1362 = vpop.permute.xlu0 %1361
      %1363 = vset.pattern.permute.xlu0 0
      %1364 = vperm.xlu0 %1363, %v1303
      %v1365 = vpop.permute.xlu0 %1364
      %1366 = vset.pattern.permute.xlu0 0
      %1367 = vperm.xlu0 %1366, %v1305
      %v1368 = vpop.permute.xlu0 %1367
      %1369 = vset.pattern.permute.xlu0 0
      %1370 = vperm.xlu0 %1369, %v1307
      %v1371 = vpop.permute.xlu0 %1370
      %v1372 = vlaneseq
      %v1373 = vshrl.u32 %v1372, 7
      %v1374 = vsub.s32 %v1125, %v1373
      %v1375 = vrot.slane %v1326, %v1374
      %v1376 = vlaneseq
      %v1377 = vshrl.u32 %v1376, 7
      %v1378 = vsub.s32 %v1130, %v1377
      %v1379 = vrot.slane %v1329, %v1378
      %v1380 = vsel %vm1135, %v1379, %v1375
      %v1381 = vlaneseq
      %v1382 = vshrl.u32 %v1381, 7
      %v1383 = vsub.s32 %v1125, %v1382
      %v1384 = vrot.slane %v1332, %v1383
      %v1385 = vlaneseq
      %v1386 = vshrl.u32 %v1385, 7
      %v1387 = vsub.s32 %v1130, %v1386
      %v1388 = vrot.slane %v1335, %v1387
      %v1389 = vsel %vm1135, %v1388, %v1384
      %v1390 = vlaneseq
      %v1391 = vshrl.u32 %v1390, 7
      %v1392 = vsub.s32 %v1125, %v1391
      %v1393 = vrot.slane %v1338, %v1392
      %v1394 = vlaneseq
      %v1395 = vshrl.u32 %v1394, 7
      %v1396 = vsub.s32 %v1130, %v1395
      %v1397 = vrot.slane %v1341, %v1396
      %v1398 = vsel %vm1135, %v1397, %v1393
      %v1399 = vlaneseq
      %v1400 = vshrl.u32 %v1399, 7
      %v1401 = vsub.s32 %v1125, %v1400
      %v1402 = vrot.slane %v1344, %v1401
      %v1403 = vlaneseq
      %v1404 = vshrl.u32 %v1403, 7
      %v1405 = vsub.s32 %v1130, %v1404
      %v1406 = vrot.slane %v1347, %v1405
      %v1407 = vsel %vm1135, %v1406, %v1402
      %v1408 = vlaneseq
      %v1409 = vshrl.u32 %v1408, 7
      %v1410 = vsub.s32 %v1125, %v1409
      %v1411 = vrot.slane %v1350, %v1410
      %v1412 = vlaneseq
      %v1413 = vshrl.u32 %v1412, 7
      %v1414 = vsub.s32 %v1130, %v1413
      %v1415 = vrot.slane %v1353, %v1414
      %v1416 = vsel %vm1135, %v1415, %v1411
      %v1417 = vlaneseq
      %v1418 = vshrl.u32 %v1417, 7
      %v1419 = vsub.s32 %v1125, %v1418
      %v1420 = vrot.slane %v1356, %v1419
      %v1421 = vlaneseq
      %v1422 = vshrl.u32 %v1421, 7
      %v1423 = vsub.s32 %v1130, %v1422
      %v1424 = vrot.slane %v1359, %v1423
      %v1425 = vsel %vm1135, %v1424, %v1420
      %v1426 = vlaneseq
      %v1427 = vshrl.u32 %v1426, 7
      %v1428 = vsub.s32 %v1125, %v1427
      %v1429 = vrot.slane %v1362, %v1428
      %v1430 = vlaneseq
      %v1431 = vshrl.u32 %v1430, 7
      %v1432 = vsub.s32 %v1130, %v1431
      %v1433 = vrot.slane %v1365, %v1432
      %v1434 = vsel %vm1135, %v1433, %v1429
      %v1435 = vlaneseq
      %v1436 = vshrl.u32 %v1435, 7
      %v1437 = vsub.s32 %v1125, %v1436
      %v1438 = vrot.slane %v1368, %v1437
      %v1439 = vlaneseq
      %v1440 = vshrl.u32 %v1439, 7
      %v1441 = vsub.s32 %v1130, %v1440
      %v1442 = vrot.slane %v1371, %v1441
      %v1443 = vsel %vm1135, %v1442, %v1438
      %v1444 = vsel %vm1200, %v1389, %v1380
      %v1445 = vsel %vm1202, %v1398, %v1444
      %v1446 = vsel %vm1204, %v1407, %v1445
      %v1447 = vsel %vm1206, %v1416, %v1446
      %v1448 = vsel %vm1208, %v1425, %v1447
      %v1449 = vsel %vm1210, %v1434, %v1448
      %v1450 = vsel %vm1212, %v1443, %v1449
      %v1452 = vsel %vm1215, %v1450, 0.0
      %1453 = vadd.xlane.f32.xlu0 %v1452
      %v1454 = vpop.xlane.xlu0 %1453
      %v1455 = vrcp.pop %v1454
      %v1457 = vlaneseq
      %v1458 = vshrl.u32 %v1457, 7
      %v1459 = vsub.s32 0, %v1458
      %v1460 = vrot.slane %v1455, %v1459
      %v1461 = vlaneseq
      %v1462 = vshrl.u32 %v1461, 7
      %v1463 = vsub.s32 1, %v1462
      %v1464 = vrot.slane %v1455, %v1463
      %v1465 = vlaneseq
      %v1466 = vshrl.u32 %v1465, 7
      %v1467 = vsub.s32 2, %v1466
      %v1468 = vrot.slane %v1455, %v1467
      %v1469 = vlaneseq
      %v1470 = vshrl.u32 %v1469, 7
      %v1471 = vsub.s32 3, %v1470
      %v1472 = vrot.slane %v1455, %v1471
      %v1473 = vlaneseq
      %v1474 = vshrl.u32 %v1473, 7
      %v1475 = vsub.s32 4, %v1474
      %v1476 = vrot.slane %v1455, %v1475
      %v1477 = vlaneseq
      %v1478 = vshrl.u32 %v1477, 7
      %v1479 = vsub.s32 5, %v1478
      %v1480 = vrot.slane %v1455, %v1479
      %v1481 = vlaneseq
      %v1482 = vshrl.u32 %v1481, 7
      %v1483 = vsub.s32 6, %v1482
      %v1484 = vrot.slane %v1455, %v1483
      %v1485 = vlaneseq
      %v1486 = vshrl.u32 %v1485, 7
      %v1487 = vsub.s32 7, %v1486
      %v1488 = vrot.slane %v1455, %v1487
      %v1497 = vmul.f32 %v1277, %v1460
      %v1498 = vmul.f32 %v1279, %v1460
      %v1499 = vmul.f32 %v1281, %v1464
      %v1500 = vmul.f32 %v1283, %v1464
      %v1501 = vmul.f32 %v1285, %v1468
      %v1502 = vmul.f32 %v1287, %v1468
      %v1503 = vmul.f32 %v1289, %v1472
      %v1504 = vmul.f32 %v1291, %v1472
      %v1505 = vmul.f32 %v1293, %v1476
      %v1506 = vmul.f32 %v1295, %v1476
      %v1507 = vmul.f32 %v1297, %v1480
      %v1508 = vmul.f32 %v1299, %v1480
      %v1509 = vmul.f32 %v1301, %v1484
      %v1510 = vmul.f32 %v1303, %v1484
      %v1511 = vmul.f32 %v1305, %v1488
      %v1512 = vmul.f32 %v1307, %v1488
      %v1513 = vpack.c.bf16 %v1498, %v1497
      %v1514 = vpack.c.bf16 %v1500, %v1499
      %v1515 = vpack.c.bf16 %v1502, %v1501
      %v1516 = vpack.c.bf16 %v1504, %v1503
      %v1517 = vpack.c.bf16 %v1506, %v1505
      %v1518 = vpack.c.bf16 %v1508, %v1507
      %v1519 = vpack.c.bf16 %v1510, %v1509
      %v1520 = vpack.c.bf16 %v1512, %v1511
      %v1529 = vunpack.c.l.b16 %v1513
      %v1530 = vunpack.c.h.b16 %v1513
      %v1531 = vunpack.c.l.b16 %v1514
      %v1532 = vunpack.c.h.b16 %v1514
      %v1533 = vunpack.c.l.b16 %v1515
      %v1534 = vunpack.c.h.b16 %v1515
      %v1535 = vunpack.c.l.b16 %v1516
      %v1536 = vunpack.c.h.b16 %v1516
      %v1537 = vunpack.c.l.b16 %v1517
      %v1538 = vunpack.c.h.b16 %v1517
      %v1539 = vunpack.c.l.b16 %v1518
      %v1540 = vunpack.c.h.b16 %v1518
      %v1541 = vunpack.c.l.b16 %v1519
      %v1542 = vunpack.c.h.b16 %v1519
      %v1543 = vunpack.c.l.b16 %v1520
      %v1544 = vunpack.c.h.b16 %v1520
      %1545 = vset.pattern.permute.xlu0 0
      %1546 = vperm.xlu0 %1545, %v1529
      %v1547 = vpop.permute.xlu0 %1546
      %1548 = vset.pattern.permute.xlu0 0
      %1549 = vperm.xlu0 %1548, %v1530
      %v1550 = vpop.permute.xlu0 %1549
      %1551 = vset.pattern.permute.xlu0 0
      %1552 = vperm.xlu0 %1551, %v1531
      %v1553 = vpop.permute.xlu0 %1552
      %1554 = vset.pattern.permute.xlu0 0
      %1555 = vperm.xlu0 %1554, %v1532
      %v1556 = vpop.permute.xlu0 %1555
      %1557 = vset.pattern.permute.xlu0 0
      %1558 = vperm.xlu0 %1557, %v1533
      %v1559 = vpop.permute.xlu0 %1558
      %1560 = vset.pattern.permute.xlu0 0
      %1561 = vperm.xlu0 %1560, %v1534
      %v1562 = vpop.permute.xlu0 %1561
      %1563 = vset.pattern.permute.xlu0 0
      %1564 = vperm.xlu0 %1563, %v1535
      %v1565 = vpop.permute.xlu0 %1564
      %1566 = vset.pattern.permute.xlu0 0
      %1567 = vperm.xlu0 %1566, %v1536
      %v1568 = vpop.permute.xlu0 %1567
      %1569 = vset.pattern.permute.xlu0 0
      %1570 = vperm.xlu0 %1569, %v1537
      %v1571 = vpop.permute.xlu0 %1570
      %1572 = vset.pattern.permute.xlu0 0
      %1573 = vperm.xlu0 %1572, %v1538
      %v1574 = vpop.permute.xlu0 %1573
      %1575 = vset.pattern.permute.xlu0 0
      %1576 = vperm.xlu0 %1575, %v1539
      %v1577 = vpop.permute.xlu0 %1576
      %1578 = vset.pattern.permute.xlu0 0
      %1579 = vperm.xlu0 %1578, %v1540
      %v1580 = vpop.permute.xlu0 %1579
      %1581 = vset.pattern.permute.xlu0 0
      %1582 = vperm.xlu0 %1581, %v1541
      %v1583 = vpop.permute.xlu0 %1582
      %1584 = vset.pattern.permute.xlu0 0
      %1585 = vperm.xlu0 %1584, %v1542
      %v1586 = vpop.permute.xlu0 %1585
      %1587 = vset.pattern.permute.xlu0 0
      %1588 = vperm.xlu0 %1587, %v1543
      %v1589 = vpop.permute.xlu0 %1588
      %1590 = vset.pattern.permute.xlu0 0
      %1591 = vperm.xlu0 %1590, %v1544
      %v1592 = vpop.permute.xlu0 %1591
      %v1593 = vlaneseq
      %v1594 = vshrl.u32 %v1593, 7
      %v1595 = vsub.s32 %v1125, %v1594
      %v1596 = vrot.slane %v1547, %v1595
      %v1597 = vlaneseq
      %v1598 = vshrl.u32 %v1597, 7
      %v1599 = vsub.s32 %v1130, %v1598
      %v1600 = vrot.slane %v1550, %v1599
      %v1601 = vsel %vm1135, %v1600, %v1596
      %v1602 = vlaneseq
      %v1603 = vshrl.u32 %v1602, 7
      %v1604 = vsub.s32 %v1125, %v1603
      %v1605 = vrot.slane %v1553, %v1604
      %v1606 = vlaneseq
      %v1607 = vshrl.u32 %v1606, 7
      %v1608 = vsub.s32 %v1130, %v1607
      %v1609 = vrot.slane %v1556, %v1608
      %v1610 = vsel %vm1135, %v1609, %v1605
      %v1611 = vlaneseq
      %v1612 = vshrl.u32 %v1611, 7
      %v1613 = vsub.s32 %v1125, %v1612
      %v1614 = vrot.slane %v1559, %v1613
      %v1615 = vlaneseq
      %v1616 = vshrl.u32 %v1615, 7
      %v1617 = vsub.s32 %v1130, %v1616
      %v1618 = vrot.slane %v1562, %v1617
      %v1619 = vsel %vm1135, %v1618, %v1614
      %v1620 = vlaneseq
      %v1621 = vshrl.u32 %v1620, 7
      %v1622 = vsub.s32 %v1125, %v1621
      %v1623 = vrot.slane %v1565, %v1622
      %v1624 = vlaneseq
      %v1625 = vshrl.u32 %v1624, 7
      %v1626 = vsub.s32 %v1130, %v1625
      %v1627 = vrot.slane %v1568, %v1626
      %v1628 = vsel %vm1135, %v1627, %v1623
      %v1629 = vlaneseq
      %v1630 = vshrl.u32 %v1629, 7
      %v1631 = vsub.s32 %v1125, %v1630
      %v1632 = vrot.slane %v1571, %v1631
      %v1633 = vlaneseq
      %v1634 = vshrl.u32 %v1633, 7
      %v1635 = vsub.s32 %v1130, %v1634
      %v1636 = vrot.slane %v1574, %v1635
      %v1637 = vsel %vm1135, %v1636, %v1632
      %v1638 = vlaneseq
      %v1639 = vshrl.u32 %v1638, 7
      %v1640 = vsub.s32 %v1125, %v1639
      %v1641 = vrot.slane %v1577, %v1640
      %v1642 = vlaneseq
      %v1643 = vshrl.u32 %v1642, 7
      %v1644 = vsub.s32 %v1130, %v1643
      %v1645 = vrot.slane %v1580, %v1644
      %v1646 = vsel %vm1135, %v1645, %v1641
      %v1647 = vlaneseq
      %v1648 = vshrl.u32 %v1647, 7
      %v1649 = vsub.s32 %v1125, %v1648
      %v1650 = vrot.slane %v1583, %v1649
      %v1651 = vlaneseq
      %v1652 = vshrl.u32 %v1651, 7
      %v1653 = vsub.s32 %v1130, %v1652
      %v1654 = vrot.slane %v1586, %v1653
      %v1655 = vsel %vm1135, %v1654, %v1650
      %v1656 = vlaneseq
      %v1657 = vshrl.u32 %v1656, 7
      %v1658 = vsub.s32 %v1125, %v1657
      %v1659 = vrot.slane %v1589, %v1658
      %v1660 = vlaneseq
      %v1661 = vshrl.u32 %v1660, 7
      %v1662 = vsub.s32 %v1130, %v1661
      %v1663 = vrot.slane %v1592, %v1662
      %v1664 = vsel %vm1135, %v1663, %v1659
      %v1665 = vsel %vm1200, %v1610, %v1601
      %v1666 = vsel %vm1202, %v1619, %v1665
      %v1667 = vsel %vm1204, %v1628, %v1666
      %v1668 = vsel %vm1206, %v1637, %v1667
      %v1669 = vsel %vm1208, %v1646, %v1668
      %v1670 = vsel %vm1210, %v1655, %v1669
      %v1671 = vsel %vm1212, %v1664, %v1670
      %v1672 = vpack.c.b16 %v1671, %v1671
      %v1674 = vsel %vm1215, %v1672, 0
      %vm1676 = vcmask 1045504
      %v1677 = vsel %vm1676, %v823, 0
      %1679 = vmatprep.subr.bf16.mxu0 0
      %1680 = vmatpush1.bf16.msra.mxu0 0
      %1681 = vmatprep.subr.bf16.mxu0 0
      %1682 = vmatpush1.bf16.msra.mxu0 0
      %1683 = vmatprep.subr.bf16.mxu0 0
      %1684 = vmatpush1.bf16.msra.mxu0 0
      %1685 = vmatprep.subr.bf16.mxu0 0
      %1686 = vmatpush1.bf16.msra.mxu0 0
      %1687 = vmatprep.subr.bf16.mxu0 0
      %1688 = vmatpush1.bf16.msra.mxu0 0
      %1689 = vmatprep.subr.bf16.mxu0 0
      %1690 = vmatpush1.bf16.msra.mxu0 0
      %1691 = vmatprep.subr.bf16.mxu0 0
      %1692 = vmatpush1.bf16.msra.mxu0 0
      %1693 = vmatprep.subr.bf16.mxu0 0
      %1694 = vmatpush1.bf16.msra.mxu0 %v1677
      %1695 = vmatprep.subr.bf16.mxu0 0
      %1696 = vmatpush2.bf16.msra.mxu0 0
      %1697 = vmatprep.subr.bf16.mxu0 0
      %1698 = vmatpush2.bf16.msra.mxu0 0
      %1699 = vmatprep.subr.bf16.mxu0 0
      %1700 = vmatpush2.bf16.msra.mxu0 0
      %1701 = vmatprep.subr.bf16.mxu0 0
      %1702 = vmatpush2.bf16.msra.mxu0 0
      %1703 = vmatprep.subr.bf16.mxu0 0
      %1704 = vmatpush2.bf16.msra.mxu0 0
      %1705 = vmatprep.subr.bf16.mxu0 0
      %1706 = vmatpush2.bf16.msra.mxu0 0
      %1707 = vmatprep.subr.bf16.mxu0 0
      %1708 = vmatpush2.bf16.msra.mxu0 0
      %1709 = vmatprep.subr.bf16.mxu0 0
      %1710 = vmatpush2.bf16.msra.mxu0 0
      %1711 = vmatprep.mubr.bf16.mxu0 0
      %1712 = vmatmul.mubr.bf16.gmra.mxu0 %v1674
      %v1713 = vpop.f32.mrf.mxu0
      %v1714 = vadd.f32 0.0, %v1713
      %v1715 = vpop.f32.mrf.mxu0
      %v1716 = vpop.f32.mrf.mxu0
      %v1717 = vpop.f32.mrf.mxu0
      %1718 = vdwg.mxu0
      %v1719 = vpack.c.bf16 %v756, %v756
      %v1721 = vsel %vm638, %v1719, 0
      %1723 = vmatprep.subr.bf16.mxu0 0
      %1724 = vmatpush1.bf16.msra.mxu0 0
      %1725 = vmatprep.subr.bf16.mxu0 0
      %1726 = vmatpush1.bf16.msra.mxu0 0
      %1727 = vmatprep.subr.bf16.mxu0 0
      %1728 = vmatpush1.bf16.msra.mxu0 0
      %1729 = vmatprep.subr.bf16.mxu0 0
      %1730 = vmatpush1.bf16.msra.mxu0 0
      %1731 = vmatprep.subr.bf16.mxu0 0
      %1732 = vmatpush1.bf16.msra.mxu0 %v843
      %1733 = vmatprep.subr.bf16.mxu0 0
      %1734 = vmatpush1.bf16.msra.mxu0 %v842
      %1735 = vmatprep.subr.bf16.mxu0 0
      %1736 = vmatpush1.bf16.msra.mxu0 %v841
      %1737 = vmatprep.subr.bf16.mxu0 0
      %1738 = vmatpush1.bf16.msra.mxu0 %v840
      %1739 = vmatprep.subr.bf16.mxu0 0
      %1740 = vmatpush2.bf16.msra.mxu0 0
      %1741 = vmatprep.subr.bf16.mxu0 0
      %1742 = vmatpush2.bf16.msra.mxu0 0
      %1743 = vmatprep.subr.bf16.mxu0 0
      %1744 = vmatpush2.bf16.msra.mxu0 0
      %1745 = vmatprep.subr.bf16.mxu0 0
      %1746 = vmatpush2.bf16.msra.mxu0 0
      %1747 = vmatprep.subr.bf16.mxu0 0
      %1748 = vmatpush2.bf16.msra.mxu0 0
      %1749 = vmatprep.subr.bf16.mxu0 0
      %1750 = vmatpush2.bf16.msra.mxu0 0
      %1751 = vmatprep.subr.bf16.mxu0 0
      %1752 = vmatpush2.bf16.msra.mxu0 0
      %1753 = vmatprep.subr.bf16.mxu0 0
      %1754 = vmatpush2.bf16.msra.mxu0 0
      %1755 = vmatprep.mubr.bf16.mxu0 0
      %1756 = vmatmul.mubr.bf16.gmra.mxu0 %v1721
      %v1757 = vpop.f32.mrf.mxu0
      %v1758 = vadd.f32 0.0, %v1757
      %v1759 = vpop.f32.mrf.mxu0
      %v1760 = vpop.f32.mrf.mxu0
      %v1761 = vpop.f32.mrf.mxu0
      %1762 = vdwg.mxu0
      %v1763 = vadd.f32 %v945, %v1758
      %v1764 = vadd.f32 %v949, %v1758
      %v1765 = vadd.f32 %v953, %v1758
      %v1766 = vadd.f32 %v957, %v1758
      %v1767 = vadd.f32 %v961, %v1758
      %v1768 = vadd.f32 %v965, %v1758
      %v1769 = vadd.f32 %v969, %v1758
      %v1770 = vadd.f32 %v973, %v1758
      %v1771 = vadd.f32 %v1763, %v1002
      %v1772 = vadd.f32 %v1764, %v1002
      %v1773 = vadd.f32 %v1765, %v1002
      %v1774 = vadd.f32 %v1766, %v1002
      %v1775 = vadd.f32 %v1767, %v1002
      %v1776 = vadd.f32 %v1768, %v1002
      %v1777 = vadd.f32 %v1769, %v1002
      %v1778 = vadd.f32 %v1770, %v1002
      %v1779 = vtanh.pop %v1771
      %v1780 = vtanh.pop %v1772
      %v1781 = vtanh.pop %v1773
      %v1782 = vtanh.pop %v1774
      %v1783 = vtanh.pop %v1775
      %v1784 = vtanh.pop %v1776
      %v1785 = vtanh.pop %v1777
      %v1786 = vtanh.pop %v1778
      %v1787 = vmul.f32 %v1779, %v1040
      %v1788 = vmul.f32 %v1780, %v1040
      %v1789 = vmul.f32 %v1781, %v1040
      %v1790 = vmul.f32 %v1782, %v1040
      %v1791 = vmul.f32 %v1783, %v1040
      %v1792 = vmul.f32 %v1784, %v1040
      %v1793 = vmul.f32 %v1785, %v1040
      %v1794 = vmul.f32 %v1786, %v1040
      %v1795 = vsel %vm1062, %v1787, 0.0
      %1796 = vadd.xlane.f32.xlu0 %v1795
      %v1797 = vpop.xlane.xlu0 %1796
      %v1798 = vsel %vm1062, %v1788, 0.0
      %1799 = vadd.xlane.f32.xlu0 %v1798
      %v1800 = vpop.xlane.xlu0 %1799
      %v1801 = vsel %vm1062, %v1789, 0.0
      %1802 = vadd.xlane.f32.xlu0 %v1801
      %v1803 = vpop.xlane.xlu0 %1802
      %v1804 = vsel %vm1062, %v1790, 0.0
      %1805 = vadd.xlane.f32.xlu0 %v1804
      %v1806 = vpop.xlane.xlu0 %1805
      %v1807 = vsel %vm1062, %v1791, 0.0
      %1808 = vadd.xlane.f32.xlu0 %v1807
      %v1809 = vpop.xlane.xlu0 %1808
      %v1810 = vsel %vm1062, %v1792, 0.0
      %1811 = vadd.xlane.f32.xlu0 %v1810
      %v1812 = vpop.xlane.xlu0 %1811
      %v1813 = vsel %vm1062, %v1793, 0.0
      %1814 = vadd.xlane.f32.xlu0 %v1813
      %v1815 = vpop.xlane.xlu0 %1814
      %v1816 = vsel %vm1062, %v1794, 0.0
      %1817 = vadd.xlane.f32.xlu0 %v1816
      %v1818 = vpop.xlane.xlu0 %1817
      %v1827 = vlaneseq
      %v1828 = vshrl.u32 %v1827, 7
      %v1829 = vsub.s32 %v1125, %v1828
      %v1830 = vrot.slane %v1797, %v1829
      %v1831 = vlaneseq
      %v1832 = vshrl.u32 %v1831, 7
      %v1833 = vsub.s32 %v1125, %v1832
      %v1834 = vrot.slane %v1800, %v1833
      %v1835 = vlaneseq
      %v1836 = vshrl.u32 %v1835, 7
      %v1837 = vsub.s32 %v1125, %v1836
      %v1838 = vrot.slane %v1803, %v1837
      %v1839 = vlaneseq
      %v1840 = vshrl.u32 %v1839, 7
      %v1841 = vsub.s32 %v1125, %v1840
      %v1842 = vrot.slane %v1806, %v1841
      %v1843 = vlaneseq
      %v1844 = vshrl.u32 %v1843, 7
      %v1845 = vsub.s32 %v1125, %v1844
      %v1846 = vrot.slane %v1809, %v1845
      %v1847 = vlaneseq
      %v1848 = vshrl.u32 %v1847, 7
      %v1849 = vsub.s32 %v1125, %v1848
      %v1850 = vrot.slane %v1812, %v1849
      %v1851 = vlaneseq
      %v1852 = vshrl.u32 %v1851, 7
      %v1853 = vsub.s32 %v1125, %v1852
      %v1854 = vrot.slane %v1815, %v1853
      %v1855 = vlaneseq
      %v1856 = vshrl.u32 %v1855, 7
      %v1857 = vsub.s32 %v1125, %v1856
      %v1858 = vrot.slane %v1818, %v1857
      %v1859 = vsel %vm1200, %v1834, %v1830
      %v1860 = vsel %vm1202, %v1838, %v1859
      %v1861 = vsel %vm1204, %v1842, %v1860
      %v1862 = vsel %vm1206, %v1846, %v1861
      %v1863 = vsel %vm1208, %v1850, %v1862
      %v1864 = vsel %vm1210, %v1854, %v1863
      %v1865 = vsel %vm1212, %v1858, %v1864
      %vm1867 = vcmask 31744
      %v1868 = vsel %vm1867, %v1865, -inf
      %1869 = vmax.xlane.f32.xlu0 %v1868
      %v1870 = vpop.xlane.xlu0 %1869
      %v1872 = vlaneseq
      %v1873 = vshrl.u32 %v1872, 7
      %v1874 = vsub.s32 0, %v1873
      %v1875 = vrot.slane %v1870, %v1874
      %v1876 = vlaneseq
      %v1877 = vshrl.u32 %v1876, 7
      %v1878 = vsub.s32 1, %v1877
      %v1879 = vrot.slane %v1870, %v1878
      %v1880 = vlaneseq
      %v1881 = vshrl.u32 %v1880, 7
      %v1882 = vsub.s32 2, %v1881
      %v1883 = vrot.slane %v1870, %v1882
      %v1884 = vlaneseq
      %v1885 = vshrl.u32 %v1884, 7
      %v1886 = vsub.s32 3, %v1885
      %v1887 = vrot.slane %v1870, %v1886
      %v1888 = vlaneseq
      %v1889 = vshrl.u32 %v1888, 7
      %v1890 = vsub.s32 4, %v1889
      %v1891 = vrot.slane %v1870, %v1890
      %v1892 = vlaneseq
      %v1893 = vshrl.u32 %v1892, 7
      %v1894 = vsub.s32 5, %v1893
      %v1895 = vrot.slane %v1870, %v1894
      %v1896 = vlaneseq
      %v1897 = vshrl.u32 %v1896, 7
      %v1898 = vsub.s32 6, %v1897
      %v1899 = vrot.slane %v1870, %v1898
      %v1900 = vlaneseq
      %v1901 = vshrl.u32 %v1900, 7
      %v1902 = vsub.s32 7, %v1901
      %v1903 = vrot.slane %v1870, %v1902
      %v1912 = vsub.f32 %v1797, %v1875
      %v1913 = vsub.f32 %v1800, %v1879
      %v1914 = vsub.f32 %v1803, %v1883
      %v1915 = vsub.f32 %v1806, %v1887
      %v1916 = vsub.f32 %v1809, %v1891
      %v1917 = vsub.f32 %v1812, %v1895
      %v1918 = vsub.f32 %v1815, %v1899
      %v1919 = vsub.f32 %v1818, %v1903
      %v1920 = vmul.f32 %v1912, 1.442695
      %v1921 = vpow.pop %v1920
      %v1922 = vmul.f32 %v1913, 1.442695
      %v1923 = vpow.pop %v1922
      %v1924 = vmul.f32 %v1914, 1.442695
      %v1925 = vpow.pop %v1924
      %v1926 = vmul.f32 %v1915, 1.442695
      %v1927 = vpow.pop %v1926
      %v1928 = vmul.f32 %v1916, 1.442695
      %v1929 = vpow.pop %v1928
      %v1930 = vmul.f32 %v1917, 1.442695
      %v1931 = vpow.pop %v1930
      %v1932 = vmul.f32 %v1918, 1.442695
      %v1933 = vpow.pop %v1932
      %v1934 = vmul.f32 %v1919, 1.442695
      %v1935 = vpow.pop %v1934
      %1944 = vset.pattern.permute.xlu0 0
      %1945 = vperm.xlu0 %1944, %v1921
      %v1946 = vpop.permute.xlu0 %1945
      %1947 = vset.pattern.permute.xlu0 0
      %1948 = vperm.xlu0 %1947, %v1923
      %v1949 = vpop.permute.xlu0 %1948
      %1950 = vset.pattern.permute.xlu0 0
      %1951 = vperm.xlu0 %1950, %v1925
      %v1952 = vpop.permute.xlu0 %1951
      %1953 = vset.pattern.permute.xlu0 0
      %1954 = vperm.xlu0 %1953, %v1927
      %v1955 = vpop.permute.xlu0 %1954
      %1956 = vset.pattern.permute.xlu0 0
      %1957 = vperm.xlu0 %1956, %v1929
      %v1958 = vpop.permute.xlu0 %1957
      %1959 = vset.pattern.permute.xlu0 0
      %1960 = vperm.xlu0 %1959, %v1931
      %v1961 = vpop.permute.xlu0 %1960
      %1962 = vset.pattern.permute.xlu0 0
      %1963 = vperm.xlu0 %1962, %v1933
      %v1964 = vpop.permute.xlu0 %1963
      %1965 = vset.pattern.permute.xlu0 0
      %1966 = vperm.xlu0 %1965, %v1935
      %v1967 = vpop.permute.xlu0 %1966
      %v1968 = vlaneseq
      %v1969 = vshrl.u32 %v1968, 7
      %v1970 = vsub.s32 %v1125, %v1969
      %v1971 = vrot.slane %v1946, %v1970
      %v1972 = vlaneseq
      %v1973 = vshrl.u32 %v1972, 7
      %v1974 = vsub.s32 %v1125, %v1973
      %v1975 = vrot.slane %v1949, %v1974
      %v1976 = vlaneseq
      %v1977 = vshrl.u32 %v1976, 7
      %v1978 = vsub.s32 %v1125, %v1977
      %v1979 = vrot.slane %v1952, %v1978
      %v1980 = vlaneseq
      %v1981 = vshrl.u32 %v1980, 7
      %v1982 = vsub.s32 %v1125, %v1981
      %v1983 = vrot.slane %v1955, %v1982
      %v1984 = vlaneseq
      %v1985 = vshrl.u32 %v1984, 7
      %v1986 = vsub.s32 %v1125, %v1985
      %v1987 = vrot.slane %v1958, %v1986
      %v1988 = vlaneseq
      %v1989 = vshrl.u32 %v1988, 7
      %v1990 = vsub.s32 %v1125, %v1989
      %v1991 = vrot.slane %v1961, %v1990
      %v1992 = vlaneseq
      %v1993 = vshrl.u32 %v1992, 7
      %v1994 = vsub.s32 %v1125, %v1993
      %v1995 = vrot.slane %v1964, %v1994
      %v1996 = vlaneseq
      %v1997 = vshrl.u32 %v1996, 7
      %v1998 = vsub.s32 %v1125, %v1997
      %v1999 = vrot.slane %v1967, %v1998
      %v2000 = vsel %vm1200, %v1975, %v1971
      %v2001 = vsel %vm1202, %v1979, %v2000
      %v2002 = vsel %vm1204, %v1983, %v2001
      %v2003 = vsel %vm1206, %v1987, %v2002
      %v2004 = vsel %vm1208, %v1991, %v2003
      %v2005 = vsel %vm1210, %v1995, %v2004
      %v2006 = vsel %vm1212, %v1999, %v2005
      %v2008 = vsel %vm1867, %v2006, 0.0
      %2009 = vadd.xlane.f32.xlu0 %v2008
      %v2010 = vpop.xlane.xlu0 %2009
      %v2011 = vrcp.pop %v2010
      %v2013 = vlaneseq
      %v2014 = vshrl.u32 %v2013, 7
      %v2015 = vsub.s32 0, %v2014
      %v2016 = vrot.slane %v2011, %v2015
      %v2017 = vlaneseq
      %v2018 = vshrl.u32 %v2017, 7
      %v2019 = vsub.s32 1, %v2018
      %v2020 = vrot.slane %v2011, %v2019
      %v2021 = vlaneseq
      %v2022 = vshrl.u32 %v2021, 7
      %v2023 = vsub.s32 2, %v2022
      %v2024 = vrot.slane %v2011, %v2023
      %v2025 = vlaneseq
      %v2026 = vshrl.u32 %v2025, 7
      %v2027 = vsub.s32 3, %v2026
      %v2028 = vrot.slane %v2011, %v2027
      %v2029 = vlaneseq
      %v2030 = vshrl.u32 %v2029, 7
      %v2031 = vsub.s32 4, %v2030
      %v2032 = vrot.slane %v2011, %v2031
      %v2033 = vlaneseq
      %v2034 = vshrl.u32 %v2033, 7
      %v2035 = vsub.s32 5, %v2034
      %v2036 = vrot.slane %v2011, %v2035
      %v2037 = vlaneseq
      %v2038 = vshrl.u32 %v2037, 7
      %v2039 = vsub.s32 6, %v2038
      %v2040 = vrot.slane %v2011, %v2039
      %v2041 = vlaneseq
      %v2042 = vshrl.u32 %v2041, 7
      %v2043 = vsub.s32 7, %v2042
      %v2044 = vrot.slane %v2011, %v2043
      %v2053 = vmul.f32 %v1921, %v2016
      %v2054 = vmul.f32 %v1923, %v2020
      %v2055 = vmul.f32 %v1925, %v2024
      %v2056 = vmul.f32 %v1927, %v2028
      %v2057 = vmul.f32 %v1929, %v2032
      %v2058 = vmul.f32 %v1931, %v2036
      %v2059 = vmul.f32 %v1933, %v2040
      %v2060 = vmul.f32 %v1935, %v2044
      %v2061 = vpack.c.bf16 %v2053, %v2053
      %v2062 = vpack.c.bf16 %v2054, %v2054
      %v2063 = vpack.c.bf16 %v2055, %v2055
      %v2064 = vpack.c.bf16 %v2056, %v2056
      %v2065 = vpack.c.bf16 %v2057, %v2057
      %v2066 = vpack.c.bf16 %v2058, %v2058
      %v2067 = vpack.c.bf16 %v2059, %v2059
      %v2068 = vpack.c.bf16 %v2060, %v2060
      %v2077 = vunpack.c.l.b16 %v2061
      %v2078 = vunpack.c.l.b16 %v2062
      %v2079 = vunpack.c.l.b16 %v2063
      %v2080 = vunpack.c.l.b16 %v2064
      %v2081 = vunpack.c.l.b16 %v2065
      %v2082 = vunpack.c.l.b16 %v2066
      %v2083 = vunpack.c.l.b16 %v2067
      %v2084 = vunpack.c.l.b16 %v2068
      %2085 = vset.pattern.permute.xlu0 0
      %2086 = vperm.xlu0 %2085, %v2077
      %v2087 = vpop.permute.xlu0 %2086
      %2088 = vset.pattern.permute.xlu0 0
      %2089 = vperm.xlu0 %2088, %v2078
      %v2090 = vpop.permute.xlu0 %2089
      %2091 = vset.pattern.permute.xlu0 0
      %2092 = vperm.xlu0 %2091, %v2079
      %v2093 = vpop.permute.xlu0 %2092
      %2094 = vset.pattern.permute.xlu0 0
      %2095 = vperm.xlu0 %2094, %v2080
      %v2096 = vpop.permute.xlu0 %2095
      %2097 = vset.pattern.permute.xlu0 0
      %2098 = vperm.xlu0 %2097, %v2081
      %v2099 = vpop.permute.xlu0 %2098
      %2100 = vset.pattern.permute.xlu0 0
      %2101 = vperm.xlu0 %2100, %v2082
      %v2102 = vpop.permute.xlu0 %2101
      %2103 = vset.pattern.permute.xlu0 0
      %2104 = vperm.xlu0 %2103, %v2083
      %v2105 = vpop.permute.xlu0 %2104
      %2106 = vset.pattern.permute.xlu0 0
      %2107 = vperm.xlu0 %2106, %v2084
      %v2108 = vpop.permute.xlu0 %2107
      %v2109 = vlaneseq
      %v2110 = vshrl.u32 %v2109, 7
      %v2111 = vsub.s32 %v1125, %v2110
      %v2112 = vrot.slane %v2087, %v2111
      %v2113 = vlaneseq
      %v2114 = vshrl.u32 %v2113, 7
      %v2115 = vsub.s32 %v1125, %v2114
      %v2116 = vrot.slane %v2090, %v2115
      %v2117 = vlaneseq
      %v2118 = vshrl.u32 %v2117, 7
      %v2119 = vsub.s32 %v1125, %v2118
      %v2120 = vrot.slane %v2093, %v2119
      %v2121 = vlaneseq
      %v2122 = vshrl.u32 %v2121, 7
      %v2123 = vsub.s32 %v1125, %v2122
      %v2124 = vrot.slane %v2096, %v2123
      %v2125 = vlaneseq
      %v2126 = vshrl.u32 %v2125, 7
      %v2127 = vsub.s32 %v1125, %v2126
      %v2128 = vrot.slane %v2099, %v2127
      %v2129 = vlaneseq
      %v2130 = vshrl.u32 %v2129, 7
      %v2131 = vsub.s32 %v1125, %v2130
      %v2132 = vrot.slane %v2102, %v2131
      %v2133 = vlaneseq
      %v2134 = vshrl.u32 %v2133, 7
      %v2135 = vsub.s32 %v1125, %v2134
      %v2136 = vrot.slane %v2105, %v2135
      %v2137 = vlaneseq
      %v2138 = vshrl.u32 %v2137, 7
      %v2139 = vsub.s32 %v1125, %v2138
      %v2140 = vrot.slane %v2108, %v2139
      %v2141 = vsel %vm1200, %v2116, %v2112
      %v2142 = vsel %vm1202, %v2120, %v2141
      %v2143 = vsel %vm1204, %v2124, %v2142
      %v2144 = vsel %vm1206, %v2128, %v2143
      %v2145 = vsel %vm1208, %v2132, %v2144
      %v2146 = vsel %vm1210, %v2136, %v2145
      %v2147 = vsel %vm1212, %v2140, %v2146
      %v2148 = vpack.c.b16 %v2147, %v2147
      %v2150 = vsel %vm1867, %v2148, 0
      %vm2152 = vcmask 1041408
      %v2153 = vsel %vm2152, %v1719, 0
      %2155 = vmatprep.subr.bf16.mxu0 0
      %2156 = vmatpush1.bf16.msra.mxu0 0
      %2157 = vmatprep.subr.bf16.mxu0 0
      %2158 = vmatpush1.bf16.msra.mxu0 0
      %2159 = vmatprep.subr.bf16.mxu0 0
      %2160 = vmatpush1.bf16.msra.mxu0 0
      %2161 = vmatprep.subr.bf16.mxu0 0
      %2162 = vmatpush1.bf16.msra.mxu0 0
      %2163 = vmatprep.subr.bf16.mxu0 0
      %2164 = vmatpush1.bf16.msra.mxu0 0
      %2165 = vmatprep.subr.bf16.mxu0 0
      %2166 = vmatpush1.bf16.msra.mxu0 0
      %2167 = vmatprep.subr.bf16.mxu0 0
      %2168 = vmatpush1.bf16.msra.mxu0 0
      %2169 = vmatprep.subr.bf16.mxu0 0
      %2170 = vmatpush1.bf16.msra.mxu0 %v2153
      %2171 = vmatprep.subr.bf16.mxu0 0
      %2172 = vmatpush2.bf16.msra.mxu0 0
      %2173 = vmatprep.subr.bf16.mxu0 0
      %2174 = vmatpush2.bf16.msra.mxu0 0
      %2175 = vmatprep.subr.bf16.mxu0 0
      %2176 = vmatpush2.bf16.msra.mxu0 0
      %2177 = vmatprep.subr.bf16.mxu0 0
      %2178 = vmatpush2.bf16.msra.mxu0 0
      %2179 = vmatprep.subr.bf16.mxu0 0
      %2180 = vmatpush2.bf16.msra.mxu0 0
      %2181 = vmatprep.subr.bf16.mxu0 0
      %2182 = vmatpush2.bf16.msra.mxu0 0
      %2183 = vmatprep.subr.bf16.mxu0 0
      %2184 = vmatpush2.bf16.msra.mxu0 0
      %2185 = vmatprep.subr.bf16.mxu0 0
      %2186 = vmatpush2.bf16.msra.mxu0 0
      %2187 = vmatprep.mubr.bf16.mxu0 0
      %2188 = vmatmul.mubr.bf16.gmra.mxu0 %v2150
      %v2189 = vpop.f32.mrf.mxu0
      %v2190 = vadd.f32 0.0, %v2189
      %v2191 = vpop.f32.mrf.mxu0
      %v2192 = vpop.f32.mrf.mxu0
      %v2193 = vpop.f32.mrf.mxu0
      %2194 = vdwg.mxu0
      %v2195 = vpack.c.bf16 %v1714, %v1714
      %v2196 = vld [vmem:[%s11] sm:$0xf]
      %v2197 = vld [vmem:[%s11 + $0x4] sm:$0xf]
      %v2198 = vld [vmem:[%s11 + $0x8] sm:$0xf]
      %v2199 = vld [vmem:[%s11 + $0xc] sm:$0xf]
      %v2200 = vld [vmem:[%s11 + $0x10] sm:$0xf]
      %v2201 = vld [vmem:[%s11 + $0x14] sm:$0xf]
      %v2202 = vld [vmem:[%s11 + $0x18] sm:$0xf]
      %v2203 = vld [vmem:[%s11 + $0x1c] sm:$0xf]
      %v2204 = vpack.c.bf16 %v2190, %v2190
      %v2205 = vld [vmem:[%s12] sm:$0xf]
      %v2206 = vld [vmem:[%s12 + $0x4] sm:$0xf]
      %v2207 = vld [vmem:[%s12 + $0x8] sm:$0xf]
      %v2208 = vld [vmem:[%s12 + $0xc] sm:$0xf]
      %v2209 = vld [vmem:[%s12 + $0x10] sm:$0xf]
      %v2210 = vld [vmem:[%s12 + $0x14] sm:$0xf]
      %v2211 = vld [vmem:[%s12 + $0x18] sm:$0xf]
      %v2212 = vld [vmem:[%s12 + $0x1c] sm:$0xf]
      %v2221 = vunpack.c.l.b16 %v2205
      %v2222 = vunpack.c.l.b16 %v2206
      %v2223 = vunpack.c.l.b16 %v2207
      %v2224 = vunpack.c.l.b16 %v2208
      %v2225 = vunpack.c.l.b16 %v2209
      %v2226 = vunpack.c.l.b16 %v2210
      %v2227 = vunpack.c.l.b16 %v2211
      %v2228 = vunpack.c.l.b16 %v2212
      %v2229 = vpack.c.b16 %v2222, %v2221
      %v2230 = vpack.c.b16 %v2224, %v2223
      %v2231 = vpack.c.b16 %v2226, %v2225
      %v2232 = vpack.c.b16 %v2228, %v2227
      %v2238 = vsel %vm638, %v2204, 0
      %2240 = vmatprep.subr.bf16.mxu0 0
      %2241 = vmatpush1.bf16.msra.mxu0 0
      %2242 = vmatprep.subr.bf16.mxu0 0
      %2243 = vmatpush1.bf16.msra.mxu0 0
      %2244 = vmatprep.subr.bf16.mxu0 0
      %2245 = vmatpush1.bf16.msra.mxu0 0
      %2246 = vmatprep.subr.bf16.mxu0 0
      %2247 = vmatpush1.bf16.msra.mxu0 0
      %2248 = vmatprep.subr.bf16.mxu0 0
      %2249 = vmatpush1.bf16.msra.mxu0 %v2232
      %2250 = vmatprep.subr.bf16.mxu0 0
      %2251 = vmatpush1.bf16.msra.mxu0 %v2231
      %2252 = vmatprep.subr.bf16.mxu0 0
      %2253 = vmatpush1.bf16.msra.mxu0 %v2230
      %2254 = vmatprep.subr.bf16.mxu0 0
      %2255 = vmatpush1.bf16.msra.mxu0 %v2229
      %2256 = vmatprep.subr.bf16.mxu0 0
      %2257 = vmatpush2.bf16.msra.mxu0 0
      %2258 = vmatprep.subr.bf16.mxu0 0
      %2259 = vmatpush2.bf16.msra.mxu0 0
      %2260 = vmatprep.subr.bf16.mxu0 0
      %2261 = vmatpush2.bf16.msra.mxu0 0
      %2262 = vmatprep.subr.bf16.mxu0 0
      %2263 = vmatpush2.bf16.msra.mxu0 0
      %2264 = vmatprep.subr.bf16.mxu0 0
      %2265 = vmatpush2.bf16.msra.mxu0 0
      %2266 = vmatprep.subr.bf16.mxu0 0
      %2267 = vmatpush2.bf16.msra.mxu0 0
      %2268 = vmatprep.subr.bf16.mxu0 0
      %2269 = vmatpush2.bf16.msra.mxu0 0
      %2270 = vmatprep.subr.bf16.mxu0 0
      %2271 = vmatpush2.bf16.msra.mxu0 0
      %2272 = vmatprep.mubr.bf16.mxu0 0
      %2273 = vmatmul.mubr.bf16.gmra.mxu0 %v2238
      %v2274 = vpop.f32.mrf.mxu0
      %v2275 = vadd.f32 0.0, %v2274
      %v2276 = vpop.f32.mrf.mxu0
      %v2277 = vpop.f32.mrf.mxu0
      %v2278 = vpop.f32.mrf.mxu0
      %2279 = vdwg.mxu0
      %v2288 = vunpack.c.l.b16 %v2196
      %v2289 = vunpack.c.l.b16 %v2197
      %v2290 = vunpack.c.l.b16 %v2198
      %v2291 = vunpack.c.l.b16 %v2199
      %v2292 = vunpack.c.l.b16 %v2200
      %v2293 = vunpack.c.l.b16 %v2201
      %v2294 = vunpack.c.l.b16 %v2202
      %v2295 = vunpack.c.l.b16 %v2203
      %v2296 = vpack.c.b16 %v2289, %v2288
      %v2297 = vpack.c.b16 %v2291, %v2290
      %v2298 = vpack.c.b16 %v2293, %v2292
      %v2299 = vpack.c.b16 %v2295, %v2294
      %v2305 = vsel %vm638, %v2195, 0
      %2307 = vmatprep.subr.bf16.mxu0 0
      %2308 = vmatpush1.bf16.msra.mxu0 0
      %2309 = vmatprep.subr.bf16.mxu0 0
      %2310 = vmatpush1.bf16.msra.mxu0 0
      %2311 = vmatprep.subr.bf16.mxu0 0
      %2312 = vmatpush1.bf16.msra.mxu0 0
      %2313 = vmatprep.subr.bf16.mxu0 0
      %2314 = vmatpush1.bf16.msra.mxu0 0
      %2315 = vmatprep.subr.bf16.mxu0 0
      %2316 = vmatpush1.bf16.msra.mxu0 %v2299
      %2317 = vmatprep.subr.bf16.mxu0 0
      %2318 = vmatpush1.bf16.msra.mxu0 %v2298
      %2319 = vmatprep.subr.bf16.mxu0 0
      %2320 = vmatpush1.bf16.msra.mxu0 %v2297
      %2321 = vmatprep.subr.bf16.mxu0 0
      %2322 = vmatpush1.bf16.msra.mxu0 %v2296
      %2323 = vmatprep.subr.bf16.mxu0 0
      %2324 = vmatpush2.bf16.msra.mxu0 0
      %2325 = vmatprep.subr.bf16.mxu0 0
      %2326 = vmatpush2.bf16.msra.mxu0 0
      %2327 = vmatprep.subr.bf16.mxu0 0
      %2328 = vmatpush2.bf16.msra.mxu0 0
      %2329 = vmatprep.subr.bf16.mxu0 0
      %2330 = vmatpush2.bf16.msra.mxu0 0
      %2331 = vmatprep.subr.bf16.mxu0 0
      %2332 = vmatpush2.bf16.msra.mxu0 0
      %2333 = vmatprep.subr.bf16.mxu0 0
      %2334 = vmatpush2.bf16.msra.mxu0 0
      %2335 = vmatprep.subr.bf16.mxu0 0
      %2336 = vmatpush2.bf16.msra.mxu0 0
      %2337 = vmatprep.subr.bf16.mxu0 0
      %2338 = vmatpush2.bf16.msra.mxu0 0
      %2339 = vmatprep.mubr.bf16.mxu0 0
      %2340 = vmatmul.mubr.bf16.gmra.mxu0 %v2305
      %v2341 = vpop.f32.mrf.mxu0
      %v2342 = vadd.f32 %v2275, %v2341
      %v2343 = vpop.f32.mrf.mxu0
      %v2344 = vpop.f32.mrf.mxu0
      %v2345 = vpop.f32.mrf.mxu0
      %2346 = vdwg.mxu0
      %v2347 = vld [vmem:[%s13] sm:$0xf]
      %v2348 = vld [vmem:[%s13 + $0x4] sm:$0xf]
      %v2351 = vunpack.c.l.b16 %v2347
      %v2352 = vunpack.c.l.b16 %v2348
      %v2353 = vpack.c.b16 %v2352, %v2351
      %2355 = vmatprep.subr.bf16.mxu0 0
      %2356 = vmatpush1.bf16.msra.mxu0 0
      %2357 = vmatprep.subr.bf16.mxu0 0
      %2358 = vmatpush1.bf16.msra.mxu0 0
      %2359 = vmatprep.subr.bf16.mxu0 0
      %2360 = vmatpush1.bf16.msra.mxu0 0
      %2361 = vmatprep.subr.bf16.mxu0 0
      %2362 = vmatpush1.bf16.msra.mxu0 0
      %2363 = vmatprep.subr.bf16.mxu0 0
      %2364 = vmatpush1.bf16.msra.mxu0 0
      %2365 = vmatprep.subr.bf16.mxu0 0
      %2366 = vmatpush1.bf16.msra.mxu0 0
      %2367 = vmatprep.subr.bf16.mxu0 0
      %2368 = vmatpush1.bf16.msra.mxu0 0
      %2369 = vmatprep.subr.bf16.mxu0 0
      %2370 = vmatpush1.bf16.msra.mxu0 %v2353
      %2371 = vmatprep.subr.bf16.mxu0 0
      %2372 = vmatpush2.bf16.msra.mxu0 0
      %2373 = vmatprep.subr.bf16.mxu0 0
      %2374 = vmatpush2.bf16.msra.mxu0 0
      %2375 = vmatprep.subr.bf16.mxu0 0
      %2376 = vmatpush2.bf16.msra.mxu0 0
      %2377 = vmatprep.subr.bf16.mxu0 0
      %2378 = vmatpush2.bf16.msra.mxu0 0
      %2379 = vmatprep.subr.bf16.mxu0 0
      %2380 = vmatpush2.bf16.msra.mxu0 0
      %2381 = vmatprep.subr.bf16.mxu0 0
      %2382 = vmatpush2.bf16.msra.mxu0 0
      %2383 = vmatprep.subr.bf16.mxu0 0
      %2384 = vmatpush2.bf16.msra.mxu0 0
      %2385 = vmatprep.subr.bf16.mxu0 0
      %2386 = vmatpush2.bf16.msra.mxu0 0
      %2387 = vmatprep.mubr.bf16.mxu0 0
      %2388 = vmatmul.mubr.bf16.gmra.mxu0 %v767
      %v2389 = vpop.f32.mrf.mxu0
      %v2390 = vadd.f32 0.0, %v2389
      %v2391 = vpop.f32.mrf.mxu0
      %v2392 = vpop.f32.mrf.mxu0
      %v2393 = vpop.f32.mrf.mxu0
      %2394 = vdwg.mxu0
      %v2395 = vadd.f32 %v2342, %v2390
      %vm2396 = vcmask 519168
      %2397 = vst.msk [vmem:[%s583] sm:$0xf] %vm2396, %v2195
      %2398 = vst.msk [vmem:[%s587] sm:$0xf] %vm2396, %v2204
      %v2399 = vpack.c.bf16 %v2395, %v2395
      %2400 = vst.msk [vmem:[%s591] sm:$0xf] %vm1062, %v2399
      %p2401 = scmp.lt.s32.totalorder %s28, 7
      %s2402 = scalar_select %p2401, %s28, 7
      %s2403 = smul.addr %s2402, 4
      %s2404 = scalar_lea.vmem %s14, %s2403
      %p2405 = scmp.lt.s32.totalorder %s28, 7
      %s2406 = scalar_select %p2405, %s28, 7
      %s2407 = smul.addr %s2406, 4
      %s2408 = scalar_lea.vmem %s15, %s2407
      %p2409 = scmp.lt.s32.totalorder %s28, 7
      %s2410 = scalar_select %p2409, %s28, 7
      %s2411 = smul.addr %s2410, 4
      %s2412 = scalar_lea.vmem %s16, %s2411
      // Predicated region
      $region77: #{decoder_forward.3} parent=75 // pred_check
        %p2413 = pneg %p360
      $region78: #{decoder_forward.3} parent=75 // pred_check_branch
        %2415 = sbr.rel (%p2413) target = $region80
      $region79: #{decoder_forward.3} parent=75 // pred_region
        _
      $region80: #{decoder_forward.3} parent=75 // pred_fallthru
        _
      // Predicated region
      $region81: #{decoder_forward.3} parent=75 // pred_check
        %p2416 = pneg %p386
      $region82: #{decoder_forward.3} parent=75 // pred_check_branch
        %2418 = sbr.rel (%p2416) target = $region84
      $region83: #{decoder_forward.3} parent=75 // pred_region
        _
      $region84: #{decoder_forward.3} parent=75 // pred_fallthru
        _
      // Predicated region
      $region85: #{decoder_forward.3} parent=75 // pred_check
        %p2419 = pneg %p412
      $region86: #{decoder_forward.3} parent=75 // pred_check_branch
        %2421 = sbr.rel (%p2419) target = $region88
      $region87: #{decoder_forward.3} parent=75 // pred_region
        _
      $region88: #{decoder_forward.3} parent=75 // pred_fallthru
        _
    $region76: #{decoder_forward.3} parent=5 // pred_fallthru
      _
    %p2422 = scmp.le.s32.totalorder 2, %s23
    // Predicated region
    $region89: #{decoder_forward.3} parent=5 // pred_check
      %p2423 = pneg %p2422
    $region90: #{decoder_forward.3} parent=5 // pred_check_branch
      %2425 = sbr.rel (%p2423) target = $region92
    $region91: #{decoder_forward.3} parent=5 // pred_region
      %s2426 = ssub.s32 %s23, 2
      // Predicated region
      $region93: #{decoder_forward.3} parent=91 // pred_check
        %p2427 = pneg %p366
      $region94: #{decoder_forward.3} parent=91 // pred_check_branch
        %2429 = sbr.rel (%p2427) target = $region96
      $region95: #{decoder_forward.3} parent=91 // pred_region
        %p2430 = scmp.lt.s32.totalorder %s29, 7
        %s2431 = scalar_select %p2430, %s29, 7
        %s2432 = smul.addr %s2431, 4
        %s2433 = scalar_lea.vmem %s14, %s2432
      $region96: #{decoder_forward.3} parent=91 // pred_fallthru
        _
      // Predicated region
      $region97: #{decoder_forward.3} parent=91 // pred_check
        %p2434 = pneg %p392
      $region98: #{decoder_forward.3} parent=91 // pred_check_branch
        %2436 = sbr.rel (%p2434) target = $region100
      $region99: #{decoder_forward.3} parent=91 // pred_region
        %p2437 = scmp.lt.s32.totalorder %s29, 7
        %s2438 = scalar_select %p2437, %s29, 7
        %s2439 = smul.addr %s2438, 4
        %s2440 = scalar_lea.vmem %s15, %s2439
      $region100: #{decoder_forward.3} parent=91 // pred_fallthru
        _
      // Predicated region
      $region101: #{decoder_forward.3} parent=91 // pred_check
        %p2441 = pneg %p418
      $region102: #{decoder_forward.3} parent=91 // pred_check_branch
        %2443 = sbr.rel (%p2441) target = $region104
      $region103: #{decoder_forward.3} parent=91 // pred_region
        %p2444 = scmp.lt.s32.totalorder %s29, 7
        %s2445 = scalar_select %p2444, %s29, 7
        %s2446 = smul.addr %s2445, 4
        %s2447 = scalar_lea.vmem %s16, %s2446
      $region104: #{decoder_forward.3} parent=91 // pred_fallthru
        _
    $region92: #{decoder_forward.3} parent=5 // pred_fallthru
      _
  $region6: #{decoder_forward.3} parent=0 // loop_footer
    %s27 = sadd.s32 1, %s23
  $region7: #{decoder_forward.3} parent=0 // loop_footer_branch
    %22 = sbr.rel target = $region3
  $region8: #{decoder_forward.3} parent=0 // loop_exit
    _

// kernel: decoder_forward.4
$region0: #{decoder_forward.4}
  #allocation0 [shape = 'u32[]', space=smem, size = 0x4, offset = 0x4, fixed_abs, tag = 'smem constant byte address 0x4 - core index']
  #allocation1 [shape = 'u32[144,128]{1,0:T(1,128)}', space=vmem, size = 0x12000, scoped, tag = 'internal scratch']
  %s0 = inlined_call_operand.vmem [shape: bf16[8,8,64], index: 0, kind: input, shape index: {}]
  %s1 = inlined_call_operand.vmem [shape: bf16[8,8,64], index: 1, kind: input, shape index: {}]
  %s2 = inlined_call_operand.vmem [shape: bf16[8,8,16], index: 2, kind: input, shape index: {}]
  %s3 = inlined_call_operand.vmem [shape: bf16[8,8,32], index: 3, kind: input, shape index: {}]
  %s4 = inlined_call_operand.vmem [shape: f32[6,8,128], index: 4, kind: input, shape index: {}]
  %s5 = inlined_call_operand.vmem [shape: f32[6,8,32], index: 5, kind: input, shape index: {}]
  %s6 = inlined_call_operand.vmem [shape: bf16[32,32], index: 6, kind: input, shape index: {}]
  %s7 = inlined_call_operand.vmem [shape: f32[1,32], index: 7, kind: input, shape index: {}]
  %s8 = inlined_call_operand.vmem [shape: f32[1,32], index: 8, kind: input, shape index: {}]
  %s9 = inlined_call_operand.vmem [shape: bf16[64,128], index: 9, kind: input, shape index: {}]
  %s10 = inlined_call_operand.vmem [shape: bf16[64,128], index: 10, kind: input, shape index: {}]
  %s11 = inlined_call_operand.vmem [shape: bf16[16,128], index: 11, kind: input, shape index: {}]
  %s12 = inlined_call_operand.vmem [shape: bf16[32,128], index: 12, kind: input, shape index: {}]
  %s13 = inlined_call_operand.vmem [shape: f32[1,128], index: 13, kind: input, shape index: {}]
  %s14 = inlined_call_operand.vmem [shape: bf16[32,32], index: 14, kind: input, shape index: {}]
  %s15 = inlined_call_operand.vmem [shape: bf16[64,32], index: 15, kind: input, shape index: {}]
  %s16 = inlined_call_operand.vmem [shape: bf16[64,32], index: 16, kind: input, shape index: {}]
  %s17 = inlined_call_operand.vmem [shape: bf16[16,32], index: 17, kind: input, shape index: {}]
  %s18 = inlined_call_operand.vmem [shape: f32[1,32], index: 18, kind: input, shape index: {}]
  %s19 = inlined_call_operand.vmem [shape: bf16[6,8,32], index: 19, kind: output, shape index: {}]
  %s20 = sld [smem:[#allocation0]]
  $region93: #{decoder_forward.4} parent=0
    _
  %s22 = ssub.s32 1, %s20
  %s23 = scalar_select 0, %s22, %s20
  // Predicated region
  $region2: #{decoder_forward.4} parent=0 // pred_check
    _
  $region3: #{decoder_forward.4} parent=0 // pred_check_branch
    %25 = sbr.rel (0) target = $region5
  $region4: #{decoder_forward.4} parent=0 // pred_region
    _
  $region5: #{decoder_forward.4} parent=0 // pred_fallthru
    _
  // Predicated region
  $region6: #{decoder_forward.4} parent=0 // pred_check
    _
  $region7: #{decoder_forward.4} parent=0 // pred_check_branch
    %27 = sbr.rel (0) target = $region9
  $region8: #{decoder_forward.4} parent=0 // pred_region
    _
  $region9: #{decoder_forward.4} parent=0 // pred_fallthru
    _
  // Predicated region
  $region10: #{decoder_forward.4} parent=0 // pred_check
    _
  $region11: #{decoder_forward.4} parent=0 // pred_check_branch
    %29 = sbr.rel (0) target = $region13
  $region12: #{decoder_forward.4} parent=0 // pred_region
    _
  $region13: #{decoder_forward.4} parent=0 // pred_fallthru
    _
  // Predicated region
  $region14: #{decoder_forward.4} parent=0 // pred_check
    _
  $region15: #{decoder_forward.4} parent=0 // pred_check_branch
    %31 = sbr.rel (0) target = $region17
  $region16: #{decoder_forward.4} parent=0 // pred_region
    _
  $region17: #{decoder_forward.4} parent=0 // pred_fallthru
    _
  // Predicated region
  $region18: #{decoder_forward.4} parent=0 // pred_check
    _
  $region19: #{decoder_forward.4} parent=0 // pred_check_branch
    %33 = sbr.rel (0) target = $region21
  $region20: #{decoder_forward.4} parent=0 // pred_region
    _
  $region21: #{decoder_forward.4} parent=0 // pred_fallthru
    _
  // Predicated region
  $region22: #{decoder_forward.4} parent=0 // pred_check
    _
  $region23: #{decoder_forward.4} parent=0 // pred_check_branch
    %35 = sbr.rel (0) target = $region25
  $region24: #{decoder_forward.4} parent=0 // pred_region
    _
  $region25: #{decoder_forward.4} parent=0 // pred_fallthru
    _
  // Predicated region
  $region26: #{decoder_forward.4} parent=0 // pred_check
    _
  $region27: #{decoder_forward.4} parent=0 // pred_check_branch
    %37 = sbr.rel (0) target = $region29
  $region28: #{decoder_forward.4} parent=0 // pred_region
    _
  $region29: #{decoder_forward.4} parent=0 // pred_fallthru
    _
  // Predicated region
  $region30: #{decoder_forward.4} parent=0 // pred_check
    _
  $region31: #{decoder_forward.4} parent=0 // pred_check_branch
    %39 = sbr.rel (0) target = $region33
  $region32: #{decoder_forward.4} parent=0 // pred_region
    _
  $region33: #{decoder_forward.4} parent=0 // pred_fallthru
    _
  // Predicated region
  $region34: #{decoder_forward.4} parent=0 // pred_check
    _
  $region35: #{decoder_forward.4} parent=0 // pred_check_branch
    %41 = sbr.rel (0) target = $region37
  $region36: #{decoder_forward.4} parent=0 // pred_region
    _
  $region37: #{decoder_forward.4} parent=0 // pred_fallthru
    _
  // Predicated region
  $region38: #{decoder_forward.4} parent=0 // pred_check
    _
  $region39: #{decoder_forward.4} parent=0 // pred_check_branch
    %43 = sbr.rel (0) target = $region41
  $region40: #{decoder_forward.4} parent=0 // pred_region
    _
  $region41: #{decoder_forward.4} parent=0 // pred_fallthru
    _
  // Predicated region
  $region42: #{decoder_forward.4} parent=0 // pred_check
    _
  $region43: #{decoder_forward.4} parent=0 // pred_check_branch
    %45 = sbr.rel (0) target = $region45
  $region44: #{decoder_forward.4} parent=0 // pred_region
    _
  $region45: #{decoder_forward.4} parent=0 // pred_fallthru
    _
  // Predicated region
  $region46: #{decoder_forward.4} parent=0 // pred_check
    _
  $region47: #{decoder_forward.4} parent=0 // pred_check_branch
    %47 = sbr.rel (0) target = $region49
  $region48: #{decoder_forward.4} parent=0 // pred_region
    _
  $region49: #{decoder_forward.4} parent=0 // pred_fallthru
    _
  // Predicated region
  $region50: #{decoder_forward.4} parent=0 // pred_check
    _
  $region51: #{decoder_forward.4} parent=0 // pred_check_branch
    %49 = sbr.rel (0) target = $region53
  $region52: #{decoder_forward.4} parent=0 // pred_region
    _
  $region53: #{decoder_forward.4} parent=0 // pred_fallthru
    _
  // Predicated region
  $region54: #{decoder_forward.4} parent=0 // pred_check
    _
  $region55: #{decoder_forward.4} parent=0 // pred_check_branch
    %51 = sbr.rel (0) target = $region57
  $region56: #{decoder_forward.4} parent=0 // pred_region
    _
  $region57: #{decoder_forward.4} parent=0 // pred_fallthru
    _
  // Predicated region
  $region58: #{decoder_forward.4} parent=0 // pred_check
    _
  $region59: #{decoder_forward.4} parent=0 // pred_check_branch
    %53 = sbr.rel (0) target = $region61
  $region60: #{decoder_forward.4} parent=0 // pred_region
    _
  $region61: #{decoder_forward.4} parent=0 // pred_fallthru
    _
  // Predicated region
  $region62: #{decoder_forward.4} parent=0 // pred_check
    _
  $region63: #{decoder_forward.4} parent=0 // pred_check_branch
    %55 = sbr.rel (0) target = $region65
  $region64: #{decoder_forward.4} parent=0 // pred_region
    _
  $region65: #{decoder_forward.4} parent=0 // pred_fallthru
    _
  // Predicated region
  $region66: #{decoder_forward.4} parent=0 // pred_check
    _
  $region67: #{decoder_forward.4} parent=0 // pred_check_branch
    %57 = sbr.rel (0) target = $region69
  $region68: #{decoder_forward.4} parent=0 // pred_region
    _
  $region69: #{decoder_forward.4} parent=0 // pred_fallthru
    _
  // Predicated region
  $region70: #{decoder_forward.4} parent=0 // pred_check
    _
  $region71: #{decoder_forward.4} parent=0 // pred_check_branch
    %59 = sbr.rel (0) target = $region73
  $region72: #{decoder_forward.4} parent=0 // pred_region
    _
  $region73: #{decoder_forward.4} parent=0 // pred_fallthru
    _
  // Predicated region
  $region74: #{decoder_forward.4} parent=0 // pred_check
    _
  $region75: #{decoder_forward.4} parent=0 // pred_check_branch
    %61 = sbr.rel (0) target = $region77
  $region76: #{decoder_forward.4} parent=0 // pred_region
    _
  $region77: #{decoder_forward.4} parent=0 // pred_fallthru
    _
  %v63 = vld [vmem:[%s0] sm:$0xf]
  %v64 = vld [vmem:[%s0 + $0x4] sm:$0xf]
  %v65 = vld [vmem:[%s0 + $0x8] sm:$0xf]
  %v66 = vld [vmem:[%s0 + $0xc] sm:$0xf]
  %v67 = vld [vmem:[%s0 + $0x10] sm:$0xf]
  %v68 = vld [vmem:[%s0 + $0x14] sm:$0xf]
  %v69 = vld [vmem:[%s0 + $0x18] sm:$0xf]
  %v70 = vld [vmem:[%s0 + $0x1c] sm:$0xf]
  %v71 = vld [vmem:[%s1] sm:$0xf]
  %v72 = vld [vmem:[%s1 + $0x4] sm:$0xf]
  %v73 = vld [vmem:[%s1 + $0x8] sm:$0xf]
  %v74 = vld [vmem:[%s1 + $0xc] sm:$0xf]
  %v75 = vld [vmem:[%s1 + $0x10] sm:$0xf]
  %v76 = vld [vmem:[%s1 + $0x14] sm:$0xf]
  %v77 = vld [vmem:[%s1 + $0x18] sm:$0xf]
  %v78 = vld [vmem:[%s1 + $0x1c] sm:$0xf]
  %v79 = vld [vmem:[%s2] sm:$0xf]
  %v80 = vld [vmem:[%s2 + $0x4] sm:$0xf]
  %v81 = vld [vmem:[%s2 + $0x8] sm:$0xf]
  %v82 = vld [vmem:[%s2 + $0xc] sm:$0xf]
  %v83 = vld [vmem:[%s2 + $0x10] sm:$0xf]
  %v84 = vld [vmem:[%s2 + $0x14] sm:$0xf]
  %v85 = vld [vmem:[%s2 + $0x18] sm:$0xf]
  %v86 = vld [vmem:[%s2 + $0x1c] sm:$0xf]
  %v87 = vld [vmem:[%s3] sm:$0xf]
  %v88 = vld [vmem:[%s3 + $0x4] sm:$0xf]
  %v89 = vld [vmem:[%s3 + $0x8] sm:$0xf]
  %v90 = vld [vmem:[%s3 + $0xc] sm:$0xf]
  %v91 = vld [vmem:[%s3 + $0x10] sm:$0xf]
  %v92 = vld [vmem:[%s3 + $0x14] sm:$0xf]
  %v93 = vld [vmem:[%s3 + $0x18] sm:$0xf]
  %v94 = vld [vmem:[%s3 + $0x1c] sm:$0xf]
  %v95 = vunpack.c.l.bf16 %v87
  %v96 = vunpack.c.l.bf16 %v88
  %v97 = vunpack.c.l.bf16 %v89
  %v98 = vunpack.c.l.bf16 %v90
  %v99 = vunpack.c.l.bf16 %v91
  %v100 = vunpack.c.l.bf16 %v92
  %v101 = vunpack.c.l.bf16 %v93
  %v102 = vunpack.c.l.bf16 %v94
  %v103 = vld [vmem:[%s7] sm:$0x1]
  %v104 = vld [vmem:[%s8] sm:$0x1]
  %v105 = vld [vmem:[%s13] sm:$0x1]
  %v106 = vld [vmem:[%s18] sm:$0x1]
  %v107 = vlaneseq
  %v108 = vand.u32 %v107, 127
  loop: start=0, step=1, limit=6
  $region78: #{decoder_forward.4} parent=0 // loop_pre_header
    _
  $region79: #{decoder_forward.4} parent=0 // loop_header
    %s110 = sphi 0, %s114
    %p111 = scmp.ge.s32.totalorder %s110, 6
    %v115 = vphi 0.0, %v1079
    %v116 = vphi 0.0, %v1073
  $region80: #{decoder_forward.4} parent=0 // loop_header_branch
    %113 = sbr.rel (%p111) target = $region84
  $region81: #{decoder_forward.4} parent=0 // loop_body
    %v117 = vpack.c.bf16 %v115, %v115
    %v118 = vld [vmem:[%s6] sm:$0xf]
    %v119 = vld [vmem:[%s6 + $0x4] sm:$0xf]
    %v120 = vld [vmem:[%s6 + $0x8] sm:$0xf]
    %v121 = vld [vmem:[%s6 + $0xc] sm:$0xf]
    %123 = vrot.lane.b32.xlu0 %v117, 32
    %v124 = vpop.permute.xlu0 %123
    %v129 = vunpack.c.l.b16 %v118
    %v130 = vunpack.c.l.b16 %v119
    %v131 = vunpack.c.l.b16 %v120
    %v132 = vunpack.c.l.b16 %v121
    %v133 = vpack.c.b16 %v130, %v129
    %v134 = vpack.c.b16 %v132, %v131
    %vm137 = vcmask 261120
    %v139 = vsel %vm137, %v124, 0
    %141 = vmatprep.subr.bf16.mxu0 0
    %142 = vmatpush1.bf16.msra.mxu0 0
    %143 = vmatprep.subr.bf16.mxu0 0
    %144 = vmatpush1.bf16.msra.mxu0 0
    %145 = vmatprep.subr.bf16.mxu0 0
    %146 = vmatpush1.bf16.msra.mxu0 0
    %147 = vmatprep.subr.bf16.mxu0 0
    %148 = vmatpush1.bf16.msra.mxu0 0
    %149 = vmatprep.subr.bf16.mxu0 0
    %150 = vmatpush1.bf16.msra.mxu0 0
    %151 = vmatprep.subr.bf16.mxu0 0
    %152 = vmatpush1.bf16.msra.mxu0 0
    %153 = vmatprep.subr.bf16.mxu0 0
    %154 = vmatpush1.bf16.msra.mxu0 %v134
    %155 = vmatprep.subr.bf16.mxu0 0
    %156 = vmatpush1.bf16.msra.mxu0 %v133
    %157 = vmatprep.subr.bf16.mxu0 0
    %158 = vmatpush2.bf16.msra.mxu0 0
    %159 = vmatprep.subr.bf16.mxu0 0
    %160 = vmatpush2.bf16.msra.mxu0 0
    %161 = vmatprep.subr.bf16.mxu0 0
    %162 = vmatpush2.bf16.msra.mxu0 0
    %163 = vmatprep.subr.bf16.mxu0 0
    %164 = vmatpush2.bf16.msra.mxu0 0
    %165 = vmatprep.subr.bf16.mxu0 0
    %166 = vmatpush2.bf16.msra.mxu0 0
    %167 = vmatprep.subr.bf16.mxu0 0
    %168 = vmatpush2.bf16.msra.mxu0 0
    %169 = vmatprep.subr.bf16.mxu0 0
    %170 = vmatpush2.bf16.msra.mxu0 0
    %171 = vmatprep.subr.bf16.mxu0 0
    %172 = vmatpush2.bf16.msra.mxu0 0
    %173 = vmatprep.mubr.bf16.mxu0 0
    %174 = vmatmul.mubr.bf16.gmra.mxu0 %v139
    %v175 = vpop.f32.mrf.mxu0
    %v176 = vadd.f32 0.0, %v175
    %v177 = vpop.f32.mrf.mxu0
    %v178 = vpop.f32.mrf.mxu0
    %v179 = vpop.f32.mrf.mxu0
    %180 = vdwg.mxu0
    %v182 = vcombine.high %v176, %v176
    %v184 = vunpack.c.l.s4 1966171168
    %v185 = vunpack.c.0.s8 %v184
    %v186 = vlaneseq
    %v187 = vshrl.u32 %v186, 7
    %v188 = vsub.s32 %v185, %v187
    %v189 = vrot.slane %v176, %v188
    %v191 = vunpack.c.l.s4 1966171168
    %v192 = vunpack.c.0.s8 %v191
    %v193 = vlaneseq
    %v194 = vshrl.u32 %v193, 7
    %v195 = vsub.s32 %v192, %v194
    %v196 = vrot.slane %v182, %v195
    %v197 = vcombine.high %v189, %v189
    %v198 = vcombine.high %v196, %v196
    %v200 = vunpack.c.l.s4 1966171168
    %v201 = vunpack.c.0.s8 %v200
    %v202 = vlaneseq
    %v203 = vshrl.u32 %v202, 7
    %v204 = vsub.s32 %v201, %v203
    %v205 = vrot.slane %v189, %v204
    %v207 = vunpack.c.l.s4 1966171168
    %v208 = vunpack.c.0.s8 %v207
    %v209 = vlaneseq
    %v210 = vshrl.u32 %v209, 7
    %v211 = vsub.s32 %v208, %v210
    %v212 = vrot.slane %v196, %v211
    %v214 = vunpack.c.l.s4 1966171168
    %v215 = vunpack.c.0.s8 %v214
    %v216 = vlaneseq
    %v217 = vshrl.u32 %v216, 7
    %v218 = vsub.s32 %v215, %v217
    %v219 = vrot.slane %v197, %v218
    %v221 = vunpack.c.l.s4 1966171168
    %v222 = vunpack.c.0.s8 %v221
    %v223 = vlaneseq
    %v224 = vshrl.u32 %v223, 7
    %v225 = vsub.s32 %v222, %v224
    %v226 = vrot.slane %v198, %v225
    %v227 = vcombine.high %v205, %v205
    %v228 = vcombine.high %v212, %v212
    %v229 = vcombine.high %v219, %v219
    %v230 = vcombine.high %v226, %v226
    %v231 = vlaneseq
    %v232 = vshrl.u32 %v231, 7
    %v233 = vsub.s32 0, %v232
    %v234 = vrot.slane %v205, %v233
    %v235 = vlaneseq
    %v236 = vshrl.u32 %v235, 7
    %v237 = vsub.s32 0, %v236
    %v238 = vrot.slane %v219, %v237
    %v239 = vlaneseq
    %v240 = vshrl.u32 %v239, 7
    %v241 = vsub.s32 0, %v240
    %v242 = vrot.slane %v227, %v241
    %v243 = vlaneseq
    %v244 = vshrl.u32 %v243, 7
    %v245 = vsub.s32 0, %v244
    %v246 = vrot.slane %v229, %v245
    %v247 = vlaneseq
    %v248 = vshrl.u32 %v247, 7
    %v249 = vsub.s32 0, %v248
    %v250 = vrot.slane %v212, %v249
    %v251 = vlaneseq
    %v252 = vshrl.u32 %v251, 7
    %v253 = vsub.s32 0, %v252
    %v254 = vrot.slane %v226, %v253
    %v255 = vlaneseq
    %v256 = vshrl.u32 %v255, 7
    %v257 = vsub.s32 0, %v256
    %v258 = vrot.slane %v228, %v257
    %v259 = vlaneseq
    %v260 = vshrl.u32 %v259, 7
    %v261 = vsub.s32 0, %v260
    %v262 = vrot.slane %v230, %v261
    %v271 = vadd.f32 %v234, %v95
    %v272 = vadd.f32 %v238, %v96
    %v273 = vadd.f32 %v242, %v97
    %v274 = vadd.f32 %v246, %v98
    %v275 = vadd.f32 %v250, %v99
    %v276 = vadd.f32 %v254, %v100
    %v277 = vadd.f32 %v258, %v101
    %v278 = vadd.f32 %v262, %v102
    %v280 = vlaneseq
    %v281 = vshrl.u32 %v280, 7
    %v282 = vsub.s32 0, %v281
    %v283 = vrot.slane %v103, %v282
    %v285 = vadd.f32 %v271, %v283
    %v286 = vadd.f32 %v272, %v283
    %v287 = vadd.f32 %v273, %v283
    %v288 = vadd.f32 %v274, %v283
    %v289 = vadd.f32 %v275, %v283
    %v290 = vadd.f32 %v276, %v283
    %v291 = vadd.f32 %v277, %v283
    %v292 = vadd.f32 %v278, %v283
    %v293 = vtanh.pop %v285
    %v294 = vtanh.pop %v286
    %v295 = vtanh.pop %v287
    %v296 = vtanh.pop %v288
    %v297 = vtanh.pop %v289
    %v298 = vtanh.pop %v290
    %v299 = vtanh.pop %v291
    %v300 = vtanh.pop %v292
    %v302 = vlaneseq
    %v303 = vshrl.u32 %v302, 7
    %v304 = vsub.s32 0, %v303
    %v305 = vrot.slane %v104, %v304
    %v307 = vmul.f32 %v293, %v305
    %v308 = vmul.f32 %v294, %v305
    %v309 = vmul.f32 %v295, %v305
    %v310 = vmul.f32 %v296, %v305
    %v311 = vmul.f32 %v297, %v305
    %v312 = vmul.f32 %v298, %v305
    %v313 = vmul.f32 %v299, %v305
    %v314 = vmul.f32 %v300, %v305
    %v315 = vsel %vm137, %v307, 0.0
    %316 = vadd.xlane.f32.xlu0 %v315
    %v317 = vpop.xlane.xlu0 %316
    %v318 = vsel %vm137, %v308, 0.0
    %319 = vadd.xlane.f32.xlu0 %v318
    %v320 = vpop.xlane.xlu0 %319
    %v321 = vsel %vm137, %v309, 0.0
    %322 = vadd.xlane.f32.xlu0 %v321
    %v323 = vpop.xlane.xlu0 %322
    %v324 = vsel %vm137, %v310, 0.0
    %325 = vadd.xlane.f32.xlu0 %v324
    %v326 = vpop.xlane.xlu0 %325
    %v327 = vsel %vm137, %v311, 0.0
    %328 = vadd.xlane.f32.xlu0 %v327
    %v329 = vpop.xlane.xlu0 %328
    %v330 = vsel %vm137, %v312, 0.0
    %331 = vadd.xlane.f32.xlu0 %v330
    %v332 = vpop.xlane.xlu0 %331
    %v333 = vsel %vm137, %v313, 0.0
    %334 = vadd.xlane.f32.xlu0 %v333
    %v335 = vpop.xlane.xlu0 %334
    %v336 = vsel %vm137, %v314, 0.0
    %337 = vadd.xlane.f32.xlu0 %v336
    %v338 = vpop.xlane.xlu0 %337
    %vm339 = vcmp.ge.s32.totalorder %v108, 1
    %v340 = vstv %s110
    %vm341 = vcmp.le.s32.totalorder %v108, %v340
    %vm342 = vmand %vm339, %vm341
    %vm343 = vcmp.eq.s32.totalorder %v108, 0
    %p344 = scmp.eq.s32.totalorder %s110, 0
    %s345 = scalar_select %p344, 1, 0
    %v346 = vstv %s345
    %vm347 = vcmp.eq.s32.totalorder %v346, 1
    %vm348 = vmand %vm343, %vm347
    %vm349 = vmor %vm342, %vm348
    %v358 = vlaneseq
    %v359 = vshrl.u32 %v358, 7
    %v360 = vsub.s32 %v108, %v359
    %v361 = vrot.slane %v317, %v360
    %v362 = vlaneseq
    %v363 = vshrl.u32 %v362, 7
    %v364 = vsub.s32 %v108, %v363
    %v365 = vrot.slane %v320, %v364
    %v366 = vlaneseq
    %v367 = vshrl.u32 %v366, 7
    %v368 = vsub.s32 %v108, %v367
    %v369 = vrot.slane %v323, %v368
    %v370 = vlaneseq
    %v371 = vshrl.u32 %v370, 7
    %v372 = vsub.s32 %v108, %v371
    %v373 = vrot.slane %v326, %v372
    %v374 = vlaneseq
    %v375 = vshrl.u32 %v374, 7
    %v376 = vsub.s32 %v108, %v375
    %v377 = vrot.slane %v329, %v376
    %v378 = vlaneseq
    %v379 = vshrl.u32 %v378, 7
    %v380 = vsub.s32 %v108, %v379
    %v381 = vrot.slane %v332, %v380
    %v382 = vlaneseq
    %v383 = vshrl.u32 %v382, 7
    %v384 = vsub.s32 %v108, %v383
    %v385 = vrot.slane %v335, %v384
    %v386 = vlaneseq
    %v387 = vshrl.u32 %v386, 7
    %v388 = vsub.s32 %v108, %v387
    %v389 = vrot.slane %v338, %v388
    %vm390 = vcmask 1041409
    %v391 = vsel %vm390, %v365, %v361
    %vm392 = vcmask 1042434
    %v393 = vsel %vm392, %v369, %v391
    %vm394 = vcmask 1043459
    %v395 = vsel %vm394, %v373, %v393
    %vm396 = vcmask 1044484
    %v397 = vsel %vm396, %v377, %v395
    %vm398 = vcmask 1045509
    %v399 = vsel %vm398, %v381, %v397
    %vm400 = vcmask 1046534
    %v401 = vsel %vm400, %v385, %v399
    %vm402 = vcmask 1047559
    %v403 = vsel %vm402, %v389, %v401
    %v405 = vsel %vm349, %v403, -1e+30
    %vm406 = vcmask 64512
    %v407 = vsel %vm406, %v405, -inf
    %408 = vmax.xlane.f32.xlu0 %v407
    %v409 = vpop.xlane.xlu0 %408
    %v410 = vsub.f32 %v405, %v409
    %v411 = vmul.f32 %v410, 1.442695
    %v412 = vpow.pop %v411
    %v413 = vsel %vm406, %v412, 0.0
    %414 = vadd.xlane.f32.xlu0 %v413
    %v415 = vpop.xlane.xlu0 %414
    %v416 = vrcp.pop %v415
    %v417 = vmul.f32 %v412, %v416
    %v418 = vlaneseq
    %v419 = vshrl.u32 %v418, 7
    %v420 = vsub.s32 0, %v419
    %v421 = vrot.slane %v417, %v420
    %423 = vbcast.lane.b32.xlu0 %v421, 256
    %v424 = vpop.permute.xlu0 %423
    %v425 = vlaneseq
    %v426 = vshrl.u32 %v425, 7
    %v427 = vsub.s32 1, %v426
    %v428 = vrot.slane %v417, %v427
    %430 = vbcast.lane.b32.xlu0 %v428, 256
    %v431 = vpop.permute.xlu0 %430
    %v432 = vlaneseq
    %v433 = vshrl.u32 %v432, 7
    %v434 = vsub.s32 2, %v433
    %v435 = vrot.slane %v417, %v434
    %437 = vbcast.lane.b32.xlu0 %v435, 256
    %v438 = vpop.permute.xlu0 %437
    %v439 = vlaneseq
    %v440 = vshrl.u32 %v439, 7
    %v441 = vsub.s32 3, %v440
    %v442 = vrot.slane %v417, %v441
    %444 = vbcast.lane.b32.xlu0 %v442, 256
    %v445 = vpop.permute.xlu0 %444
    %v446 = vlaneseq
    %v447 = vshrl.u32 %v446, 7
    %v448 = vsub.s32 4, %v447
    %v449 = vrot.slane %v417, %v448
    %451 = vbcast.lane.b32.xlu0 %v449, 256
    %v452 = vpop.permute.xlu0 %451
    %v453 = vlaneseq
    %v454 = vshrl.u32 %v453, 7
    %v455 = vsub.s32 5, %v454
    %v456 = vrot.slane %v417, %v455
    %458 = vbcast.lane.b32.xlu0 %v456, 256
    %v459 = vpop.permute.xlu0 %458
    %v460 = vlaneseq
    %v461 = vshrl.u32 %v460, 7
    %v462 = vsub.s32 6, %v461
    %v463 = vrot.slane %v417, %v462
    %465 = vbcast.lane.b32.xlu0 %v463, 256
    %v466 = vpop.permute.xlu0 %465
    %v467 = vlaneseq
    %v468 = vshrl.u32 %v467, 7
    %v469 = vsub.s32 7, %v468
    %v470 = vrot.slane %v417, %v469
    %472 = vbcast.lane.b32.xlu0 %v470, 256
    %v473 = vpop.permute.xlu0 %472
    %v474 = vunpack.c.l.bf16 %v63
    %v475 = vunpack.c.l.bf16 %v64
    %v476 = vunpack.c.l.bf16 %v65
    %v477 = vunpack.c.l.bf16 %v66
    %v478 = vunpack.c.l.bf16 %v67
    %v479 = vunpack.c.l.bf16 %v68
    %v480 = vunpack.c.l.bf16 %v69
    %v481 = vunpack.c.l.bf16 %v70
    %v482 = vmul.f32 %v424, %v474
    %v483 = vmul.f32 %v431, %v475
    %v484 = vmul.f32 %v438, %v476
    %v485 = vmul.f32 %v445, %v477
    %v486 = vmul.f32 %v452, %v478
    %v487 = vmul.f32 %v459, %v479
    %v488 = vmul.f32 %v466, %v480
    %v489 = vmul.f32 %v473, %v481
    %vm490 = vcmask 523264
    %v491 = vsel %vm490, %v482, 0.0
    %v492 = vrot.slane %v491, 4
    %v493 = vadd.f32 %v491, %v492
    %v494 = vrot.slane %v493, 2
    %v495 = vadd.f32 %v493, %v494
    %v496 = vrot.slane %v495, 1
    %v497 = vadd.f32 %v495, %v496
    %v498 = vsel %vm490, %v483, 0.0
    %v499 = vrot.slane %v498, 4
    %v500 = vadd.f32 %v498, %v499
    %v501 = vrot.slane %v500, 2
    %v502 = vadd.f32 %v500, %v501
    %v503 = vrot.slane %v502, 1
    %v504 = vadd.f32 %v502, %v503
    %v505 = vsel %vm490, %v484, 0.0
    %v506 = vrot.slane %v505, 4
    %v507 = vadd.f32 %v505, %v506
    %v508 = vrot.slane %v507, 2
    %v509 = vadd.f32 %v507, %v508
    %v510 = vrot.slane %v509, 1
    %v511 = vadd.f32 %v509, %v510
    %v512 = vsel %vm490, %v485, 0.0
    %v513 = vrot.slane %v512, 4
    %v514 = vadd.f32 %v512, %v513
    %v515 = vrot.slane %v514, 2
    %v516 = vadd.f32 %v514, %v515
    %v517 = vrot.slane %v516, 1
    %v518 = vadd.f32 %v516, %v517
    %v519 = vsel %vm490, %v486, 0.0
    %v520 = vrot.slane %v519, 4
    %v521 = vadd.f32 %v519, %v520
    %v522 = vrot.slane %v521, 2
    %v523 = vadd.f32 %v521, %v522
    %v524 = vrot.slane %v523, 1
    %v525 = vadd.f32 %v523, %v524
    %v526 = vsel %vm490, %v487, 0.0
    %v527 = vrot.slane %v526, 4
    %v528 = vadd.f32 %v526, %v527
    %v529 = vrot.slane %v528, 2
    %v530 = vadd.f32 %v528, %v529
    %v531 = vrot.slane %v530, 1
    %v532 = vadd.f32 %v530, %v531
    %v533 = vsel %vm490, %v488, 0.0
    %v534 = vrot.slane %v533, 4
    %v535 = vadd.f32 %v533, %v534
    %v536 = vrot.slane %v535, 2
    %v537 = vadd.f32 %v535, %v536
    %v538 = vrot.slane %v537, 1
    %v539 = vadd.f32 %v537, %v538
    %v540 = vsel %vm490, %v489, 0.0
    %v541 = vrot.slane %v540, 4
    %v542 = vadd.f32 %v540, %v541
    %v543 = vrot.slane %v542, 2
    %v544 = vadd.f32 %v542, %v543
    %v545 = vrot.slane %v544, 1
    %v546 = vadd.f32 %v544, %v545
    %v547 = vunpack.c.l.bf16 %v71
    %v548 = vunpack.c.l.bf16 %v72
    %v549 = vunpack.c.l.bf16 %v73
    %v550 = vunpack.c.l.bf16 %v74
    %v551 = vunpack.c.l.bf16 %v75
    %v552 = vunpack.c.l.bf16 %v76
    %v553 = vunpack.c.l.bf16 %v77
    %v554 = vunpack.c.l.bf16 %v78
    %v555 = vmul.f32 %v424, %v547
    %v556 = vmul.f32 %v431, %v548
    %v557 = vmul.f32 %v438, %v549
    %v558 = vmul.f32 %v445, %v550
    %v559 = vmul.f32 %v452, %v551
    %v560 = vmul.f32 %v459, %v552
    %v561 = vmul.f32 %v466, %v553
    %v562 = vmul.f32 %v473, %v554
    %v563 = vsel %vm490, %v555, 0.0
    %v564 = vrot.slane %v563, 4
    %v565 = vadd.f32 %v563, %v564
    %v566 = vrot.slane %v565, 2
    %v567 = vadd.f32 %v565, %v566
    %v568 = vrot.slane %v567, 1
    %v569 = vadd.f32 %v567, %v568
    %v570 = vsel %vm490, %v556, 0.0
    %v571 = vrot.slane %v570, 4
    %v572 = vadd.f32 %v570, %v571
    %v573 = vrot.slane %v572, 2
    %v574 = vadd.f32 %v572, %v573
    %v575 = vrot.slane %v574, 1
    %v576 = vadd.f32 %v574, %v575
    %v577 = vsel %vm490, %v557, 0.0
    %v578 = vrot.slane %v577, 4
    %v579 = vadd.f32 %v577, %v578
    %v580 = vrot.slane %v579, 2
    %v581 = vadd.f32 %v579, %v580
    %v582 = vrot.slane %v581, 1
    %v583 = vadd.f32 %v581, %v582
    %v584 = vsel %vm490, %v558, 0.0
    %v585 = vrot.slane %v584, 4
    %v586 = vadd.f32 %v584, %v585
    %v587 = vrot.slane %v586, 2
    %v588 = vadd.f32 %v586, %v587
    %v589 = vrot.slane %v588, 1
    %v590 = vadd.f32 %v588, %v589
    %v591 = vsel %vm490, %v559, 0.0
    %v592 = vrot.slane %v591, 4
    %v593 = vadd.f32 %v591, %v592
    %v594 = vrot.slane %v593, 2
    %v595 = vadd.f32 %v593, %v594
    %v596 = vrot.slane %v595, 1
    %v597 = vadd.f32 %v595, %v596
    %v598 = vsel %vm490, %v560, 0.0
    %v599 = vrot.slane %v598, 4
    %v600 = vadd.f32 %v598, %v599
    %v601 = vrot.slane %v600, 2
    %v602 = vadd.f32 %v600, %v601
    %v603 = vrot.slane %v602, 1
    %v604 = vadd.f32 %v602, %v603
    %v605 = vsel %vm490, %v561, 0.0
    %v606 = vrot.slane %v605, 4
    %v607 = vadd.f32 %v605, %v606
    %v608 = vrot.slane %v607, 2
    %v609 = vadd.f32 %v607, %v608
    %v610 = vrot.slane %v609, 1
    %v611 = vadd.f32 %v609, %v610
    %v612 = vsel %vm490, %v562, 0.0
    %v613 = vrot.slane %v612, 4
    %v614 = vadd.f32 %v612, %v613
    %v615 = vrot.slane %v614, 2
    %v616 = vadd.f32 %v614, %v615
    %v617 = vrot.slane %v616, 1
    %v618 = vadd.f32 %v616, %v617
    %v619 = vunpack.c.l.bf16 %v79
    %v620 = vunpack.c.l.bf16 %v80
    %v621 = vunpack.c.l.bf16 %v81
    %v622 = vunpack.c.l.bf16 %v82
    %v623 = vunpack.c.l.bf16 %v83
    %v624 = vunpack.c.l.bf16 %v84
    %v625 = vunpack.c.l.bf16 %v85
    %v626 = vunpack.c.l.bf16 %v86
    %v627 = vmul.f32 %v424, %v619
    %v628 = vmul.f32 %v431, %v620
    %v629 = vmul.f32 %v438, %v621
    %v630 = vmul.f32 %v445, %v622
    %v631 = vmul.f32 %v452, %v623
    %v632 = vmul.f32 %v459, %v624
    %v633 = vmul.f32 %v466, %v625
    %v634 = vmul.f32 %v473, %v626
    %vm635 = vcmask 130048
    %v636 = vsel %vm635, %v627, 0.0
    %v637 = vrot.slane %v636, 4
    %v638 = vadd.f32 %v636, %v637
    %v639 = vrot.slane %v638, 2
    %v640 = vadd.f32 %v638, %v639
    %v641 = vrot.slane %v640, 1
    %v642 = vadd.f32 %v640, %v641
    %v643 = vsel %vm635, %v628, 0.0
    %v644 = vrot.slane %v643, 4
    %v645 = vadd.f32 %v643, %v644
    %v646 = vrot.slane %v645, 2
    %v647 = vadd.f32 %v645, %v646
    %v648 = vrot.slane %v647, 1
    %v649 = vadd.f32 %v647, %v648
    %v650 = vsel %vm635, %v629, 0.0
    %v651 = vrot.slane %v650, 4
    %v652 = vadd.f32 %v650, %v651
    %v653 = vrot.slane %v652, 2
    %v654 = vadd.f32 %v652, %v653
    %v655 = vrot.slane %v654, 1
    %v656 = vadd.f32 %v654, %v655
    %v657 = vsel %vm635, %v630, 0.0
    %v658 = vrot.slane %v657, 4
    %v659 = vadd.f32 %v657, %v658
    %v660 = vrot.slane %v659, 2
    %v661 = vadd.f32 %v659, %v660
    %v662 = vrot.slane %v661, 1
    %v663 = vadd.f32 %v661, %v662
    %v664 = vsel %vm635, %v631, 0.0
    %v665 = vrot.slane %v664, 4
    %v666 = vadd.f32 %v664, %v665
    %v667 = vrot.slane %v666, 2
    %v668 = vadd.f32 %v666, %v667
    %v669 = vrot.slane %v668, 1
    %v670 = vadd.f32 %v668, %v669
    %v671 = vsel %vm635, %v632, 0.0
    %v672 = vrot.slane %v671, 4
    %v673 = vadd.f32 %v671, %v672
    %v674 = vrot.slane %v673, 2
    %v675 = vadd.f32 %v673, %v674
    %v676 = vrot.slane %v675, 1
    %v677 = vadd.f32 %v675, %v676
    %v678 = vsel %vm635, %v633, 0.0
    %v679 = vrot.slane %v678, 4
    %v680 = vadd.f32 %v678, %v679
    %v681 = vrot.slane %v680, 2
    %v682 = vadd.f32 %v680, %v681
    %v683 = vrot.slane %v682, 1
    %v684 = vadd.f32 %v682, %v683
    %v685 = vsel %vm635, %v634, 0.0
    %v686 = vrot.slane %v685, 4
    %v687 = vadd.f32 %v685, %v686
    %v688 = vrot.slane %v687, 2
    %v689 = vadd.f32 %v687, %v688
    %v690 = vrot.slane %v689, 1
    %v691 = vadd.f32 %v689, %v690
    %v692 = vpack.c.bf16 %v497, %v497
    %v693 = vpack.c.bf16 %v504, %v504
    %v694 = vpack.c.bf16 %v511, %v511
    %v695 = vpack.c.bf16 %v518, %v518
    %v696 = vpack.c.bf16 %v525, %v525
    %v697 = vpack.c.bf16 %v532, %v532
    %v698 = vpack.c.bf16 %v539, %v539
    %v699 = vpack.c.bf16 %v546, %v546
    %v700 = vpack.c.bf16 %v569, %v569
    %v701 = vpack.c.bf16 %v576, %v576
    %v702 = vpack.c.bf16 %v583, %v583
    %v703 = vpack.c.bf16 %v590, %v590
    %v704 = vpack.c.bf16 %v597, %v597
    %v705 = vpack.c.bf16 %v604, %v604
    %v706 = vpack.c.bf16 %v611, %v611
    %v707 = vpack.c.bf16 %v618, %v618
    %v708 = vpack.c.bf16 %v642, %v642
    %v709 = vpack.c.bf16 %v649, %v649
    %v710 = vpack.c.bf16 %v656, %v656
    %v711 = vpack.c.bf16 %v663, %v663
    %v712 = vpack.c.bf16 %v670, %v670
    %v713 = vpack.c.bf16 %v677, %v677
    %v714 = vpack.c.bf16 %v684, %v684
    %v715 = vpack.c.bf16 %v691, %v691
    %v716 = vld [vmem:[%s9] sm:$0xf]
    %v717 = vld [vmem:[%s9 + $0x4] sm:$0xf]
    %v718 = vld [vmem:[%s9 + $0x8] sm:$0xf]
    %v719 = vld [vmem:[%s9 + $0xc] sm:$0xf]
    %v720 = vld [vmem:[%s9 + $0x10] sm:$0xf]
    %v721 = vld [vmem:[%s9 + $0x14] sm:$0xf]
    %v722 = vld [vmem:[%s9 + $0x18] sm:$0xf]
    %v723 = vld [vmem:[%s9 + $0x1c] sm:$0xf]
    %v724 = vld [vmem:[%s10] sm:$0xf]
    %v725 = vld [vmem:[%s10 + $0x4] sm:$0xf]
    %v726 = vld [vmem:[%s10 + $0x8] sm:$0xf]
    %v727 = vld [vmem:[%s10 + $0xc] sm:$0xf]
    %v728 = vld [vmem:[%s10 + $0x10] sm:$0xf]
    %v729 = vld [vmem:[%s10 + $0x14] sm:$0xf]
    %v730 = vld [vmem:[%s10 + $0x18] sm:$0xf]
    %v731 = vld [vmem:[%s10 + $0x1c] sm:$0xf]
    %v740 = vunpack.c.l.b16 %v700
    %v741 = vunpack.c.l.b16 %v701
    %v742 = vunpack.c.l.b16 %v702
    %v743 = vunpack.c.l.b16 %v703
    %v744 = vunpack.c.l.b16 %v704
    %v745 = vunpack.c.l.b16 %v705
    %v746 = vunpack.c.l.b16 %v706
    %v747 = vunpack.c.l.b16 %v707
    %v748 = vsel %vm390, %v741, %v740
    %v749 = vsel %vm392, %v742, %v748
    %v750 = vsel %vm394, %v743, %v749
    %v751 = vsel %vm396, %v744, %v750
    %v752 = vsel %vm398, %v745, %v751
    %v753 = vsel %vm400, %v746, %v752
    %v754 = vsel %vm402, %v747, %v753
    %v755 = vpack.c.b16 %v754, %v754
    %v764 = vunpack.c.l.b16 %v724
    %v765 = vunpack.c.l.b16 %v725
    %v766 = vunpack.c.l.b16 %v726
    %v767 = vunpack.c.l.b16 %v727
    %v768 = vunpack.c.l.b16 %v728
    %v769 = vunpack.c.l.b16 %v729
    %v770 = vunpack.c.l.b16 %v730
    %v771 = vunpack.c.l.b16 %v731
    %v772 = vpack.c.b16 %v765, %v764
    %v773 = vpack.c.b16 %v767, %v766
    %v774 = vpack.c.b16 %v769, %v768
    %v775 = vpack.c.b16 %v771, %v770
    %v781 = vsel %vm490, %v755, 0
    %783 = vmatprep.subr.bf16.mxu0 0
    %784 = vmatpush1.bf16.msra.mxu0 0
    %785 = vmatprep.subr.bf16.mxu0 0
    %786 = vmatpush1.bf16.msra.mxu0 0
    %787 = vmatprep.subr.bf16.mxu0 0
    %788 = vmatpush1.bf16.msra.mxu0 0
    %789 = vmatprep.subr.bf16.mxu0 0
    %790 = vmatpush1.bf16.msra.mxu0 0
    %791 = vmatprep.subr.bf16.mxu0 0
    %792 = vmatpush1.bf16.msra.mxu0 %v775
    %793 = vmatprep.subr.bf16.mxu0 0
    %794 = vmatpush1.bf16.msra.mxu0 %v774
    %795 = vmatprep.subr.bf16.mxu0 0
    %796 = vmatpush1.bf16.msra.mxu0 %v773
    %797 = vmatprep.subr.bf16.mxu0 0
    %798 = vmatpush1.bf16.msra.mxu0 %v772
    %799 = vmatprep.subr.bf16.mxu0 0
    %800 = vmatpush2.bf16.msra.mxu0 0
    %801 = vmatprep.subr.bf16.mxu0 0
    %802 = vmatpush2.bf16.msra.mxu0 0
    %803 = vmatprep.subr.bf16.mxu0 0
    %804 = vmatpush2.bf16.msra.mxu0 0
    %805 = vmatprep.subr.bf16.mxu0 0
    %806 = vmatpush2.bf16.msra.mxu0 0
    %807 = vmatprep.subr.bf16.mxu0 0
    %808 = vmatpush2.bf16.msra.mxu0 0
    %809 = vmatprep.subr.bf16.mxu0 0
    %810 = vmatpush2.bf16.msra.mxu0 0
    %811 = vmatprep.subr.bf16.mxu0 0
    %812 = vmatpush2.bf16.msra.mxu0 0
    %813 = vmatprep.subr.bf16.mxu0 0
    %814 = vmatpush2.bf16.msra.mxu0 0
    %815 = vmatprep.mubr.bf16.mxu0 0
    %816 = vmatmul.mubr.bf16.gmra.mxu0 %v781
    %v817 = vpop.f32.mrf.mxu0
    %v818 = vadd.f32 0.0, %v817
    %v819 = vpop.f32.mrf.mxu0
    %v820 = vpop.f32.mrf.mxu0
    %v821 = vpop.f32.mrf.mxu0
    %822 = vdwg.mxu0
    %v831 = vunpack.c.l.b16 %v692
    %v832 = vunpack.c.l.b16 %v693
    %v833 = vunpack.c.l.b16 %v694
    %v834 = vunpack.c.l.b16 %v695
    %v835 = vunpack.c.l.b16 %v696
    %v836 = vunpack.c.l.b16 %v697
    %v837 = vunpack.c.l.b16 %v698
    %v838 = vunpack.c.l.b16 %v699
    %v839 = vsel %vm390, %v832, %v831
    %v840 = vsel %vm392, %v833, %v839
    %v841 = vsel %vm394, %v834, %v840
    %v842 = vsel %vm396, %v835, %v841
    %v843 = vsel %vm398, %v836, %v842
    %v844 = vsel %vm400, %v837, %v843
    %v845 = vsel %vm402, %v838, %v844
    %v846 = vpack.c.b16 %v845, %v845
    %v855 = vunpack.c.l.b16 %v716
    %v856 = vunpack.c.l.b16 %v717
    %v857 = vunpack.c.l.b16 %v718
    %v858 = vunpack.c.l.b16 %v719
    %v859 = vunpack.c.l.b16 %v720
    %v860 = vunpack.c.l.b16 %v721
    %v861 = vunpack.c.l.b16 %v722
    %v862 = vunpack.c.l.b16 %v723
    %v863 = vpack.c.b16 %v856, %v855
    %v864 = vpack.c.b16 %v858, %v857
    %v865 = vpack.c.b16 %v860, %v859
    %v866 = vpack.c.b16 %v862, %v861
    %v872 = vsel %vm490, %v846, 0
    %874 = vmatprep.subr.bf16.mxu0 0
    %875 = vmatpush1.bf16.msra.mxu0 0
    %876 = vmatprep.subr.bf16.mxu0 0
    %877 = vmatpush1.bf16.msra.mxu0 0
    %878 = vmatprep.subr.bf16.mxu0 0
    %879 = vmatpush1.bf16.msra.mxu0 0
    %880 = vmatprep.subr.bf16.mxu0 0
    %881 = vmatpush1.bf16.msra.mxu0 0
    %882 = vmatprep.subr.bf16.mxu0 0
    %883 = vmatpush1.bf16.msra.mxu0 %v866
    %884 = vmatprep.subr.bf16.mxu0 0
    %885 = vmatpush1.bf16.msra.mxu0 %v865
    %886 = vmatprep.subr.bf16.mxu0 0
    %887 = vmatpush1.bf16.msra.mxu0 %v864
    %888 = vmatprep.subr.bf16.mxu0 0
    %889 = vmatpush1.bf16.msra.mxu0 %v863
    %890 = vmatprep.subr.bf16.mxu0 0
    %891 = vmatpush2.bf16.msra.mxu0 0
    %892 = vmatprep.subr.bf16.mxu0 0
    %893 = vmatpush2.bf16.msra.mxu0 0
    %894 = vmatprep.subr.bf16.mxu0 0
    %895 = vmatpush2.bf16.msra.mxu0 0
    %896 = vmatprep.subr.bf16.mxu0 0
    %897 = vmatpush2.bf16.msra.mxu0 0
    %898 = vmatprep.subr.bf16.mxu0 0
    %899 = vmatpush2.bf16.msra.mxu0 0
    %900 = vmatprep.subr.bf16.mxu0 0
    %901 = vmatpush2.bf16.msra.mxu0 0
    %902 = vmatprep.subr.bf16.mxu0 0
    %903 = vmatpush2.bf16.msra.mxu0 0
    %904 = vmatprep.subr.bf16.mxu0 0
    %905 = vmatpush2.bf16.msra.mxu0 0
    %906 = vmatprep.mubr.bf16.mxu0 0
    %907 = vmatmul.mubr.bf16.gmra.mxu0 %v872
    %v908 = vpop.f32.mrf.mxu0
    %v909 = vadd.f32 %v818, %v908
    %v910 = vpop.f32.mrf.mxu0
    %v911 = vpop.f32.mrf.mxu0
    %v912 = vpop.f32.mrf.mxu0
    %913 = vdwg.mxu0
    %v914 = vld [vmem:[%s11] sm:$0xf]
    %v915 = vld [vmem:[%s11 + $0x4] sm:$0xf]
    %v924 = vunpack.c.l.b16 %v708
    %v925 = vunpack.c.l.b16 %v709
    %v926 = vunpack.c.l.b16 %v710
    %v927 = vunpack.c.l.b16 %v711
    %v928 = vunpack.c.l.b16 %v712
    %v929 = vunpack.c.l.b16 %v713
    %v930 = vunpack.c.l.b16 %v714
    %v931 = vunpack.c.l.b16 %v715
    %v932 = vsel %vm390, %v925, %v924
    %v933 = vsel %vm392, %v926, %v932
    %v934 = vsel %vm394, %v927, %v933
    %v935 = vsel %vm396, %v928, %v934
    %v936 = vsel %vm398, %v929, %v935
    %v937 = vsel %vm400, %v930, %v936
    %v938 = vsel %vm402, %v931, %v937
    %v939 = vpack.c.b16 %v938, %v938
    %v942 = vunpack.c.l.b16 %v914
    %v943 = vunpack.c.l.b16 %v915
    %v944 = vpack.c.b16 %v943, %v942
    %v947 = vsel %vm635, %v939, 0
    %949 = vmatprep.subr.bf16.mxu0 0
    %950 = vmatpush1.bf16.msra.mxu0 0
    %951 = vmatprep.subr.bf16.mxu0 0
    %952 = vmatpush1.bf16.msra.mxu0 0
    %953 = vmatprep.subr.bf16.mxu0 0
    %954 = vmatpush1.bf16.msra.mxu0 0
    %955 = vmatprep.subr.bf16.mxu0 0
    %956 = vmatpush1.bf16.msra.mxu0 0
    %957 = vmatprep.subr.bf16.mxu0 0
    %958 = vmatpush1.bf16.msra.mxu0 0
    %959 = vmatprep.subr.bf16.mxu0 0
    %960 = vmatpush1.bf16.msra.mxu0 0
    %961 = vmatprep.subr.bf16.mxu0 0
    %962 = vmatpush1.bf16.msra.mxu0 0
    %963 = vmatprep.subr.bf16.mxu0 0
    %964 = vmatpush1.bf16.msra.mxu0 %v944
    %965 = vmatprep.subr.bf16.mxu0 0
    %966 = vmatpush2.bf16.msra.mxu0 0
    %967 = vmatprep.subr.bf16.mxu0 0
    %968 = vmatpush2.bf16.msra.mxu0 0
    %969 = vmatprep.subr.bf16.mxu0 0
    %970 = vmatpush2.bf16.msra.mxu0 0
    %971 = vmatprep.subr.bf16.mxu0 0
    %972 = vmatpush2.bf16.msra.mxu0 0
    %973 = vmatprep.subr.bf16.mxu0 0
    %974 = vmatpush2.bf16.msra.mxu0 0
    %975 = vmatprep.subr.bf16.mxu0 0
    %976 = vmatpush2.bf16.msra.mxu0 0
    %977 = vmatprep.subr.bf16.mxu0 0
    %978 = vmatpush2.bf16.msra.mxu0 0
    %979 = vmatprep.subr.bf16.mxu0 0
    %980 = vmatpush2.bf16.msra.mxu0 0
    %981 = vmatprep.mubr.bf16.mxu0 0
    %982 = vmatmul.mubr.bf16.gmra.mxu0 %v947
    %v983 = vpop.f32.mrf.mxu0
    %v984 = vadd.f32 0.0, %v983
    %v985 = vpop.f32.mrf.mxu0
    %v986 = vpop.f32.mrf.mxu0
    %v987 = vpop.f32.mrf.mxu0
    %988 = vdwg.mxu0
    %v989 = vadd.f32 %v909, %v984
    %v990 = vld [vmem:[%s12] sm:$0xf]
    %v991 = vld [vmem:[%s12 + $0x4] sm:$0xf]
    %v992 = vld [vmem:[%s12 + $0x8] sm:$0xf]
    %v993 = vld [vmem:[%s12 + $0xc] sm:$0xf]
    %v998 = vunpack.c.l.b16 %v990
    %v999 = vunpack.c.l.b16 %v991
    %v1000 = vunpack.c.l.b16 %v992
    %v1001 = vunpack.c.l.b16 %v993
    %v1002 = vpack.c.b16 %v999, %v998
    %v1003 = vpack.c.b16 %v1001, %v1000
    %1006 = vmatprep.subr.bf16.mxu0 0
    %1007 = vmatpush1.bf16.msra.mxu0 0
    %1008 = vmatprep.subr.bf16.mxu0 0
    %1009 = vmatpush1.bf16.msra.mxu0 0
    %1010 = vmatprep.subr.bf16.mxu0 0
    %1011 = vmatpush1.bf16.msra.mxu0 0
    %1012 = vmatprep.subr.bf16.mxu0 0
    %1013 = vmatpush1.bf16.msra.mxu0 0
    %1014 = vmatprep.subr.bf16.mxu0 0
    %1015 = vmatpush1.bf16.msra.mxu0 0
    %1016 = vmatprep.subr.bf16.mxu0 0
    %1017 = vmatpush1.bf16.msra.mxu0 0
    %1018 = vmatprep.subr.bf16.mxu0 0
    %1019 = vmatpush1.bf16.msra.mxu0 %v1003
    %1020 = vmatprep.subr.bf16.mxu0 0
    %1021 = vmatpush1.bf16.msra.mxu0 %v1002
    %1022 = vmatprep.subr.bf16.mxu0 0
    %1023 = vmatpush2.bf16.msra.mxu0 0
    %1024 = vmatprep.subr.bf16.mxu0 0
    %1025 = vmatpush2.bf16.msra.mxu0 0
    %1026 = vmatprep.subr.bf16.mxu0 0
    %1027 = vmatpush2.bf16.msra.mxu0 0
    %1028 = vmatprep.subr.bf16.mxu0 0
    %1029 = vmatpush2.bf16.msra.mxu0 0
    %1030 = vmatprep.subr.bf16.mxu0 0
    %1031 = vmatpush2.bf16.msra.mxu0 0
    %1032 = vmatprep.subr.bf16.mxu0 0
    %1033 = vmatpush2.bf16.msra.mxu0 0
    %1034 = vmatprep.subr.bf16.mxu0 0
    %1035 = vmatpush2.bf16.msra.mxu0 0
    %1036 = vmatprep.subr.bf16.mxu0 0
    %1037 = vmatpush2.bf16.msra.mxu0 0
    %1038 = vmatprep.mubr.bf16.mxu0 0
    %1039 = vmatmul.mubr.bf16.gmra.mxu0 %v139
    %v1040 = vpop.f32.mrf.mxu0
    %v1041 = vadd.f32 0.0, %v1040
    %v1042 = vpop.f32.mrf.mxu0
    %v1043 = vpop.f32.mrf.mxu0
    %v1044 = vpop.f32.mrf.mxu0
    %1045 = vdwg.mxu0
    %v1046 = vadd.f32 %v989, %v1041
    %s1047 = smul.u32 %s110, 8
    %s1048 = scalar_lea.vmem %s4, %s1047
    %v1049 = vld [vmem:[%s1048] sm:$0xff]
    %v1050 = vadd.f32 %v1046, %v1049
    %v1052 = vlaneseq
    %v1053 = vshrl.u32 %v1052, 7
    %v1054 = vsub.s32 0, %v1053
    %v1055 = vrot.slane %v105, %v1054
    %v1057 = vadd.f32 %v1050, %v1055
    %v1058 = vmul.f32 %v1057, 0.5
    %v1059 = vtanh.pop %v1058
    %v1060 = vadd.f32 %v1059, 1.0
    %v1061 = vmul.f32 %v1060, 0.5
    %v1062 = vtanh.pop %v1057
    %v1063 = vmul.f32 %v1061, %v116
    %1065 = vrot.lane.b32.xlu0 %v1062, 64
    %v1066 = vpop.permute.xlu0 %1065
    %v1068 = vmul.f32 %v1061, %v1066
    %1070 = vrot.lane.b32.xlu0 %v1068, 32
    %v1071 = vpop.permute.xlu0 %1070
    %v1073 = vadd.f32 %v1063, %v1071
    %v1074 = vtanh.pop %v1073
    %1076 = vrot.lane.b32.xlu0 %v1074, 64
    %v1077 = vpop.permute.xlu0 %1076
    %v1079 = vmul.f32 %v1061, %v1077
    %v1080 = vpack.c.bf16 %v1079, %v1079
    %v1081 = vld [vmem:[%s14] sm:$0xf]
    %v1082 = vld [vmem:[%s14 + $0x4] sm:$0xf]
    %v1083 = vld [vmem:[%s14 + $0x8] sm:$0xf]
    %v1084 = vld [vmem:[%s14 + $0xc] sm:$0xf]
    %v1085 = vld [vmem:[%s15] sm:$0xf]
    %v1086 = vld [vmem:[%s15 + $0x4] sm:$0xf]
    %v1087 = vld [vmem:[%s15 + $0x8] sm:$0xf]
    %v1088 = vld [vmem:[%s15 + $0xc] sm:$0xf]
    %v1089 = vld [vmem:[%s15 + $0x10] sm:$0xf]
    %v1090 = vld [vmem:[%s15 + $0x14] sm:$0xf]
    %v1091 = vld [vmem:[%s15 + $0x18] sm:$0xf]
    %v1092 = vld [vmem:[%s15 + $0x1c] sm:$0xf]
    %v1101 = vunpack.c.l.b16 %v1085
    %v1102 = vunpack.c.l.b16 %v1086
    %v1103 = vunpack.c.l.b16 %v1087
    %v1104 = vunpack.c.l.b16 %v1088
    %v1105 = vunpack.c.l.b16 %v1089
    %v1106 = vunpack.c.l.b16 %v1090
    %v1107 = vunpack.c.l.b16 %v1091
    %v1108 = vunpack.c.l.b16 %v1092
    %v1109 = vpack.c.b16 %v1102, %v1101
    %v1110 = vpack.c.b16 %v1104, %v1103
    %v1111 = vpack.c.b16 %v1106, %v1105
    %v1112 = vpack.c.b16 %v1108, %v1107
    %1117 = vmatprep.subr.bf16.mxu0 0
    %1118 = vmatpush1.bf16.msra.mxu0 0
    %1119 = vmatprep.subr.bf16.mxu0 0
    %1120 = vmatpush1.bf16.msra.mxu0 0
    %1121 = vmatprep.subr.bf16.mxu0 0
    %1122 = vmatpush1.bf16.msra.mxu0 0
    %1123 = vmatprep.subr.bf16.mxu0 0
    %1124 = vmatpush1.bf16.msra.mxu0 0
    %1125 = vmatprep.subr.bf16.mxu0 0
    %1126 = vmatpush1.bf16.msra.mxu0 %v1112
    %1127 = vmatprep.subr.bf16.mxu0 0
    %1128 = vmatpush1.bf16.msra.mxu0 %v1111
    %1129 = vmatprep.subr.bf16.mxu0 0
    %1130 = vmatpush1.bf16.msra.mxu0 %v1110
    %1131 = vmatprep.subr.bf16.mxu0 0
    %1132 = vmatpush1.bf16.msra.mxu0 %v1109
    %1133 = vmatprep.subr.bf16.mxu0 0
    %1134 = vmatpush2.bf16.msra.mxu0 0
    %1135 = vmatprep.subr.bf16.mxu0 0
    %1136 = vmatpush2.bf16.msra.mxu0 0
    %1137 = vmatprep.subr.bf16.mxu0 0
    %1138 = vmatpush2.bf16.msra.mxu0 0
    %1139 = vmatprep.subr.bf16.mxu0 0
    %1140 = vmatpush2.bf16.msra.mxu0 0
    %1141 = vmatprep.subr.bf16.mxu0 0
    %1142 = vmatpush2.bf16.msra.mxu0 0
    %1143 = vmatprep.subr.bf16.mxu0 0
    %1144 = vmatpush2.bf16.msra.mxu0 0
    %1145 = vmatprep.subr.bf16.mxu0 0
    %1146 = vmatpush2.bf16.msra.mxu0 0
    %1147 = vmatprep.subr.bf16.mxu0 0
    %1148 = vmatpush2.bf16.msra.mxu0 0
    %1149 = vmatprep.mubr.bf16.mxu0 0
    %1150 = vmatmul.mubr.bf16.gmra.mxu0 %v872
    %v1151 = vpop.f32.mrf.mxu0
    %v1152 = vadd.f32 0.0, %v1151
    %v1153 = vpop.f32.mrf.mxu0
    %v1154 = vpop.f32.mrf.mxu0
    %v1155 = vpop.f32.mrf.mxu0
    %1156 = vdwg.mxu0
    %1158 = vrot.lane.b32.xlu0 %v1080, 32
    %v1159 = vpop.permute.xlu0 %1158
    %v1164 = vunpack.c.l.b16 %v1081
    %v1165 = vunpack.c.l.b16 %v1082
    %v1166 = vunpack.c.l.b16 %v1083
    %v1167 = vunpack.c.l.b16 %v1084
    %v1168 = vpack.c.b16 %v1165, %v1164
    %v1169 = vpack.c.b16 %v1167, %v1166
    %v1173 = vsel %vm137, %v1159, 0
    %1175 = vmatprep.subr.bf16.mxu0 0
    %1176 = vmatpush1.bf16.msra.mxu0 0
    %1177 = vmatprep.subr.bf16.mxu0 0
    %1178 = vmatpush1.bf16.msra.mxu0 0
    %1179 = vmatprep.subr.bf16.mxu0 0
    %1180 = vmatpush1.bf16.msra.mxu0 0
    %1181 = vmatprep.subr.bf16.mxu0 0
    %1182 = vmatpush1.bf16.msra.mxu0 0
    %1183 = vmatprep.subr.bf16.mxu0 0
    %1184 = vmatpush1.bf16.msra.mxu0 0
    %1185 = vmatprep.subr.bf16.mxu0 0
    %1186 = vmatpush1.bf16.msra.mxu0 0
    %1187 = vmatprep.subr.bf16.mxu0 0
    %1188 = vmatpush1.bf16.msra.mxu0 %v1169
    %1189 = vmatprep.subr.bf16.mxu0 0
    %1190 = vmatpush1.bf16.msra.mxu0 %v1168
    %1191 = vmatprep.subr.bf16.mxu0 0
    %1192 = vmatpush2.bf16.msra.mxu0 0
    %1193 = vmatprep.subr.bf16.mxu0 0
    %1194 = vmatpush2.bf16.msra.mxu0 0
    %1195 = vmatprep.subr.bf16.mxu0 0
    %1196 = vmatpush2.bf16.msra.mxu0 0
    %1197 = vmatprep.subr.bf16.mxu0 0
    %1198 = vmatpush2.bf16.msra.mxu0 0
    %1199 = vmatprep.subr.bf16.mxu0 0
    %1200 = vmatpush2.bf16.msra.mxu0 0
    %1201 = vmatprep.subr.bf16.mxu0 0
    %1202 = vmatpush2.bf16.msra.mxu0 0
    %1203 = vmatprep.subr.bf16.mxu0 0
    %1204 = vmatpush2.bf16.msra.mxu0 0
    %1205 = vmatprep.subr.bf16.mxu0 0
    %1206 = vmatpush2.bf16.msra.mxu0 0
    %1207 = vmatprep.mubr.bf16.mxu0 0
    %1208 = vmatmul.mubr.bf16.gmra.mxu0 %v1173
    %v1209 = vpop.f32.mrf.mxu0
    %v1210 = vadd.f32 %v1152, %v1209
    %v1211 = vpop.f32.mrf.mxu0
    %v1212 = vpop.f32.mrf.mxu0
    %v1213 = vpop.f32.mrf.mxu0
    %1214 = vdwg.mxu0
    %v1215 = vld [vmem:[%s16] sm:$0xf]
    %v1216 = vld [vmem:[%s16 + $0x4] sm:$0xf]
    %v1217 = vld [vmem:[%s16 + $0x8] sm:$0xf]
    %v1218 = vld [vmem:[%s16 + $0xc] sm:$0xf]
    %v1219 = vld [vmem:[%s16 + $0x10] sm:$0xf]
    %v1220 = vld [vmem:[%s16 + $0x14] sm:$0xf]
    %v1221 = vld [vmem:[%s16 + $0x18] sm:$0xf]
    %v1222 = vld [vmem:[%s16 + $0x1c] sm:$0xf]
    %v1231 = vunpack.c.l.b16 %v1215
    %v1232 = vunpack.c.l.b16 %v1216
    %v1233 = vunpack.c.l.b16 %v1217
    %v1234 = vunpack.c.l.b16 %v1218
    %v1235 = vunpack.c.l.b16 %v1219
    %v1236 = vunpack.c.l.b16 %v1220
    %v1237 = vunpack.c.l.b16 %v1221
    %v1238 = vunpack.c.l.b16 %v1222
    %v1239 = vpack.c.b16 %v1232, %v1231
    %v1240 = vpack.c.b16 %v1234, %v1233
    %v1241 = vpack.c.b16 %v1236, %v1235
    %v1242 = vpack.c.b16 %v1238, %v1237
    %1247 = vmatprep.subr.bf16.mxu0 0
    %1248 = vmatpush1.bf16.msra.mxu0 0
    %1249 = vmatprep.subr.bf16.mxu0 0
    %1250 = vmatpush1.bf16.msra.mxu0 0
    %1251 = vmatprep.subr.bf16.mxu0 0
    %1252 = vmatpush1.bf16.msra.mxu0 0
    %1253 = vmatprep.subr.bf16.mxu0 0
    %1254 = vmatpush1.bf16.msra.mxu0 0
    %1255 = vmatprep.subr.bf16.mxu0 0
    %1256 = vmatpush1.bf16.msra.mxu0 %v1242
    %1257 = vmatprep.subr.bf16.mxu0 0
    %1258 = vmatpush1.bf16.msra.mxu0 %v1241
    %1259 = vmatprep.subr.bf16.mxu0 0
    %1260 = vmatpush1.bf16.msra.mxu0 %v1240
    %1261 = vmatprep.subr.bf16.mxu0 0
    %1262 = vmatpush1.bf16.msra.mxu0 %v1239
    %1263 = vmatprep.subr.bf16.mxu0 0
    %1264 = vmatpush2.bf16.msra.mxu0 0
    %1265 = vmatprep.subr.bf16.mxu0 0
    %1266 = vmatpush2.bf16.msra.mxu0 0
    %1267 = vmatprep.subr.bf16.mxu0 0
    %1268 = vmatpush2.bf16.msra.mxu0 0
    %1269 = vmatprep.subr.bf16.mxu0 0
    %1270 = vmatpush2.bf16.msra.mxu0 0
    %1271 = vmatprep.subr.bf16.mxu0 0
    %1272 = vmatpush2.bf16.msra.mxu0 0
    %1273 = vmatprep.subr.bf16.mxu0 0
    %1274 = vmatpush2.bf16.msra.mxu0 0
    %1275 = vmatprep.subr.bf16.mxu0 0
    %1276 = vmatpush2.bf16.msra.mxu0 0
    %1277 = vmatprep.subr.bf16.mxu0 0
    %1278 = vmatpush2.bf16.msra.mxu0 0
    %1279 = vmatprep.mubr.bf16.mxu0 0
    %1280 = vmatmul.mubr.bf16.gmra.mxu0 %v781
    %v1281 = vpop.f32.mrf.mxu0
    %v1282 = vadd.f32 0.0, %v1281
    %v1283 = vpop.f32.mrf.mxu0
    %v1284 = vpop.f32.mrf.mxu0
    %v1285 = vpop.f32.mrf.mxu0
    %1286 = vdwg.mxu0
    %v1287 = vadd.f32 %v1210, %v1282
    %v1288 = vld [vmem:[%s17] sm:$0xf]
    %v1289 = vld [vmem:[%s17 + $0x4] sm:$0xf]
    %v1292 = vunpack.c.l.b16 %v1288
    %v1293 = vunpack.c.l.b16 %v1289
    %v1294 = vpack.c.b16 %v1293, %v1292
    %1296 = vmatprep.subr.bf16.mxu0 0
    %1297 = vmatpush1.bf16.msra.mxu0 0
    %1298 = vmatprep.subr.bf16.mxu0 0
    %1299 = vmatpush1.bf16.msra.mxu0 0
    %1300 = vmatprep.subr.bf16.mxu0 0
    %1301 = vmatpush1.bf16.msra.mxu0 0
    %1302 = vmatprep.subr.bf16.mxu0 0
    %1303 = vmatpush1.bf16.msra.mxu0 0
    %1304 = vmatprep.subr.bf16.mxu0 0
    %1305 = vmatpush1.bf16.msra.mxu0 0
    %1306 = vmatprep.subr.bf16.mxu0 0
    %1307 = vmatpush1.bf16.msra.mxu0 0
    %1308 = vmatprep.subr.bf16.mxu0 0
    %1309 = vmatpush1.bf16.msra.mxu0 0
    %1310 = vmatprep.subr.bf16.mxu0 0
    %1311 = vmatpush1.bf16.msra.mxu0 %v1294
    %1312 = vmatprep.subr.bf16.mxu0 0
    %1313 = vmatpush2.bf16.msra.mxu0 0
    %1314 = vmatprep.subr.bf16.mxu0 0
    %1315 = vmatpush2.bf16.msra.mxu0 0
    %1316 = vmatprep.subr.bf16.mxu0 0
    %1317 = vmatpush2.bf16.msra.mxu0 0
    %1318 = vmatprep.subr.bf16.mxu0 0
    %1319 = vmatpush2.bf16.msra.mxu0 0
    %1320 = vmatprep.subr.bf16.mxu0 0
    %1321 = vmatpush2.bf16.msra.mxu0 0
    %1322 = vmatprep.subr.bf16.mxu0 0
    %1323 = vmatpush2.bf16.msra.mxu0 0
    %1324 = vmatprep.subr.bf16.mxu0 0
    %1325 = vmatpush2.bf16.msra.mxu0 0
    %1326 = vmatprep.subr.bf16.mxu0 0
    %1327 = vmatpush2.bf16.msra.mxu0 0
    %1328 = vmatprep.mubr.bf16.mxu0 0
    %1329 = vmatmul.mubr.bf16.gmra.mxu0 %v947
    %v1330 = vpop.f32.mrf.mxu0
    %v1331 = vadd.f32 0.0, %v1330
    %v1332 = vpop.f32.mrf.mxu0
    %v1333 = vpop.f32.mrf.mxu0
    %v1334 = vpop.f32.mrf.mxu0
    %1335 = vdwg.mxu0
    %v1336 = vadd.f32 %v1287, %v1331
    %s1337 = scalar_lea.vmem %s5, %s1047
    %v1338 = vld [vmem:[%s1337] sm:$0xff]
    %v1339 = vadd.f32 %v1336, %v1338
    %v1341 = vlaneseq
    %v1342 = vshrl.u32 %v1341, 7
    %v1343 = vsub.s32 0, %v1342
    %v1344 = vrot.slane %v106, %v1343
    %v1346 = vadd.f32 %v1339, %v1344
    %v1347 = vtanh.pop %v1346
    %v1348 = vpack.c.bf16 %v1347, %v1347
    %s1349 = smul.addr %s110, 4
    %s1350 = scalar_lea.vmem %s19, %s1349
    %vm1351 = vcmask 257024
    %1352 = vst.msk [vmem:[%s1350] sm:$0xf] %vm1351, %v1348
  $region82: #{decoder_forward.4} parent=0 // loop_footer
    %s114 = sadd.s32 1, %s110
  $region83: #{decoder_forward.4} parent=0 // loop_footer_branch
    %109 = sbr.rel target = $region79
  $region84: #{decoder_forward.4} parent=0 // loop_exit
    _
  // Predicated region
  $region85: #{decoder_forward.4} parent=0 // pred_check
    _
  $region86: #{decoder_forward.4} parent=0 // pred_check_branch
    %1354 = sbr.rel (0) target = $region88
  $region87: #{decoder_forward.4} parent=0 // pred_region
    _
  $region88: #{decoder_forward.4} parent=0 // pred_fallthru
    _
  // Predicated region
  $region89: #{decoder_forward.4} parent=0 // pred_check
    _
  $region90: #{decoder_forward.4} parent=0 // pred_check_branch
    %1356 = sbr.rel (0) target = $region92
  $region91: #{decoder_forward.4} parent=0 // pred_region
    _
  $region92: #{decoder_forward.4} parent=0 // pred_fallthru
    _

</llo_original>
